<compile_context>
chip_gen: v5e
topology: v5e:2x2
jax: 0.10.0
libtpu: 0.0.40
codegen_flags: <defaults>
</compile_context>

<pallas_src>
import functools
import math

import numpy as np

import jax
import jax.numpy as jnp
from jax.experimental import pallas as pl
from jax.experimental.pallas import tpu as pltpu


# ----------------------------- Pallas kernels -----------------------------

def _conv_pool_kernel(x_ref, rhs0_ref, rhs1_ref, b_ref, o_ref, *, ho, kh_total):
    """Fused conv(k5,s1,p2) + bias + ReLU + maxpool2x2 for one image.

    x_ref:   (1, 2, Hp//2, Wp*Cin)  zero-padded input, split by row parity
    rhsX_ref:(kh_total*Wp*Cin, Wo*Cout) banded weight matrix for col-parity X
    b_ref:   (1, Wo*Cout)           bias tiled over output columns
    o_ref:   (1, Ho, Wo*Cout)       pooled output, lane-dense
    """
    def build_lhs(di):
        # LHS row i, lane kh*(Wp*Cin) + w*Cin + ci  ==  xpad[2i+di+kh, w, ci]
        parts = []
        for kh in range(kh_total):
            a = di + kh
            parts.append(x_ref[0, a % 2, a // 2: a // 2 + ho, :])
        return jnp.concatenate(parts, axis=-1)          # (Ho, kh_total*Wp*Cin)

    l0 = build_lhs(0)
    l1 = build_lhs(1)
    r0 = rhs0_ref[...]
    r1 = rhs1_ref[...]

    dot = lambda a, b: jnp.dot(a, b, preferred_element_type=jnp.float32)
    # 4 pooling taps (row parity di, column parity dj) -> elementwise max.
    pooled = jnp.maximum(jnp.maximum(dot(l0, r0), dot(l0, r1)),
                         jnp.maximum(dot(l1, r0), dot(l1, r1)))
    # bias & ReLU commute with the max (same bias for all taps, ReLU monotone)
    o_ref[0] = jnp.maximum(pooled + b_ref[...], 0.0).astype(o_ref.dtype)


def conv_relu_pool(x_par, rhs0, rhs1, bias, ho):
    """x_par: (B, 2, Hp//2, Wp*Cin) -> (B, Ho, Wo*Cout)."""
    B, _, hp2, wpc = x_par.shape
    k, n = rhs0.shape
    kernel = functools.partial(_conv_pool_kernel, ho=ho, kh_total=5)
    return pl.pallas_call(
        kernel,
        out_shape=jax.ShapeDtypeStruct((B, ho, n), jnp.float32),
        grid=(B,),
        in_specs=[
            pl.BlockSpec((1, 2, hp2, wpc), lambda b: (b, 0, 0, 0)),
            pl.BlockSpec((k, n), lambda b: (0, 0)),
            pl.BlockSpec((k, n), lambda b: (0, 0)),
            pl.BlockSpec((1, n), lambda b: (0, 0)),
        ],
        out_specs=pl.BlockSpec((1, ho, n), lambda b: (b, 0, 0)),
        compiler_params=pltpu.CompilerParams(
            dimension_semantics=("parallel",)),
    )(x_par, rhs0, rhs1, bias)


def _fc_kernel(x_ref, w_ref, b_ref, o_ref):
    o_ref[...] = (jnp.dot(x_ref[...], w_ref[...],
                          preferred_element_type=jnp.float32)
                  + b_ref[...]).astype(o_ref.dtype)


def fc(x, w, b):
    """x:(B,K) @ w:(K,N) + b:(1,N); N already padded to a lane-dense 128."""
    B, K = x.shape
    _, N = w.shape
    Bp = ((B + 7) // 8) * 8
    if Bp != B:
        x = jnp.pad(x, ((0, Bp - B), (0, 0)))
    tb = Bp if Bp <= 256 else math.gcd(Bp, 256)
    out = pl.pallas_call(
        _fc_kernel,
        out_shape=jax.ShapeDtypeStruct((Bp, N), jnp.float32),
        grid=(Bp // tb,),
        in_specs=[
            pl.BlockSpec((tb, K), lambda m: (m, 0)),
            pl.BlockSpec((K, N), lambda m: (0, 0)),
            pl.BlockSpec((1, N), lambda m: (0, 0)),
        ],
        out_specs=pl.BlockSpec((tb, N), lambda m: (m, 0)),
        compiler_params=pltpu.CompilerParams(
            dimension_semantics=("parallel",)),
    )(x, w, b)
    return out[:B]


# ----------------------- host-side weight preparation -----------------------

def _build_conv_tap_rhs(w_oihw, wp, wo, dj):
    """Banded RHS for column-parity tap dj.

    RHS[kh*Wp*Cin + w*Cin + ci, j*Cout + co] = W[co, ci, kh, w - 2j - dj]
    (zero outside the 5-tap window).  One-time host cost.
    """
    cout, cin, kh_, kw_ = w_oihw.shape
    rhs = np.zeros((kh_, wp, cin, wo, cout), dtype=np.float32)
    w_khkwci_co = np.transpose(w_oihw, (2, 3, 1, 0))   # (KH, KW, Cin, Cout)
    for j in range(wo):
        for kw in range(kw_):
            rhs[:, 2 * j + dj + kw, :, j, :] = w_khkwci_co[:, kw, :, :]
    return jnp.asarray(rhs.reshape(kh_ * wp * cin, wo * cout))


def prepare_params(params):
    """One-time host-side re-layout of the PyTorch-format weights."""
    w1 = np.asarray(params["w1"], np.float32)
    b1 = np.asarray(params["b1"], np.float32)
    w2 = np.asarray(params["w2"], np.float32)
    b2 = np.asarray(params["b2"], np.float32)
    wfc = np.asarray(params["wfc"], np.float32)
    bfc = np.asarray(params["bfc"], np.float32)

    # FC: permute columns from NCHW-flatten (co,i,j) to our (i,j,co) layout
    # and pad N from 10 -> 128 for a lane-dense store.
    wfc_perm = wfc.reshape(10, 32, 7, 7).transpose(0, 2, 3, 1).reshape(10, 1568)
    fc_w = np.zeros((1568, 128), np.float32)
    fc_w[:, :10] = wfc_perm.T
    fc_b = np.zeros((1, 128), np.float32)
    fc_b[0, :10] = bfc

    return {
        "c1_rhs0": _build_conv_tap_rhs(w1, 32, 14, 0),
        "c1_rhs1": _build_conv_tap_rhs(w1, 32, 14, 1),
        "c1_b": jnp.asarray(np.tile(b1, 14).reshape(1, 14 * 16)),
        "c2_rhs0": _build_conv_tap_rhs(w2, 18, 7, 0),
        "c2_rhs1": _build_conv_tap_rhs(w2, 18, 7, 1),
        "c2_b": jnp.asarray(np.tile(b2, 7).reshape(1, 7 * 32)),
        "fc_w": jnp.asarray(fc_w),
        "fc_b": jnp.asarray(fc_b),
    }


# ------------------------------- forward pass -------------------------------

def model_forward(x, prep):
    """x: (B, 1, 28, 28) float32 NCHW -> logits (B, 10)."""
    B = x.shape[0]

    # conv1 input: (B,28,28) -> zero-pad to (B,32,32) -> row-parity split
    x2d = x.reshape(B, 28, 28)
    xp = jnp.pad(x2d, ((0, 0), (2, 2), (2, 2)))                  # (B,32,32)
    xpar = xp.reshape(B, 16, 2, 32).transpose(0, 2, 1, 3)        # (B,2,16,32)
    y1 = conv_relu_pool(xpar, prep["c1_rhs0"], prep["c1_rhs1"],
                        prep["c1_b"], ho=14)                     # (B,14,224)

    # conv2 input: (B,14,14,16) -> pad to (B,18,18,16) -> parity split -> 2D lanes
    y1n = y1.reshape(B, 14, 14, 16)
    y1p = jnp.pad(y1n, ((0, 0), (2, 2), (2, 2), (0, 0)))         # (B,18,18,16)
    y1par = (y1p.reshape(B, 9, 2, 18, 16)
             .transpose(0, 2, 1, 3, 4)
             .reshape(B, 2, 9, 288))                             # (B,2,9,288)
    y2 = conv_relu_pool(y1par, prep["c2_rhs0"], prep["c2_rhs1"],
                        prep["c2_b"], ho=7)                      # (B,7,224)

    flat = y2.reshape(B, 7 * 224)                                # (B,1568)
    logits = fc(flat, prep["fc_w"], prep["fc_b"])                # (B,128)
    return logits[:, :10]


# --------------------------- pure-JAX reference ---------------------------

def _ref_forward(x, params):
    """Reference forward (im2col formulation, matches PyTorch semantics)."""
    def conv2d(x_nchw, w, b):
        B, C, H, W = x_nchw.shape
        cout = w.shape[0]
        k, pad = 5, 2
        xp = jnp.pad(x_nchw, ((0, 0), (0, 0), (pad, pad), (pad, pad)))
        cols = [xp[:, :, kh:kh + H, kw:kw + W]
                for kh in range(k) for kw in range(k)]
        patches = jnp.stack(cols, axis=2).reshape(B, C * k * k, H, W)
        patches = patches.transpose(0, 2, 3, 1).reshape(B * H * W, C * k * k)
        wmat = w.reshape(cout, -1).T
        out = jnp.matmul(patches, wmat, precision="highest") + b
        return out.reshape(B, H, W, cout)

    def pool(y):
        return jnp.maximum(
            jnp.maximum(y[:, 0::2, 0::2, :], y[:, 0::2, 1::2, :]),
            jnp.maximum(y[:, 1::2, 0::2, :], y[:, 1::2, 1::2, :]))

    y = pool(jnp.maximum(conv2d(x, params["w1"], params["b1"]), 0.0))
    y = pool(jnp.maximum(
        conv2d(y.transpose(0, 3, 1, 2), params["w2"], params["b2"]), 0.0))
    flat = y.transpose(0, 3, 1, 2).reshape(y.shape[0], -1)
    return jnp.matmul(flat, params["wfc"].T, precision="highest") + params["bfc"]


def init_params(key):
    k1, k2, k3 = jax.random.split(key, 3)
    return {
        "w1": jax.random.normal(k1, (16, 1, 5, 5), jnp.float32) * 0.1,
        "b1": jnp.zeros((16,), jnp.float32),
        "w2": jax.random.normal(k2, (32, 16, 5, 5), jnp.float32) * 0.05,
        "b2": jnp.zeros((32,), jnp.float32),
        "wfc": jax.random.normal(k3, (10, 32 * 7 * 7), jnp.float32) * 0.02,
        "bfc": jnp.zeros((10,), jnp.float32),
    }


if __name__ == "__main__":
    key = jax.random.PRNGKey(0)
    pkey, xkey = jax.random.split(key)
    params = init_params(pkey)
    prep = prepare_params(params)

    # Spatial size 28x28 is implied by fc1 = Linear(32*7*7, 10) after two 2x pools.
    x = jax.random.normal(xkey, (2, 1, 28, 28), jnp.float32)

    fwd = jax.jit(model_forward)
    logits = fwd(x, prep)
    jax.block_until_ready(logits)
    assert logits.shape == (2, 10)

    ref = _ref_forward(x, params)
    err = float(jnp.max(jnp.abs(logits - ref)))
    assert err < 5e-2, f"max abs err vs reference: {err}"
    print("KERNEL_OK")
</pallas_src>

<mosaic_0001>
module attributes {stable_mosaic.version = 11 : i64} {
  func.func @_conv_pool_kernel(%arg0: i32, %arg1: memref<1x2x16x32xf32, #tpu.memory_space<vmem>>, %arg2: memref<160x224xf32, #tpu.memory_space<vmem>>, %arg3: memref<160x224xf32, #tpu.memory_space<vmem>>, %arg4: memref<1x224xf32, #tpu.memory_space<vmem>>, %arg5: memref<1x14x224xf32, #tpu.memory_space<vmem>>) attributes {dimension_semantics = [#tpu.dimension_semantics<parallel>], iteration_bounds = array<i64: 2>, scalar_prefetch = 0 : i64, scratch_operands = 0 : i64, tpu.core_type = #tpu.core_type<tc>, window_params = [{transform_indices = @transform_0, window_bounds = array<i64: 1, 2, 16, 32>}, {pipeline_mode = #tpu.pipeline_mode<synchronous>, transform_indices = @transform_1, window_bounds = array<i64: 160, 224>}, {pipeline_mode = #tpu.pipeline_mode<synchronous>, transform_indices = @transform_2, window_bounds = array<i64: 160, 224>}, {pipeline_mode = #tpu.pipeline_mode<synchronous>, transform_indices = @transform_3, window_bounds = array<i64: 1, 224>}, {transform_indices = @transform_4, window_bounds = array<i64: 1, 14, 224>}]} {
    %c0 = arith.constant 0 : index
    %c0_0 = arith.constant 0 : index
    %c0_1 = arith.constant 0 : index
    %c0_2 = arith.constant 0 : index
    %0 = vector.load %arg1[%c0, %c0_0, %c0_1, %c0_2] : memref<1x2x16x32xf32, #tpu.memory_space<vmem>>, vector<1x1x14x32xf32>
    %1 = vector.shape_cast %0 : vector<1x1x14x32xf32> to vector<14x32xf32>
    %c0_3 = arith.constant 0 : index
    %c1 = arith.constant 1 : index
    %c0_4 = arith.constant 0 : index
    %c0_5 = arith.constant 0 : index
    %2 = vector.load %arg1[%c0_3, %c1, %c0_4, %c0_5] : memref<1x2x16x32xf32, #tpu.memory_space<vmem>>, vector<1x1x14x32xf32>
    %3 = vector.shape_cast %2 : vector<1x1x14x32xf32> to vector<14x32xf32>
    %c0_6 = arith.constant 0 : index
    %c0_7 = arith.constant 0 : index
    %c1_8 = arith.constant 1 : index
    %c0_9 = arith.constant 0 : index
    %4 = vector.load %arg1[%c0_6, %c0_7, %c1_8, %c0_9] : memref<1x2x16x32xf32, #tpu.memory_space<vmem>>, vector<1x1x14x32xf32>
    %5 = vector.shape_cast %4 : vector<1x1x14x32xf32> to vector<14x32xf32>
    %c0_10 = arith.constant 0 : index
    %c1_11 = arith.constant 1 : index
    %c1_12 = arith.constant 1 : index
    %c0_13 = arith.constant 0 : index
    %6 = vector.load %arg1[%c0_10, %c1_11, %c1_12, %c0_13] : memref<1x2x16x32xf32, #tpu.memory_space<vmem>>, vector<1x1x14x32xf32>
    %7 = vector.shape_cast %6 : vector<1x1x14x32xf32> to vector<14x32xf32>
    %c0_14 = arith.constant 0 : index
    %c0_15 = arith.constant 0 : index
    %c2 = arith.constant 2 : index
    %c0_16 = arith.constant 0 : index
    %8 = vector.load %arg1[%c0_14, %c0_15, %c2, %c0_16] : memref<1x2x16x32xf32, #tpu.memory_space<vmem>>, vector<1x1x14x32xf32>
    %9 = vector.shape_cast %8 : vector<1x1x14x32xf32> to vector<14x32xf32>
    %10 = tpu.concatenate %1, %3, %5, %7, %9 in 1 : vector<14x32xf32>, vector<14x32xf32>, vector<14x32xf32>, vector<14x32xf32>, vector<14x32xf32> -> vector<14x160xf32>
    %c0_17 = arith.constant 0 : index
    %c1_18 = arith.constant 1 : index
    %c0_19 = arith.constant 0 : index
    %c0_20 = arith.constant 0 : index
    %11 = vector.load %arg1[%c0_17, %c1_18, %c0_19, %c0_20] : memref<1x2x16x32xf32, #tpu.memory_space<vmem>>, vector<1x1x14x32xf32>
    %12 = vector.shape_cast %11 : vector<1x1x14x32xf32> to vector<14x32xf32>
    %c0_21 = arith.constant 0 : index
    %c0_22 = arith.constant 0 : index
    %c1_23 = arith.constant 1 : index
    %c0_24 = arith.constant 0 : index
    %13 = vector.load %arg1[%c0_21, %c0_22, %c1_23, %c0_24] : memref<1x2x16x32xf32, #tpu.memory_space<vmem>>, vector<1x1x14x32xf32>
    %14 = vector.shape_cast %13 : vector<1x1x14x32xf32> to vector<14x32xf32>
    %c0_25 = arith.constant 0 : index
    %c1_26 = arith.constant 1 : index
    %c1_27 = arith.constant 1 : index
    %c0_28 = arith.constant 0 : index
    %15 = vector.load %arg1[%c0_25, %c1_26, %c1_27, %c0_28] : memref<1x2x16x32xf32, #tpu.memory_space<vmem>>, vector<1x1x14x32xf32>
    %16 = vector.shape_cast %15 : vector<1x1x14x32xf32> to vector<14x32xf32>
    %c0_29 = arith.constant 0 : index
    %c0_30 = arith.constant 0 : index
    %c2_31 = arith.constant 2 : index
    %c0_32 = arith.constant 0 : index
    %17 = vector.load %arg1[%c0_29, %c0_30, %c2_31, %c0_32] : memref<1x2x16x32xf32, #tpu.memory_space<vmem>>, vector<1x1x14x32xf32>
    %18 = vector.shape_cast %17 : vector<1x1x14x32xf32> to vector<14x32xf32>
    %c0_33 = arith.constant 0 : index
    %c1_34 = arith.constant 1 : index
    %c2_35 = arith.constant 2 : index
    %c0_36 = arith.constant 0 : index
    %19 = vector.load %arg1[%c0_33, %c1_34, %c2_35, %c0_36] : memref<1x2x16x32xf32, #tpu.memory_space<vmem>>, vector<1x1x14x32xf32>
    %20 = vector.shape_cast %19 : vector<1x1x14x32xf32> to vector<14x32xf32>
    %21 = tpu.concatenate %12, %14, %16, %18, %20 in 1 : vector<14x32xf32>, vector<14x32xf32>, vector<14x32xf32>, vector<14x32xf32>, vector<14x32xf32> -> vector<14x160xf32>
    %c0_37 = arith.constant 0 : index
    %c0_38 = arith.constant 0 : index
    %22 = vector.load %arg2[%c0_37, %c0_38] : memref<160x224xf32, #tpu.memory_space<vmem>>, vector<160x224xf32>
    %c0_39 = arith.constant 0 : index
    %c0_40 = arith.constant 0 : index
    %23 = vector.load %arg3[%c0_39, %c0_40] : memref<160x224xf32, #tpu.memory_space<vmem>>, vector<160x224xf32>
    %cst = arith.constant dense<0.000000e+00> : vector<14x224xf32>
    %24 = tpu.matmul %10, %22, %cst {dimension_numbers = #tpu.dot_dimension_numbers<[1], [0], [0], [1], [0, 0, 1, 1], [], []>} : vector<14x160xf32>, vector<160x224xf32>, vector<14x224xf32> -> vector<14x224xf32>
    %cst_41 = arith.constant dense<0.000000e+00> : vector<14x224xf32>
    %25 = tpu.matmul %10, %23, %cst_41 {dimension_numbers = #tpu.dot_dimension_numbers<[1], [0], [0], [1], [0, 0, 1, 1], [], []>} : vector<14x160xf32>, vector<160x224xf32>, vector<14x224xf32> -> vector<14x224xf32>
    %26 = arith.maximumf %24, %25 : vector<14x224xf32>
    %cst_42 = arith.constant dense<0.000000e+00> : vector<14x224xf32>
    %27 = tpu.matmul %21, %22, %cst_42 {dimension_numbers = #tpu.dot_dimension_numbers<[1], [0], [0], [1], [0, 0, 1, 1], [], []>} : vector<14x160xf32>, vector<160x224xf32>, vector<14x224xf32> -> vector<14x224xf32>
    %cst_43 = arith.constant dense<0.000000e+00> : vector<14x224xf32>
    %28 = tpu.matmul %21, %23, %cst_43 {dimension_numbers = #tpu.dot_dimension_numbers<[1], [0], [0], [1], [0, 0, 1, 1], [], []>} : vector<14x160xf32>, vector<160x224xf32>, vector<14x224xf32> -> vector<14x224xf32>
    %29 = arith.maximumf %27, %28 : vector<14x224xf32>
    %30 = arith.maximumf %26, %29 : vector<14x224xf32>
    %c0_44 = arith.constant 0 : index
    %c0_45 = arith.constant 0 : index
    %31 = vector.load %arg4[%c0_44, %c0_45] : memref<1x224xf32, #tpu.memory_space<vmem>>, vector<1x224xf32>
    %32 = vector.broadcast %31 : vector<1x224xf32> to vector<14x224xf32>
    %33 = arith.addf %30, %32 : vector<14x224xf32>
    %cst_46 = arith.constant 0.000000e+00 : f32
    %34 = vector.broadcast %cst_46 : f32 to vector<14x224xf32>
    %35 = arith.maximumf %33, %34 : vector<14x224xf32>
    %c0_47 = arith.constant 0 : index
    %c0_48 = arith.constant 0 : index
    %c0_49 = arith.constant 0 : index
    %36 = vector.load %arg5[%c0_47, %c0_48, %c0_49] : memref<1x14x224xf32, #tpu.memory_space<vmem>>, vector<1x14x224xf32>
    %37 = vector.shape_cast %36 : vector<1x14x224xf32> to vector<14x224xf32>
    %38 = vector.shape_cast %35 : vector<14x224xf32> to vector<1x14x224xf32>
    tpu.vector_store %arg5[%c0_47, %c0_48, %c0_49], %38 {strides = array<i32>} : memref<1x14x224xf32, #tpu.memory_space<vmem>>, vector<1x14x224xf32>,
    return
  }
  func.func @transform_0(%arg0: i32) -> (i32, i32, i32, i32) {
    %c0_i32 = arith.constant 0 : i32
    %c0_i32_0 = arith.constant 0 : i32
    %c0_i32_1 = arith.constant 0 : i32
    %c0_i32_2 = arith.constant 0 : i32
    return %arg0, %c0_i32, %c0_i32_0, %c0_i32_1 : i32, i32, i32, i32
  }
  func.func @transform_1(%arg0: i32) -> (i32, i32) {
    %c0_i32 = arith.constant 0 : i32
    %c0_i32_0 = arith.constant 0 : i32
    %c0_i32_1 = arith.constant 0 : i32
    return %c0_i32, %c0_i32_0 : i32, i32
  }
  func.func @transform_2(%arg0: i32) -> (i32, i32) {
    %c0_i32 = arith.constant 0 : i32
    %c0_i32_0 = arith.constant 0 : i32
    %c0_i32_1 = arith.constant 0 : i32
    return %c0_i32, %c0_i32_0 : i32, i32
  }
  func.func @transform_3(%arg0: i32) -> (i32, i32) {
    %c0_i32 = arith.constant 0 : i32
    %c0_i32_0 = arith.constant 0 : i32
    %c0_i32_1 = arith.constant 0 : i32
    return %c0_i32, %c0_i32_0 : i32, i32
  }
  func.func @transform_4(%arg0: i32) -> (i32, i32, i32) {
    %c0_i32 = arith.constant 0 : i32
    %c0_i32_0 = arith.constant 0 : i32
    %c0_i32_1 = arith.constant 0 : i32
    return %arg0, %c0_i32, %c0_i32_0 : i32, i32, i32
  }
}

module attributes {stable_mosaic.version = 11 : i64} {
  func.func @_conv_pool_kernel(%arg0: i32, %arg1: memref<1x2x9x288xf32, #tpu.memory_space<vmem>>, %arg2: memref<1440x224xf32, #tpu.memory_space<vmem>>, %arg3: memref<1440x224xf32, #tpu.memory_space<vmem>>, %arg4: memref<1x224xf32, #tpu.memory_space<vmem>>, %arg5: memref<1x7x224xf32, #tpu.memory_space<vmem>>) attributes {dimension_semantics = [#tpu.dimension_semantics<parallel>], iteration_bounds = array<i64: 2>, scalar_prefetch = 0 : i64, scratch_operands = 0 : i64, tpu.core_type = #tpu.core_type<tc>, window_params = [{transform_indices = @transform_0, window_bounds = array<i64: 1, 2, 9, 288>}, {pipeline_mode = #tpu.pipeline_mode<synchronous>, transform_indices = @transform_1, window_bounds = array<i64: 1440, 224>}, {pipeline_mode = #tpu.pipeline_mode<synchronous>, transform_indices = @transform_2, window_bounds = array<i64: 1440, 224>}, {pipeline_mode = #tpu.pipeline_mode<synchronous>, transform_indices = @transform_3, window_bounds = array<i64: 1, 224>}, {transform_indices = @transform_4, window_bounds = array<i64: 1, 7, 224>}]} {
    %c0 = arith.constant 0 : index
    %c0_0 = arith.constant 0 : index
    %c0_1 = arith.constant 0 : index
    %c0_2 = arith.constant 0 : index
    %0 = vector.load %arg1[%c0, %c0_0, %c0_1, %c0_2] : memref<1x2x9x288xf32, #tpu.memory_space<vmem>>, vector<1x1x7x288xf32>
    %1 = vector.shape_cast %0 : vector<1x1x7x288xf32> to vector<7x288xf32>
    %c0_3 = arith.constant 0 : index
    %c1 = arith.constant 1 : index
    %c0_4 = arith.constant 0 : index
    %c0_5 = arith.constant 0 : index
    %2 = vector.load %arg1[%c0_3, %c1, %c0_4, %c0_5] : memref<1x2x9x288xf32, #tpu.memory_space<vmem>>, vector<1x1x7x288xf32>
    %3 = vector.shape_cast %2 : vector<1x1x7x288xf32> to vector<7x288xf32>
    %c0_6 = arith.constant 0 : index
    %c0_7 = arith.constant 0 : index
    %c1_8 = arith.constant 1 : index
    %c0_9 = arith.constant 0 : index
    %4 = vector.load %arg1[%c0_6, %c0_7, %c1_8, %c0_9] : memref<1x2x9x288xf32, #tpu.memory_space<vmem>>, vector<1x1x7x288xf32>
    %5 = vector.shape_cast %4 : vector<1x1x7x288xf32> to vector<7x288xf32>
    %c0_10 = arith.constant 0 : index
    %c1_11 = arith.constant 1 : index
    %c1_12 = arith.constant 1 : index
    %c0_13 = arith.constant 0 : index
    %6 = vector.load %arg1[%c0_10, %c1_11, %c1_12, %c0_13] : memref<1x2x9x288xf32, #tpu.memory_space<vmem>>, vector<1x1x7x288xf32>
    %7 = vector.shape_cast %6 : vector<1x1x7x288xf32> to vector<7x288xf32>
    %c0_14 = arith.constant 0 : index
    %c0_15 = arith.constant 0 : index
    %c2 = arith.constant 2 : index
    %c0_16 = arith.constant 0 : index
    %8 = vector.load %arg1[%c0_14, %c0_15, %c2, %c0_16] : memref<1x2x9x288xf32, #tpu.memory_space<vmem>>, vector<1x1x7x288xf32>
    %9 = vector.shape_cast %8 : vector<1x1x7x288xf32> to vector<7x288xf32>
    %10 = tpu.concatenate %1, %3, %5, %7, %9 in 1 : vector<7x288xf32>, vector<7x288xf32>, vector<7x288xf32>, vector<7x288xf32>, vector<7x288xf32> -> vector<7x1440xf32>
    %c0_17 = arith.constant 0 : index
    %c1_18 = arith.constant 1 : index
    %c0_19 = arith.constant 0 : index
    %c0_20 = arith.constant 0 : index
    %11 = vector.load %arg1[%c0_17, %c1_18, %c0_19, %c0_20] : memref<1x2x9x288xf32, #tpu.memory_space<vmem>>, vector<1x1x7x288xf32>
    %12 = vector.shape_cast %11 : vector<1x1x7x288xf32> to vector<7x288xf32>
    %c0_21 = arith.constant 0 : index
    %c0_22 = arith.constant 0 : index
    %c1_23 = arith.constant 1 : index
    %c0_24 = arith.constant 0 : index
    %13 = vector.load %arg1[%c0_21, %c0_22, %c1_23, %c0_24] : memref<1x2x9x288xf32, #tpu.memory_space<vmem>>, vector<1x1x7x288xf32>
    %14 = vector.shape_cast %13 : vector<1x1x7x288xf32> to vector<7x288xf32>
    %c0_25 = arith.constant 0 : index
    %c1_26 = arith.constant 1 : index
    %c1_27 = arith.constant 1 : index
    %c0_28 = arith.constant 0 : index
    %15 = vector.load %arg1[%c0_25, %c1_26, %c1_27, %c0_28] : memref<1x2x9x288xf32, #tpu.memory_space<vmem>>, vector<1x1x7x288xf32>
    %16 = vector.shape_cast %15 : vector<1x1x7x288xf32> to vector<7x288xf32>
    %c0_29 = arith.constant 0 : index
    %c0_30 = arith.constant 0 : index
    %c2_31 = arith.constant 2 : index
    %c0_32 = arith.constant 0 : index
    %17 = vector.load %arg1[%c0_29, %c0_30, %c2_31, %c0_32] : memref<1x2x9x288xf32, #tpu.memory_space<vmem>>, vector<1x1x7x288xf32>
    %18 = vector.shape_cast %17 : vector<1x1x7x288xf32> to vector<7x288xf32>
    %c0_33 = arith.constant 0 : index
    %c1_34 = arith.constant 1 : index
    %c2_35 = arith.constant 2 : index
    %c0_36 = arith.constant 0 : index
    %19 = vector.load %arg1[%c0_33, %c1_34, %c2_35, %c0_36] : memref<1x2x9x288xf32, #tpu.memory_space<vmem>>, vector<1x1x7x288xf32>
    %20 = vector.shape_cast %19 : vector<1x1x7x288xf32> to vector<7x288xf32>
    %21 = tpu.concatenate %12, %14, %16, %18, %20 in 1 : vector<7x288xf32>, vector<7x288xf32>, vector<7x288xf32>, vector<7x288xf32>, vector<7x288xf32> -> vector<7x1440xf32>
    %c0_37 = arith.constant 0 : index
    %c0_38 = arith.constant 0 : index
    %22 = vector.load %arg2[%c0_37, %c0_38] : memref<1440x224xf32, #tpu.memory_space<vmem>>, vector<1440x224xf32>
    %c0_39 = arith.constant 0 : index
    %c0_40 = arith.constant 0 : index
    %23 = vector.load %arg3[%c0_39, %c0_40] : memref<1440x224xf32, #tpu.memory_space<vmem>>, vector<1440x224xf32>
    %cst = arith.constant dense<0.000000e+00> : vector<7x224xf32>
    %24 = tpu.matmul %10, %22, %cst {dimension_numbers = #tpu.dot_dimension_numbers<[1], [0], [0], [1], [0, 0, 1, 1], [], []>} : vector<7x1440xf32>, vector<1440x224xf32>, vector<7x224xf32> -> vector<7x224xf32>
    %cst_41 = arith.constant dense<0.000000e+00> : vector<7x224xf32>
    %25 = tpu.matmul %10, %23, %cst_41 {dimension_numbers = #tpu.dot_dimension_numbers<[1], [0], [0], [1], [0, 0, 1, 1], [], []>} : vector<7x1440xf32>, vector<1440x224xf32>, vector<7x224xf32> -> vector<7x224xf32>
    %26 = arith.maximumf %24, %25 : vector<7x224xf32>
    %cst_42 = arith.constant dense<0.000000e+00> : vector<7x224xf32>
    %27 = tpu.matmul %21, %22, %cst_42 {dimension_numbers = #tpu.dot_dimension_numbers<[1], [0], [0], [1], [0, 0, 1, 1], [], []>} : vector<7x1440xf32>, vector<1440x224xf32>, vector<7x224xf32> -> vector<7x224xf32>
    %cst_43 = arith.constant dense<0.000000e+00> : vector<7x224xf32>
    %28 = tpu.matmul %21, %23, %cst_43 {dimension_numbers = #tpu.dot_dimension_numbers<[1], [0], [0], [1], [0, 0, 1, 1], [], []>} : vector<7x1440xf32>, vector<1440x224xf32>, vector<7x224xf32> -> vector<7x224xf32>
    %29 = arith.maximumf %27, %28 : vector<7x224xf32>
    %30 = arith.maximumf %26, %29 : vector<7x224xf32>
    %c0_44 = arith.constant 0 : index
    %c0_45 = arith.constant 0 : index
    %31 = vector.load %arg4[%c0_44, %c0_45] : memref<1x224xf32, #tpu.memory_space<vmem>>, vector<1x224xf32>
    %32 = vector.broadcast %31 : vector<1x224xf32> to vector<7x224xf32>
    %33 = arith.addf %30, %32 : vector<7x224xf32>
    %cst_46 = arith.constant 0.000000e+00 : f32
    %34 = vector.broadcast %cst_46 : f32 to vector<7x224xf32>
    %35 = arith.maximumf %33, %34 : vector<7x224xf32>
    %c0_47 = arith.constant 0 : index
    %c0_48 = arith.constant 0 : index
    %c0_49 = arith.constant 0 : index
    %36 = vector.load %arg5[%c0_47, %c0_48, %c0_49] : memref<1x7x224xf32, #tpu.memory_space<vmem>>, vector<1x7x224xf32>
    %37 = vector.shape_cast %36 : vector<1x7x224xf32> to vector<7x224xf32>
    %38 = vector.shape_cast %35 : vector<7x224xf32> to vector<1x7x224xf32>
    tpu.vector_store %arg5[%c0_47, %c0_48, %c0_49], %38 {strides = array<i32>} : memref<1x7x224xf32, #tpu.memory_space<vmem>>, vector<1x7x224xf32>,
    return
  }
  func.func @transform_0(%arg0: i32) -> (i32, i32, i32, i32) {
    %c0_i32 = arith.constant 0 : i32
    %c0_i32_0 = arith.constant 0 : i32
    %c0_i32_1 = arith.constant 0 : i32
    %c0_i32_2 = arith.constant 0 : i32
    return %arg0, %c0_i32, %c0_i32_0, %c0_i32_1 : i32, i32, i32, i32
  }
  func.func @transform_1(%arg0: i32) -> (i32, i32) {
    %c0_i32 = arith.constant 0 : i32
    %c0_i32_0 = arith.constant 0 : i32
    %c0_i32_1 = arith.constant 0 : i32
    return %c0_i32, %c0_i32_0 : i32, i32
  }
  func.func @transform_2(%arg0: i32) -> (i32, i32) {
    %c0_i32 = arith.constant 0 : i32
    %c0_i32_0 = arith.constant 0 : i32
    %c0_i32_1 = arith.constant 0 : i32
    return %c0_i32, %c0_i32_0 : i32, i32
  }
  func.func @transform_3(%arg0: i32) -> (i32, i32) {
    %c0_i32 = arith.constant 0 : i32
    %c0_i32_0 = arith.constant 0 : i32
    %c0_i32_1 = arith.constant 0 : i32
    return %c0_i32, %c0_i32_0 : i32, i32
  }
  func.func @transform_4(%arg0: i32) -> (i32, i32, i32) {
    %c0_i32 = arith.constant 0 : i32
    %c0_i32_0 = arith.constant 0 : i32
    %c0_i32_1 = arith.constant 0 : i32
    return %arg0, %c0_i32, %c0_i32_0 : i32, i32, i32
  }
}

module attributes {stable_mosaic.version = 11 : i64} {
  func.func @_fc_kernel(%arg0: i32, %arg1: memref<8x1568xf32, #tpu.memory_space<vmem>>, %arg2: memref<1568x128xf32, #tpu.memory_space<vmem>>, %arg3: memref<1x128xf32, #tpu.memory_space<vmem>>, %arg4: memref<8x128xf32, #tpu.memory_space<vmem>>) attributes {dimension_semantics = [#tpu.dimension_semantics<parallel>], iteration_bounds = array<i64: 1>, scalar_prefetch = 0 : i64, scratch_operands = 0 : i64, tpu.core_type = #tpu.core_type<tc>, window_params = [{transform_indices = @transform_0, window_bounds = array<i64: 8, 1568>}, {pipeline_mode = #tpu.pipeline_mode<synchronous>, transform_indices = @transform_1, window_bounds = array<i64: 1568, 128>}, {pipeline_mode = #tpu.pipeline_mode<synchronous>, transform_indices = @transform_2, window_bounds = array<i64: 1, 128>}, {transform_indices = @transform_3, window_bounds = array<i64: 8, 128>}]} {
    %c0 = arith.constant 0 : index
    %c0_0 = arith.constant 0 : index
    %0 = vector.load %arg1[%c0, %c0_0] : memref<8x1568xf32, #tpu.memory_space<vmem>>, vector<8x1568xf32>
    %c0_1 = arith.constant 0 : index
    %c0_2 = arith.constant 0 : index
    %1 = vector.load %arg2[%c0_1, %c0_2] : memref<1568x128xf32, #tpu.memory_space<vmem>>, vector<1568x128xf32>
    %cst = arith.constant dense<0.000000e+00> : vector<8x128xf32>
    %2 = tpu.matmul %0, %1, %cst {dimension_numbers = #tpu.dot_dimension_numbers<[1], [0], [0], [1], [0, 0, 1, 1], [], []>} : vector<8x1568xf32>, vector<1568x128xf32>, vector<8x128xf32> -> vector<8x128xf32>
    %c0_3 = arith.constant 0 : index
    %c0_4 = arith.constant 0 : index
    %3 = vector.load %arg3[%c0_3, %c0_4] : memref<1x128xf32, #tpu.memory_space<vmem>>, vector<1x128xf32>
    %4 = vector.broadcast %3 : vector<1x128xf32> to vector<8x128xf32>
    %5 = arith.addf %2, %4 : vector<8x128xf32>
    %c0_5 = arith.constant 0 : index
    %c0_6 = arith.constant 0 : index
    %6 = vector.load %arg4[%c0_5, %c0_6] : memref<8x128xf32, #tpu.memory_space<vmem>>, vector<8x128xf32>
    tpu.vector_store %arg4[%c0_5, %c0_6], %5 {strides = array<i32>} : memref<8x128xf32, #tpu.memory_space<vmem>>, vector<8x128xf32>,
    return
  }
  func.func @transform_0(%arg0: i32) -> (i32, i32) {
    %c0_i32 = arith.constant 0 : i32
    %c0_i32_0 = arith.constant 0 : i32
    return %arg0, %c0_i32 : i32, i32
  }
  func.func @transform_1(%arg0: i32) -> (i32, i32) {
    %c0_i32 = arith.constant 0 : i32
    %c0_i32_0 = arith.constant 0 : i32
    %c0_i32_1 = arith.constant 0 : i32
    return %c0_i32, %c0_i32_0 : i32, i32
  }
  func.func @transform_2(%arg0: i32) -> (i32, i32) {
    %c0_i32 = arith.constant 0 : i32
    %c0_i32_0 = arith.constant 0 : i32
    %c0_i32_1 = arith.constant 0 : i32
    return %c0_i32, %c0_i32_0 : i32, i32
  }
  func.func @transform_3(%arg0: i32) -> (i32, i32) {
    %c0_i32 = arith.constant 0 : i32
    %c0_i32_0 = arith.constant 0 : i32
    return %arg0, %c0_i32 : i32, i32
  }
}

</mosaic_0001>

<llo_original>
// kernel: model_forward.3
$region0: #{model_forward.3}
  #allocation0 [shape = 'u32[]', space=smem, size = 0x4, offset = 0x4, fixed_abs, tag = 'smem constant byte address 0x4 - core index']
  #allocation1 [shape = 'u32[72,128]{1,0:T(1,128)}', space=vmem, size = 0x9000, scoped, tag = 'internal scratch']
  %s0 = inlined_call_operand.vmem [shape: f32[2,2,16,32], index: 0, kind: input, shape index: {}]
  %s1 = inlined_call_operand.hbm [shape: f32[160,224], index: 1, kind: input, shape index: {}]
  %s2 = inlined_call_operand.hbm [shape: f32[160,224], index: 2, kind: input, shape index: {}]
  %s3 = inlined_call_operand.hbm [shape: f32[1,224], index: 3, kind: input, shape index: {}]
  %s4 = inlined_call_operand.vmem [shape: f32[2,14,224], index: 4, kind: output, shape index: {}]
  %s5 = sld [smem:[#allocation0]]
  $region61: #{model_forward.3} parent=0
    _
  %s7 = ssub.s32 1, %s5
  %s8 = scalar_select 0, %s7, %s5
  $region1: #{model_forward.3} parent=0
    #allocation2 [shape = 'u8[163840]{0}', space=vmem, size = 0x28000, scoped, tag = 'input window, operand 1, single buffered']
    #allocation3 [shape = 's32[2]{0}', space=sflag, size = 0x8, scoped, tag = 'scoped memory for model_forward.3']
    #allocation4 [shape = 'u8[163840]{0}', space=vmem, size = 0x28000, scoped, tag = 'input window, operand 2, single buffered']
    #allocation5 [shape = 's32[1]{0}', space=sflag, size = 0x4, scoped, tag = 'scoped memory for model_forward.3']
    #allocation6 [shape = 'u8[1024]{0}', space=vmem, size = 0x400, scoped, tag = 'input window, operand 3, single buffered']
    %9 = vsyncpa [#allocation3], 0
    %10 = vsyncpa [#allocation5], 0
    loop: start=0, step=1, limit=4
    $region2: #{model_forward.3} parent=1 // loop_pre_header
      _
    $region3: #{model_forward.3} parent=1 // loop_header
      %s12 = sphi 0, %s16
      %p13 = scmp.ge.s32.totalorder %s12, 4
      %s22 = sphi 0, %s24
      %s25 = sphi 0, %s22
      %s26 = sphi 0, %s25
      %s42 = sphi 0, %s26
      %s46 = sphi 0, %s46
      %s48 = sphi 0, %s46
      %s49 = sphi 0, %s48
      %s63 = sphi 0, %s49
      %s67 = sphi 0, %s67
      %s69 = sphi 0, %s67
      %s70 = sphi 0, %s69
      %s84 = sphi 0, %s70
      %s88 = sphi 0, %s88
      %s90 = sphi 0, %s88
      %s91 = sphi 0, %s90
      %s105 = sphi 0, %s91
      %s111 = sphi 0, %s113
      %s114 = sphi 0, %s111
      %s115 = sphi 0, %s114
      %s131 = sphi 0, %s115
    $region4: #{model_forward.3} parent=1 // loop_header_branch
      %15 = sbr.rel (%p13) target = $region8
    $region5: #{model_forward.3} parent=1 // loop_body
      %s17 = ssub.s32 %s12, 1
      %s18 = ssub.s32 %s12, 2
      %s19 = sadd.s32 %s12, 1
      %s20 = ssub.s32 %s12, %s19
      %p21 = scmp.eq.s32.totalorder %s20, 0
      %s23 = sadd.s32 %s22, 1
      %s24 = scalar_select %p21, %s22, %s23
      %p27 = pneg %p21
      %p28 = scmp.eq.s32.totalorder %s12, 1
      %p29 = por %p27, %p28
      %p30 = scmp.ne.s32.totalorder %s22, %s25
      %p31 = scmp.eq.s32.totalorder %s12, 0
      %p32 = por %p30, %p31
      %p33 = scmp.ne.s32.totalorder %s22, %s25
      %p34 = scmp.eq.s32.totalorder %s17, 1
      %p35 = por %p33, %p34
      %p36 = scmp.ne.s32.totalorder %s25, %s26
      %p37 = scmp.eq.s32.totalorder %s17, 0
      %p38 = por %p36, %p37
      %p39 = scmp.ne.s32.totalorder %s25, %s26
      %p40 = scmp.eq.s32.totalorder %s18, 1
      %p41 = por %p39, %p40
      %p43 = scmp.ne.s32.totalorder %s26, %s42
      %p44 = scmp.eq.s32.totalorder %s18, 0
      %p45 = por %p43, %p44
      %s47 = sadd.s32 %s46, 1
      %p50 = scmp.eq.s32.totalorder %s12, 1
      %p51 = scmp.ne.s32.totalorder %s46, %s48
      %p52 = scmp.eq.s32.totalorder %s12, 0
      %p53 = por %p51, %p52
      %p54 = scmp.ne.s32.totalorder %s46, %s48
      %p55 = scmp.eq.s32.totalorder %s17, 1
      %p56 = por %p54, %p55
      %p57 = scmp.ne.s32.totalorder %s48, %s49
      %p58 = scmp.eq.s32.totalorder %s17, 0
      %p59 = por %p57, %p58
      %p60 = scmp.ne.s32.totalorder %s48, %s49
      %p61 = scmp.eq.s32.totalorder %s18, 1
      %p62 = por %p60, %p61
      %p64 = scmp.ne.s32.totalorder %s49, %s63
      %p65 = scmp.eq.s32.totalorder %s18, 0
      %p66 = por %p64, %p65
      %s68 = sadd.s32 %s67, 1
      %p71 = scmp.eq.s32.totalorder %s12, 1
      %p72 = scmp.ne.s32.totalorder %s67, %s69
      %p73 = scmp.eq.s32.totalorder %s12, 0
      %p74 = por %p72, %p73
      %p75 = scmp.ne.s32.totalorder %s67, %s69
      %p76 = scmp.eq.s32.totalorder %s17, 1
      %p77 = por %p75, %p76
      %p78 = scmp.ne.s32.totalorder %s69, %s70
      %p79 = scmp.eq.s32.totalorder %s17, 0
      %p80 = por %p78, %p79
      %p81 = scmp.ne.s32.totalorder %s69, %s70
      %p82 = scmp.eq.s32.totalorder %s18, 1
      %p83 = por %p81, %p82
      %p85 = scmp.ne.s32.totalorder %s70, %s84
      %p86 = scmp.eq.s32.totalorder %s18, 0
      %p87 = por %p85, %p86
      %s89 = sadd.s32 %s88, 1
      %p92 = scmp.eq.s32.totalorder %s12, 1
      %p93 = scmp.ne.s32.totalorder %s88, %s90
      %p94 = scmp.eq.s32.totalorder %s12, 0
      %p95 = por %p93, %p94
      %p96 = scmp.ne.s32.totalorder %s88, %s90
      %p97 = scmp.eq.s32.totalorder %s17, 1
      %p98 = por %p96, %p97
      %p99 = scmp.ne.s32.totalorder %s90, %s91
      %p100 = scmp.eq.s32.totalorder %s17, 0
      %p101 = por %p99, %p100
      %p102 = scmp.ne.s32.totalorder %s90, %s91
      %p103 = scmp.eq.s32.totalorder %s18, 1
      %p104 = por %p102, %p103
      %p106 = scmp.ne.s32.totalorder %s91, %s105
      %p107 = scmp.eq.s32.totalorder %s18, 0
      %p108 = por %p106, %p107
      %s109 = ssub.s32 %s12, %s19
      %p110 = scmp.eq.s32.totalorder %s109, 0
      %s112 = sadd.s32 %s111, 1
      %s113 = scalar_select %p110, %s111, %s112
      %p116 = pneg %p110
      %p117 = scmp.eq.s32.totalorder %s12, 1
      %p118 = por %p116, %p117
      %p119 = scmp.ne.s32.totalorder %s111, %s114
      %p120 = scmp.eq.s32.totalorder %s12, 0
      %p121 = por %p119, %p120
      %p122 = scmp.ne.s32.totalorder %s111, %s114
      %p123 = scmp.eq.s32.totalorder %s17, 1
      %p124 = por %p122, %p123
      %p125 = scmp.ne.s32.totalorder %s114, %s115
      %p126 = scmp.eq.s32.totalorder %s17, 0
      %p127 = por %p125, %p126
      %p128 = scmp.ne.s32.totalorder %s114, %s115
      %p129 = scmp.eq.s32.totalorder %s18, 1
      %p130 = por %p128, %p129
      %p132 = scmp.ne.s32.totalorder %s115, %s131
      %p133 = scmp.eq.s32.totalorder %s18, 0
      %p134 = por %p132, %p133
      %p135 = scmp.le.s32.totalorder 1, %s12
      %p136 = scmp.lt.s32.totalorder %s12, 3
      %p137 = pnand %p135, %p136
      %p138 = pneg %p137
      // Predicated region
      $region9: #{model_forward.3} parent=5 // pred_check
        _
      $region10: #{model_forward.3} parent=5 // pred_check_branch
        %140 = sbr.rel (%p137) target = $region12
      $region11: #{model_forward.3} parent=5 // pred_region
        %s141 = ssub.s32 %s12, 1
        // Predicated region
        $region13: #{model_forward.3} parent=11 // pred_check
          %p142 = pneg %p59
        $region14: #{model_forward.3} parent=11 // pred_check_branch
          %144 = sbr.rel (%p142) target = $region16
        $region15: #{model_forward.3} parent=11 // pred_region
          %146 = vsyncadd [#allocation3], 0
          %s147 = sshll.u32 %s1, 4
          %s148 = int_to_ptr.hbm [resolvable:$true] %s147
          %s149 = sshll.u32 [#allocation2], 4
          %s150 = int_to_ptr.vmem [resolvable:$true] %s149
          %155 = dma.hbm_to_vmem [thread:$0]  %s148, 5120, %s150, [#allocation3], 256, 256, 16
        $region16: #{model_forward.3} parent=11 // pred_fallthru
          _
        // Predicated region
        $region17: #{model_forward.3} parent=11 // pred_check
          %p156 = pneg %p80
        $region18: #{model_forward.3} parent=11 // pred_check_branch
          %158 = sbr.rel (%p156) target = $region20
        $region19: #{model_forward.3} parent=11 // pred_region
          %160 = vsyncadd [#allocation5], 0
          %s161 = sshll.u32 %s2, 4
          %s162 = int_to_ptr.hbm [resolvable:$true] %s161
          %s163 = sshll.u32 [#allocation4], 4
          %s164 = int_to_ptr.vmem [resolvable:$true] %s163
          %169 = dma.hbm_to_vmem [thread:$0]  %s162, 5120, %s164, [#allocation5], 256, 256, 16
        $region20: #{model_forward.3} parent=11 // pred_fallthru
          _
        // Predicated region
        $region21: #{model_forward.3} parent=11 // pred_check
          %p170 = pneg %p101
        $region22: #{model_forward.3} parent=11 // pred_check_branch
          %172 = sbr.rel (%p170) target = $region24
        $region23: #{model_forward.3} parent=11 // pred_region
          %174 = vsyncadd [#allocation5], 0
          %s176 = sshll.u32 %s3, 4
          %s177 = int_to_ptr.hbm [resolvable:$true] %s176
          %s178 = sshll.u32 [#allocation6], 4
          %s179 = int_to_ptr.vmem [resolvable:$true] %s178
          %181 = dma.hbm_to_vmem [thread:$0]  %s177, 32, %s179, [#allocation5]
        $region24: #{model_forward.3} parent=11 // pred_fallthru
          _
      $region12: #{model_forward.3} parent=5 // pred_fallthru
        _
      %p182 = scmp.lt.s32.totalorder %s12, 2
      // Predicated region
      $region25: #{model_forward.3} parent=5 // pred_check
        %p183 = pneg %p182
      $region26: #{model_forward.3} parent=5 // pred_check_branch
        %185 = sbr.rel (%p183) target = $region28
      $region27: #{model_forward.3} parent=5 // pred_region
        // Predicated region
        $region29: #{model_forward.3} parent=27 // pred_check
          %p186 = pneg %p32
        $region30: #{model_forward.3} parent=27 // pred_check_branch
          %188 = sbr.rel (%p186) target = $region32
        $region31: #{model_forward.3} parent=27 // pred_region
          %p189 = scmp.lt.s32.totalorder %s12, 1
          %s190 = scalar_select %p189, %s12, 1
          %s191 = smul.addr %s190, 4
          %s192 = smul.addr %s191, 8
          %s193 = scalar_lea.vmem %s0, %s192
        $region32: #{model_forward.3} parent=27 // pred_fallthru
          _
      $region28: #{model_forward.3} parent=5 // pred_fallthru
        _
      %p194 = scmp.le.s32.totalorder 1, %s12
      %p195 = scmp.lt.s32.totalorder %s12, 3
      %p196 = pnand %p194, %p195
      %p197 = pneg %p196
      // Predicated region
      $region33: #{model_forward.3} parent=5 // pred_check
        _
      $region34: #{model_forward.3} parent=5 // pred_check_branch
        %199 = sbr.rel (%p196) target = $region36
      $region35: #{model_forward.3} parent=5 // pred_region
        %s200 = ssub.s32 %s12, 1
        // Predicated region
        $region37: #{model_forward.3} parent=35 // pred_check
          %p201 = pneg %p59
        $region38: #{model_forward.3} parent=35 // pred_check_branch
          %203 = sbr.rel (%p201) target = $region40
        $region39: #{model_forward.3} parent=35 // pred_region
          %205 = dma.done [#allocation3], 5120
        $region40: #{model_forward.3} parent=35 // pred_fallthru
          _
        // Predicated region
        $region41: #{model_forward.3} parent=35 // pred_check
          %p206 = pneg %p80
        $region42: #{model_forward.3} parent=35 // pred_check_branch
          %208 = sbr.rel (%p206) target = $region44
        $region43: #{model_forward.3} parent=35 // pred_region
          %210 = dma.done [#allocation5], 5120
        $region44: #{model_forward.3} parent=35 // pred_fallthru
          _
        // Predicated region
        $region45: #{model_forward.3} parent=35 // pred_check
          %p211 = pneg %p101
        $region46: #{model_forward.3} parent=35 // pred_check_branch
          %213 = sbr.rel (%p211) target = $region48
        $region47: #{model_forward.3} parent=35 // pred_region
          %215 = dma.done [#allocation5], 32
        $region48: #{model_forward.3} parent=35 // pred_fallthru
          _
        %p216 = scmp.lt.s32.totalorder %s17, 1
        %s217 = scalar_select %p216, %s17, 1
        %s218 = smul.addr %s217, 4
        %s219 = smul.addr %s218, 8
        %s220 = scalar_lea.vmem %s0, %s219
        %p221 = pneg %p38
        %p222 = pneg %p35
        %p223 = pneg %p59
        %p224 = pneg %p56
        %p225 = pneg %p80
        %p226 = pneg %p77
        %p227 = pneg %p101
        %p228 = pneg %p98
        %p229 = pneg %p127
        %p230 = pneg %p124
        %p231 = scmp.lt.s32.totalorder %s17, 1
        %s232 = scalar_select %p231, %s17, 1
        %s233 = smul.addr %s232, 4
        %s234 = smul.addr %s233, 8
        %s235 = scalar_lea.vmem %s4, %s234
        %p236 = scmp.lt.s32.totalorder %s17, 1
        %s237 = scalar_select %p236, %s17, 1
        %s238 = smul.addr %s237, 4
        %s239 = smul.addr %s238, 8
        %s240 = scalar_lea.vmem %s0, %s239
        %p241 = scmp.lt.s32.totalorder %s17, 1
        %s242 = scalar_select %p241, %s17, 1
        %s243 = smul.addr %s242, 4
        %s244 = smul.addr %s243, 8
        %s245 = scalar_lea.vmem %s4, %s244
        %v246 = vld [vmem:[%s240] sm:$0xff]
        %v247 = vld [vmem:[%s240 + $0x8] sm:$0x3f]
        %s248 = scalar_lea.vmem %s240, 16
        %v249 = vld [vmem:[%s248] sm:$0xff]
        %v250 = vld [vmem:[%s248 + $0x8] sm:$0x3f]
        %v251 = vld [vmem:[%s240 + $0x1] sm:$0xff]
        %v252 = vld [vmem:[%s240 + $0x9] sm:$0x3f]
        %v253 = vld [vmem:[%s248 + $0x1] sm:$0xff]
        %v254 = vld [vmem:[%s248 + $0x9] sm:$0x3f]
        %v255 = vld [vmem:[%s240 + $0x2] sm:$0xff]
        %v256 = vld [vmem:[%s240 + $0xa] sm:$0x3f]
        %259 = vrot.lane.b32.xlu0 %v249, 32
        %v260 = vpop.permute.xlu0 %259
        %261 = vrot.lane.b32.xlu0 %v250, 32
        %v262 = vpop.permute.xlu0 %261
        %267 = vrot.lane.b32.xlu0 %v251, 64
        %v268 = vpop.permute.xlu0 %267
        %269 = vrot.lane.b32.xlu0 %v252, 64
        %v270 = vpop.permute.xlu0 %269
        %275 = vrot.lane.b32.xlu0 %v253, 96
        %v276 = vpop.permute.xlu0 %275
        %277 = vrot.lane.b32.xlu0 %v254, 96
        %v278 = vpop.permute.xlu0 %277
        %vm281 = vcmask 261120
        %v282 = vsel %vm281, %v246, %v260
        %v283 = vsel %vm281, %v247, %v262
        %vm284 = vcmask 523264
        %v285 = vsel %vm284, %v282, %v268
        %v286 = vsel %vm284, %v283, %v270
        %vm287 = vcmask 785408
        %v288 = vsel %vm287, %v285, %v276
        %v289 = vsel %vm287, %v286, %v278
        %v290 = vld [vmem:[%s248 + $0x2] sm:$0xff]
        %v291 = vld [vmem:[%s248 + $0xa] sm:$0x3f]
        %292 = vrot.lane.b32.xlu0 %v251, 32
        %v293 = vpop.permute.xlu0 %292
        %294 = vrot.lane.b32.xlu0 %v252, 32
        %v295 = vpop.permute.xlu0 %294
        %298 = vrot.lane.b32.xlu0 %v253, 64
        %v299 = vpop.permute.xlu0 %298
        %300 = vrot.lane.b32.xlu0 %v254, 64
        %v301 = vpop.permute.xlu0 %300
        %306 = vrot.lane.b32.xlu0 %v255, 96
        %v307 = vpop.permute.xlu0 %306
        %308 = vrot.lane.b32.xlu0 %v256, 96
        %v309 = vpop.permute.xlu0 %308
        %v312 = vsel %vm281, %v249, %v293
        %v313 = vsel %vm281, %v250, %v295
        %v314 = vsel %vm284, %v312, %v299
        %v315 = vsel %vm284, %v313, %v301
        %v316 = vsel %vm287, %v314, %v307
        %v317 = vsel %vm287, %v315, %v309
        %v318 = vld [vmem:[#allocation2] sm:$0xff]
        %v319 = vld [vmem:[#allocation2 + $0x8] sm:$0xff]
        %v320 = vld [vmem:[#allocation2 + $0x10] sm:$0xff]
        %v321 = vld [vmem:[#allocation2 + $0x18] sm:$0xff]
        %v322 = vld [vmem:[#allocation2 + $0x20] sm:$0xff]
        %v323 = vld [vmem:[#allocation2 + $0x28] sm:$0xff]
        %v324 = vld [vmem:[#allocation2 + $0x30] sm:$0xff]
        %v325 = vld [vmem:[#allocation2 + $0x38] sm:$0xff]
        %v326 = vld [vmem:[#allocation2 + $0x40] sm:$0xff]
        %v327 = vld [vmem:[#allocation2 + $0x48] sm:$0xff]
        %v328 = vld [vmem:[#allocation2 + $0x50] sm:$0xff]
        %v329 = vld [vmem:[#allocation2 + $0x58] sm:$0xff]
        %v330 = vld [vmem:[#allocation2 + $0x60] sm:$0xff]
        %v331 = vld [vmem:[#allocation2 + $0x68] sm:$0xff]
        %v332 = vld [vmem:[#allocation2 + $0x70] sm:$0xff]
        %v333 = vld [vmem:[#allocation2 + $0x78] sm:$0xff]
        %v334 = vld [vmem:[#allocation2 + $0x80] sm:$0xff]
        %v335 = vld [vmem:[#allocation2 + $0x88] sm:$0xff]
        %v336 = vld [vmem:[#allocation2 + $0x90] sm:$0xff]
        %v337 = vld [vmem:[#allocation2 + $0x98] sm:$0xff]
        %v338 = vld [vmem:[#allocation2 + $0xa0] sm:$0xff]
        %v339 = vld [vmem:[#allocation2 + $0xa8] sm:$0xff]
        %v340 = vld [vmem:[#allocation2 + $0xb0] sm:$0xff]
        %v341 = vld [vmem:[#allocation2 + $0xb8] sm:$0xff]
        %v342 = vld [vmem:[#allocation2 + $0xc0] sm:$0xff]
        %v343 = vld [vmem:[#allocation2 + $0xc8] sm:$0xff]
        %v344 = vld [vmem:[#allocation2 + $0xd0] sm:$0xff]
        %v345 = vld [vmem:[#allocation2 + $0xd8] sm:$0xff]
        %v346 = vld [vmem:[#allocation2 + $0xe0] sm:$0xff]
        %v347 = vld [vmem:[#allocation2 + $0xe8] sm:$0xff]
        %v348 = vld [vmem:[#allocation2 + $0xf0] sm:$0xff]
        %v349 = vld [vmem:[#allocation2 + $0xf8] sm:$0xff]
        %v350 = vld [vmem:[#allocation2 + $0x100] sm:$0xff]
        %v351 = vld [vmem:[#allocation2 + $0x108] sm:$0xff]
        %v352 = vld [vmem:[#allocation2 + $0x110] sm:$0xff]
        %v353 = vld [vmem:[#allocation2 + $0x118] sm:$0xff]
        %v354 = vld [vmem:[#allocation2 + $0x120] sm:$0xff]
        %v355 = vld [vmem:[#allocation2 + $0x128] sm:$0xff]
        %v356 = vld [vmem:[#allocation2 + $0x130] sm:$0xff]
        %v357 = vld [vmem:[#allocation2 + $0x138] sm:$0xff]
        %v358 = vld [vmem:[#allocation4] sm:$0xff]
        %v359 = vld [vmem:[#allocation4 + $0x8] sm:$0xff]
        %v360 = vld [vmem:[#allocation4 + $0x10] sm:$0xff]
        %v361 = vld [vmem:[#allocation4 + $0x18] sm:$0xff]
        %v362 = vld [vmem:[#allocation4 + $0x20] sm:$0xff]
        %v363 = vld [vmem:[#allocation4 + $0x28] sm:$0xff]
        %v364 = vld [vmem:[#allocation4 + $0x30] sm:$0xff]
        %v365 = vld [vmem:[#allocation4 + $0x38] sm:$0xff]
        %v366 = vld [vmem:[#allocation4 + $0x40] sm:$0xff]
        %v367 = vld [vmem:[#allocation4 + $0x48] sm:$0xff]
        %v368 = vld [vmem:[#allocation4 + $0x50] sm:$0xff]
        %v369 = vld [vmem:[#allocation4 + $0x58] sm:$0xff]
        %v370 = vld [vmem:[#allocation4 + $0x60] sm:$0xff]
        %v371 = vld [vmem:[#allocation4 + $0x68] sm:$0xff]
        %v372 = vld [vmem:[#allocation4 + $0x70] sm:$0xff]
        %v373 = vld [vmem:[#allocation4 + $0x78] sm:$0xff]
        %v374 = vld [vmem:[#allocation4 + $0x80] sm:$0xff]
        %v375 = vld [vmem:[#allocation4 + $0x88] sm:$0xff]
        %v376 = vld [vmem:[#allocation4 + $0x90] sm:$0xff]
        %v377 = vld [vmem:[#allocation4 + $0x98] sm:$0xff]
        %v378 = vld [vmem:[#allocation4 + $0xa0] sm:$0xff]
        %v379 = vld [vmem:[#allocation4 + $0xa8] sm:$0xff]
        %v380 = vld [vmem:[#allocation4 + $0xb0] sm:$0xff]
        %v381 = vld [vmem:[#allocation4 + $0xb8] sm:$0xff]
        %v382 = vld [vmem:[#allocation4 + $0xc0] sm:$0xff]
        %v383 = vld [vmem:[#allocation4 + $0xc8] sm:$0xff]
        %v384 = vld [vmem:[#allocation4 + $0xd0] sm:$0xff]
        %v385 = vld [vmem:[#allocation4 + $0xd8] sm:$0xff]
        %v386 = vld [vmem:[#allocation4 + $0xe0] sm:$0xff]
        %v387 = vld [vmem:[#allocation4 + $0xe8] sm:$0xff]
        %v388 = vld [vmem:[#allocation4 + $0xf0] sm:$0xff]
        %v389 = vld [vmem:[#allocation4 + $0xf8] sm:$0xff]
        %v390 = vld [vmem:[#allocation4 + $0x100] sm:$0xff]
        %v391 = vld [vmem:[#allocation4 + $0x108] sm:$0xff]
        %v392 = vld [vmem:[#allocation4 + $0x110] sm:$0xff]
        %v393 = vld [vmem:[#allocation4 + $0x118] sm:$0xff]
        %v394 = vld [vmem:[#allocation4 + $0x120] sm:$0xff]
        %v395 = vld [vmem:[#allocation4 + $0x128] sm:$0xff]
        %v396 = vld [vmem:[#allocation4 + $0x130] sm:$0xff]
        %v397 = vld [vmem:[#allocation4 + $0x138] sm:$0xff]
        %v398 = vsel %vm281, %v255, 0
        %v400 = vsel %vm281, %v256, 0
        %402 = vmatpush.msra.mxu0 %v348
        %403 = vmatpush.msra.mxu0 %v346
        %404 = vmatpush.msra.mxu0 %v344
        %405 = vmatpush.msra.mxu0 %v342
        %406 = vmatpush.msra.mxu0 %v340
        %407 = vmatpush.msra.mxu0 %v338
        %408 = vmatpush.msra.mxu0 %v336
        %409 = vmatpush.msra.mxu0 %v334
        %410 = vmatpush.msra.mxu0 %v332
        %411 = vmatpush.msra.mxu0 %v330
        %412 = vmatpush.msra.mxu0 %v328
        %413 = vmatpush.msra.mxu0 %v326
        %414 = vmatpush.msra.mxu0 %v324
        %415 = vmatpush.msra.mxu0 %v322
        %416 = vmatpush.msra.mxu0 %v320
        %417 = vmatpush.msra.mxu0 %v318
        %418 = vmatmul.f32.gmra.mxu0 %v288
        %v419 = vpop.f32.mrf.mxu0
        %v420 = vadd.f32 0.0, %v419
        %421 = vmatmul.f32.gmra.mxu0 %v289
        %v422 = vpop.f32.mrf.mxu0
        %v423 = vadd.f32 0.0, %v422
        %424 = vdwg.mxu0
        %425 = vmatpush.msra.mxu0 0.0
        %426 = vmatpush.msra.mxu0 0.0
        %427 = vmatpush.msra.mxu0 0.0
        %428 = vmatpush.msra.mxu0 0.0
        %429 = vmatpush.msra.mxu0 0.0
        %430 = vmatpush.msra.mxu0 0.0
        %431 = vmatpush.msra.mxu0 0.0
        %432 = vmatpush.msra.mxu0 0.0
        %433 = vmatpush.msra.mxu0 0.0
        %434 = vmatpush.msra.mxu0 0.0
        %435 = vmatpush.msra.mxu0 0.0
        %436 = vmatpush.msra.mxu0 0.0
        %437 = vmatpush.msra.mxu0 %v356
        %438 = vmatpush.msra.mxu0 %v354
        %439 = vmatpush.msra.mxu0 %v352
        %440 = vmatpush.msra.mxu0 %v350
        %441 = vmatmul.f32.gmra.mxu0 %v398
        %v442 = vpop.f32.mrf.mxu0
        %v443 = vadd.f32 %v420, %v442
        %444 = vmatmul.f32.gmra.mxu0 %v400
        %v445 = vpop.f32.mrf.mxu0
        %v446 = vadd.f32 %v423, %v445
        %447 = vdwg.mxu0
        %448 = vmatpush.msra.mxu0 %v349
        %449 = vmatpush.msra.mxu0 %v347
        %450 = vmatpush.msra.mxu0 %v345
        %451 = vmatpush.msra.mxu0 %v343
        %452 = vmatpush.msra.mxu0 %v341
        %453 = vmatpush.msra.mxu0 %v339
        %454 = vmatpush.msra.mxu0 %v337
        %455 = vmatpush.msra.mxu0 %v335
        %456 = vmatpush.msra.mxu0 %v333
        %457 = vmatpush.msra.mxu0 %v331
        %458 = vmatpush.msra.mxu0 %v329
        %459 = vmatpush.msra.mxu0 %v327
        %460 = vmatpush.msra.mxu0 %v325
        %461 = vmatpush.msra.mxu0 %v323
        %462 = vmatpush.msra.mxu0 %v321
        %463 = vmatpush.msra.mxu0 %v319
        %464 = vmatmul.f32.gmra.mxu0 %v288
        %v465 = vpop.f32.mrf.mxu0
        %v466 = vadd.f32 0.0, %v465
        %467 = vmatmul.f32.gmra.mxu0 %v289
        %v468 = vpop.f32.mrf.mxu0
        %v469 = vadd.f32 0.0, %v468
        %470 = vdwg.mxu0
        %471 = vmatpush.msra.mxu0 0.0
        %472 = vmatpush.msra.mxu0 0.0
        %473 = vmatpush.msra.mxu0 0.0
        %474 = vmatpush.msra.mxu0 0.0
        %475 = vmatpush.msra.mxu0 0.0
        %476 = vmatpush.msra.mxu0 0.0
        %477 = vmatpush.msra.mxu0 0.0
        %478 = vmatpush.msra.mxu0 0.0
        %479 = vmatpush.msra.mxu0 0.0
        %480 = vmatpush.msra.mxu0 0.0
        %481 = vmatpush.msra.mxu0 0.0
        %482 = vmatpush.msra.mxu0 0.0
        %483 = vmatpush.msra.mxu0 %v357
        %484 = vmatpush.msra.mxu0 %v355
        %485 = vmatpush.msra.mxu0 %v353
        %486 = vmatpush.msra.mxu0 %v351
        %487 = vmatmul.f32.gmra.mxu0 %v398
        %v488 = vpop.f32.mrf.mxu0
        %v489 = vadd.f32 %v466, %v488
        %490 = vmatmul.f32.gmra.mxu0 %v400
        %v491 = vpop.f32.mrf.mxu0
        %v492 = vadd.f32 %v469, %v491
        %493 = vdwg.mxu0
        %494 = vmatpush.msra.mxu0 %v388
        %495 = vmatpush.msra.mxu0 %v386
        %496 = vmatpush.msra.mxu0 %v384
        %497 = vmatpush.msra.mxu0 %v382
        %498 = vmatpush.msra.mxu0 %v380
        %499 = vmatpush.msra.mxu0 %v378
        %500 = vmatpush.msra.mxu0 %v376
        %501 = vmatpush.msra.mxu0 %v374
        %502 = vmatpush.msra.mxu0 %v372
        %503 = vmatpush.msra.mxu0 %v370
        %504 = vmatpush.msra.mxu0 %v368
        %505 = vmatpush.msra.mxu0 %v366
        %506 = vmatpush.msra.mxu0 %v364
        %507 = vmatpush.msra.mxu0 %v362
        %508 = vmatpush.msra.mxu0 %v360
        %509 = vmatpush.msra.mxu0 %v358
        %510 = vmatmul.f32.gmra.mxu0 %v288
        %v511 = vpop.f32.mrf.mxu0
        %v512 = vadd.f32 0.0, %v511
        %513 = vmatmul.f32.gmra.mxu0 %v289
        %v514 = vpop.f32.mrf.mxu0
        %v515 = vadd.f32 0.0, %v514
        %516 = vdwg.mxu0
        %517 = vmatpush.msra.mxu0 0.0
        %518 = vmatpush.msra.mxu0 0.0
        %519 = vmatpush.msra.mxu0 0.0
        %520 = vmatpush.msra.mxu0 0.0
        %521 = vmatpush.msra.mxu0 0.0
        %522 = vmatpush.msra.mxu0 0.0
        %523 = vmatpush.msra.mxu0 0.0
        %524 = vmatpush.msra.mxu0 0.0
        %525 = vmatpush.msra.mxu0 0.0
        %526 = vmatpush.msra.mxu0 0.0
        %527 = vmatpush.msra.mxu0 0.0
        %528 = vmatpush.msra.mxu0 0.0
        %529 = vmatpush.msra.mxu0 %v396
        %530 = vmatpush.msra.mxu0 %v394
        %531 = vmatpush.msra.mxu0 %v392
        %532 = vmatpush.msra.mxu0 %v390
        %533 = vmatmul.f32.gmra.mxu0 %v398
        %v534 = vpop.f32.mrf.mxu0
        %v535 = vadd.f32 %v512, %v534
        %536 = vmatmul.f32.gmra.mxu0 %v400
        %v537 = vpop.f32.mrf.mxu0
        %v538 = vadd.f32 %v515, %v537
        %539 = vdwg.mxu0
        %540 = vmatpush.msra.mxu0 %v389
        %541 = vmatpush.msra.mxu0 %v387
        %542 = vmatpush.msra.mxu0 %v385
        %543 = vmatpush.msra.mxu0 %v383
        %544 = vmatpush.msra.mxu0 %v381
        %545 = vmatpush.msra.mxu0 %v379
        %546 = vmatpush.msra.mxu0 %v377
        %547 = vmatpush.msra.mxu0 %v375
        %548 = vmatpush.msra.mxu0 %v373
        %549 = vmatpush.msra.mxu0 %v371
        %550 = vmatpush.msra.mxu0 %v369
        %551 = vmatpush.msra.mxu0 %v367
        %552 = vmatpush.msra.mxu0 %v365
        %553 = vmatpush.msra.mxu0 %v363
        %554 = vmatpush.msra.mxu0 %v361
        %555 = vmatpush.msra.mxu0 %v359
        %556 = vmatmul.f32.gmra.mxu0 %v288
        %v557 = vpop.f32.mrf.mxu0
        %v558 = vadd.f32 0.0, %v557
        %559 = vmatmul.f32.gmra.mxu0 %v289
        %v560 = vpop.f32.mrf.mxu0
        %v561 = vadd.f32 0.0, %v560
        %562 = vdwg.mxu0
        %563 = vmatpush.msra.mxu0 0.0
        %564 = vmatpush.msra.mxu0 0.0
        %565 = vmatpush.msra.mxu0 0.0
        %566 = vmatpush.msra.mxu0 0.0
        %567 = vmatpush.msra.mxu0 0.0
        %568 = vmatpush.msra.mxu0 0.0
        %569 = vmatpush.msra.mxu0 0.0
        %570 = vmatpush.msra.mxu0 0.0
        %571 = vmatpush.msra.mxu0 0.0
        %572 = vmatpush.msra.mxu0 0.0
        %573 = vmatpush.msra.mxu0 0.0
        %574 = vmatpush.msra.mxu0 0.0
        %575 = vmatpush.msra.mxu0 %v397
        %576 = vmatpush.msra.mxu0 %v395
        %577 = vmatpush.msra.mxu0 %v393
        %578 = vmatpush.msra.mxu0 %v391
        %579 = vmatmul.f32.gmra.mxu0 %v398
        %v580 = vpop.f32.mrf.mxu0
        %v581 = vadd.f32 %v558, %v580
        %582 = vmatmul.f32.gmra.mxu0 %v400
        %v583 = vpop.f32.mrf.mxu0
        %v584 = vadd.f32 %v561, %v583
        %585 = vdwg.mxu0
        %v586 = vmax.f32 %v443, %v535
        %v587 = vmax.f32 %v489, %v581
        %v588 = vmax.f32 %v446, %v538
        %v589 = vmax.f32 %v492, %v584
        %v591 = vsel %vm281, %v290, 0
        %v594 = vsel %vm281, %v291, 0
        %596 = vmatpush.msra.mxu0 %v348
        %597 = vmatpush.msra.mxu0 %v346
        %598 = vmatpush.msra.mxu0 %v344
        %599 = vmatpush.msra.mxu0 %v342
        %600 = vmatpush.msra.mxu0 %v340
        %601 = vmatpush.msra.mxu0 %v338
        %602 = vmatpush.msra.mxu0 %v336
        %603 = vmatpush.msra.mxu0 %v334
        %604 = vmatpush.msra.mxu0 %v332
        %605 = vmatpush.msra.mxu0 %v330
        %606 = vmatpush.msra.mxu0 %v328
        %607 = vmatpush.msra.mxu0 %v326
        %608 = vmatpush.msra.mxu0 %v324
        %609 = vmatpush.msra.mxu0 %v322
        %610 = vmatpush.msra.mxu0 %v320
        %611 = vmatpush.msra.mxu0 %v318
        %612 = vmatmul.f32.gmra.mxu0 %v316
        %v613 = vpop.f32.mrf.mxu0
        %v614 = vadd.f32 0.0, %v613
        %615 = vmatmul.f32.gmra.mxu0 %v317
        %v616 = vpop.f32.mrf.mxu0
        %v617 = vadd.f32 0.0, %v616
        %618 = vdwg.mxu0
        %619 = vmatpush.msra.mxu0 0.0
        %620 = vmatpush.msra.mxu0 0.0
        %621 = vmatpush.msra.mxu0 0.0
        %622 = vmatpush.msra.mxu0 0.0
        %623 = vmatpush.msra.mxu0 0.0
        %624 = vmatpush.msra.mxu0 0.0
        %625 = vmatpush.msra.mxu0 0.0
        %626 = vmatpush.msra.mxu0 0.0
        %627 = vmatpush.msra.mxu0 0.0
        %628 = vmatpush.msra.mxu0 0.0
        %629 = vmatpush.msra.mxu0 0.0
        %630 = vmatpush.msra.mxu0 0.0
        %631 = vmatpush.msra.mxu0 %v356
        %632 = vmatpush.msra.mxu0 %v354
        %633 = vmatpush.msra.mxu0 %v352
        %634 = vmatpush.msra.mxu0 %v350
        %635 = vmatmul.f32.gmra.mxu0 %v591
        %v636 = vpop.f32.mrf.mxu0
        %v637 = vadd.f32 %v614, %v636
        %638 = vmatmul.f32.gmra.mxu0 %v594
        %v639 = vpop.f32.mrf.mxu0
        %v640 = vadd.f32 %v617, %v639
        %641 = vdwg.mxu0
        %642 = vmatpush.msra.mxu0 %v349
        %643 = vmatpush.msra.mxu0 %v347
        %644 = vmatpush.msra.mxu0 %v345
        %645 = vmatpush.msra.mxu0 %v343
        %646 = vmatpush.msra.mxu0 %v341
        %647 = vmatpush.msra.mxu0 %v339
        %648 = vmatpush.msra.mxu0 %v337
        %649 = vmatpush.msra.mxu0 %v335
        %650 = vmatpush.msra.mxu0 %v333
        %651 = vmatpush.msra.mxu0 %v331
        %652 = vmatpush.msra.mxu0 %v329
        %653 = vmatpush.msra.mxu0 %v327
        %654 = vmatpush.msra.mxu0 %v325
        %655 = vmatpush.msra.mxu0 %v323
        %656 = vmatpush.msra.mxu0 %v321
        %657 = vmatpush.msra.mxu0 %v319
        %658 = vmatmul.f32.gmra.mxu0 %v316
        %v659 = vpop.f32.mrf.mxu0
        %v660 = vadd.f32 0.0, %v659
        %661 = vmatmul.f32.gmra.mxu0 %v317
        %v662 = vpop.f32.mrf.mxu0
        %v663 = vadd.f32 0.0, %v662
        %664 = vdwg.mxu0
        %665 = vmatpush.msra.mxu0 0.0
        %666 = vmatpush.msra.mxu0 0.0
        %667 = vmatpush.msra.mxu0 0.0
        %668 = vmatpush.msra.mxu0 0.0
        %669 = vmatpush.msra.mxu0 0.0
        %670 = vmatpush.msra.mxu0 0.0
        %671 = vmatpush.msra.mxu0 0.0
        %672 = vmatpush.msra.mxu0 0.0
        %673 = vmatpush.msra.mxu0 0.0
        %674 = vmatpush.msra.mxu0 0.0
        %675 = vmatpush.msra.mxu0 0.0
        %676 = vmatpush.msra.mxu0 0.0
        %677 = vmatpush.msra.mxu0 %v357
        %678 = vmatpush.msra.mxu0 %v355
        %679 = vmatpush.msra.mxu0 %v353
        %680 = vmatpush.msra.mxu0 %v351
        %681 = vmatmul.f32.gmra.mxu0 %v591
        %v682 = vpop.f32.mrf.mxu0
        %v683 = vadd.f32 %v660, %v682
        %684 = vmatmul.f32.gmra.mxu0 %v594
        %v685 = vpop.f32.mrf.mxu0
        %v686 = vadd.f32 %v663, %v685
        %687 = vdwg.mxu0
        %688 = vmatpush.msra.mxu0 %v388
        %689 = vmatpush.msra.mxu0 %v386
        %690 = vmatpush.msra.mxu0 %v384
        %691 = vmatpush.msra.mxu0 %v382
        %692 = vmatpush.msra.mxu0 %v380
        %693 = vmatpush.msra.mxu0 %v378
        %694 = vmatpush.msra.mxu0 %v376
        %695 = vmatpush.msra.mxu0 %v374
        %696 = vmatpush.msra.mxu0 %v372
        %697 = vmatpush.msra.mxu0 %v370
        %698 = vmatpush.msra.mxu0 %v368
        %699 = vmatpush.msra.mxu0 %v366
        %700 = vmatpush.msra.mxu0 %v364
        %701 = vmatpush.msra.mxu0 %v362
        %702 = vmatpush.msra.mxu0 %v360
        %703 = vmatpush.msra.mxu0 %v358
        %704 = vmatmul.f32.gmra.mxu0 %v316
        %v705 = vpop.f32.mrf.mxu0
        %v706 = vadd.f32 0.0, %v705
        %707 = vmatmul.f32.gmra.mxu0 %v317
        %v708 = vpop.f32.mrf.mxu0
        %v709 = vadd.f32 0.0, %v708
        %710 = vdwg.mxu0
        %711 = vmatpush.msra.mxu0 0.0
        %712 = vmatpush.msra.mxu0 0.0
        %713 = vmatpush.msra.mxu0 0.0
        %714 = vmatpush.msra.mxu0 0.0
        %715 = vmatpush.msra.mxu0 0.0
        %716 = vmatpush.msra.mxu0 0.0
        %717 = vmatpush.msra.mxu0 0.0
        %718 = vmatpush.msra.mxu0 0.0
        %719 = vmatpush.msra.mxu0 0.0
        %720 = vmatpush.msra.mxu0 0.0
        %721 = vmatpush.msra.mxu0 0.0
        %722 = vmatpush.msra.mxu0 0.0
        %723 = vmatpush.msra.mxu0 %v396
        %724 = vmatpush.msra.mxu0 %v394
        %725 = vmatpush.msra.mxu0 %v392
        %726 = vmatpush.msra.mxu0 %v390
        %727 = vmatmul.f32.gmra.mxu0 %v591
        %v728 = vpop.f32.mrf.mxu0
        %v729 = vadd.f32 %v706, %v728
        %730 = vmatmul.f32.gmra.mxu0 %v594
        %v731 = vpop.f32.mrf.mxu0
        %v732 = vadd.f32 %v709, %v731
        %733 = vdwg.mxu0
        %734 = vmatpush.msra.mxu0 %v389
        %735 = vmatpush.msra.mxu0 %v387
        %736 = vmatpush.msra.mxu0 %v385
        %737 = vmatpush.msra.mxu0 %v383
        %738 = vmatpush.msra.mxu0 %v381
        %739 = vmatpush.msra.mxu0 %v379
        %740 = vmatpush.msra.mxu0 %v377
        %741 = vmatpush.msra.mxu0 %v375
        %742 = vmatpush.msra.mxu0 %v373
        %743 = vmatpush.msra.mxu0 %v371
        %744 = vmatpush.msra.mxu0 %v369
        %745 = vmatpush.msra.mxu0 %v367
        %746 = vmatpush.msra.mxu0 %v365
        %747 = vmatpush.msra.mxu0 %v363
        %748 = vmatpush.msra.mxu0 %v361
        %749 = vmatpush.msra.mxu0 %v359
        %750 = vmatmul.f32.gmra.mxu0 %v316
        %v751 = vpop.f32.mrf.mxu0
        %v752 = vadd.f32 0.0, %v751
        %753 = vmatmul.f32.gmra.mxu0 %v317
        %v754 = vpop.f32.mrf.mxu0
        %v755 = vadd.f32 0.0, %v754
        %756 = vdwg.mxu0
        %757 = vmatpush.msra.mxu0 0.0
        %758 = vmatpush.msra.mxu0 0.0
        %759 = vmatpush.msra.mxu0 0.0
        %760 = vmatpush.msra.mxu0 0.0
        %761 = vmatpush.msra.mxu0 0.0
        %762 = vmatpush.msra.mxu0 0.0
        %763 = vmatpush.msra.mxu0 0.0
        %764 = vmatpush.msra.mxu0 0.0
        %765 = vmatpush.msra.mxu0 0.0
        %766 = vmatpush.msra.mxu0 0.0
        %767 = vmatpush.msra.mxu0 0.0
        %768 = vmatpush.msra.mxu0 0.0
        %769 = vmatpush.msra.mxu0 %v397
        %770 = vmatpush.msra.mxu0 %v395
        %771 = vmatpush.msra.mxu0 %v393
        %772 = vmatpush.msra.mxu0 %v391
        %773 = vmatmul.f32.gmra.mxu0 %v591
        %v774 = vpop.f32.mrf.mxu0
        %v775 = vadd.f32 %v752, %v774
        %776 = vmatmul.f32.gmra.mxu0 %v594
        %v777 = vpop.f32.mrf.mxu0
        %v778 = vadd.f32 %v755, %v777
        %779 = vdwg.mxu0
        %v780 = vmax.f32 %v637, %v729
        %v781 = vmax.f32 %v683, %v775
        %v782 = vmax.f32 %v640, %v732
        %v783 = vmax.f32 %v686, %v778
        %v784 = vmax.f32 %v586, %v780
        %v785 = vmax.f32 %v587, %v781
        %v786 = vmax.f32 %v588, %v782
        %v787 = vmax.f32 %v589, %v783
        %v788 = vld [vmem:[#allocation6] sm:$0x3]
        %v790 = vperm.slane %v788, 0
        %v791 = vperm.slane %v788, 1
        %v794 = vadd.f32 %v784, %v790
        %v795 = vadd.f32 %v785, %v791
        %v796 = vadd.f32 %v786, %v790
        %v797 = vadd.f32 %v787, %v791
        %v798 = vmax.f32 %v794, 0.0
        %v799 = vmax.f32 %v795, 0.0
        %v800 = vmax.f32 %v796, 0.0
        %v801 = vmax.f32 %v797, 0.0
        %802 = vst [vmem:[%s245] sm:$0xff] %v798
        %803 = vst.msk [vmem:[%s245 + $0x8] sm:$0xff] %vm287, %v799
        %804 = vst [vmem:[%s245 + $0x10] sm:$0x3f] %v800
        %vm805 = vcmask 783360
        %806 = vst.msk [vmem:[%s245 + $0x18] sm:$0x3f] %vm805, %v801
        %p807 = scmp.lt.s32.totalorder %s17, 1
        %s808 = scalar_select %p807, %s17, 1
        %s809 = smul.addr %s808, 4
        %s810 = smul.addr %s809, 8
        %s811 = scalar_lea.vmem %s4, %s810
        // Predicated region
        $region49: #{model_forward.3} parent=35 // pred_check
          %p812 = pneg %p124
        $region50: #{model_forward.3} parent=35 // pred_check_branch
          %814 = sbr.rel (%p812) target = $region52
        $region51: #{model_forward.3} parent=35 // pred_region
          _
        $region52: #{model_forward.3} parent=35 // pred_fallthru
          _
      $region36: #{model_forward.3} parent=5 // pred_fallthru
        _
      %p815 = scmp.le.s32.totalorder 2, %s12
      // Predicated region
      $region53: #{model_forward.3} parent=5 // pred_check
        %p816 = pneg %p815
      $region54: #{model_forward.3} parent=5 // pred_check_branch
        %818 = sbr.rel (%p816) target = $region56
      $region55: #{model_forward.3} parent=5 // pred_region
        %s819 = ssub.s32 %s12, 2
        // Predicated region
        $region57: #{model_forward.3} parent=55 // pred_check
          %p820 = pneg %p130
        $region58: #{model_forward.3} parent=55 // pred_check_branch
          %822 = sbr.rel (%p820) target = $region60
        $region59: #{model_forward.3} parent=55 // pred_region
          %p823 = scmp.lt.s32.totalorder %s18, 1
          %s824 = scalar_select %p823, %s18, 1
          %s825 = smul.addr %s824, 4
          %s826 = smul.addr %s825, 8
          %s827 = scalar_lea.vmem %s4, %s826
        $region60: #{model_forward.3} parent=55 // pred_fallthru
          _
      $region56: #{model_forward.3} parent=5 // pred_fallthru
        _
    $region6: #{model_forward.3} parent=1 // loop_footer
      %s16 = sadd.s32 1, %s12
    $region7: #{model_forward.3} parent=1 // loop_footer_branch
      %11 = sbr.rel target = $region3
    $region8: #{model_forward.3} parent=1 // loop_exit
      _
    %828 = vsyncpa [#allocation3], 1
    %s829 = scalar_lea.sflag [#allocation3], 1
    %830 = vsyncpa %s829, 1
    %831 = vsyncpa [#allocation5], 1

// kernel: model_forward.5
$region0: #{model_forward.5}
  #allocation0 [shape = 'u32[]', space=smem, size = 0x4, offset = 0x4, fixed_abs, tag = 'smem constant byte address 0x4 - core index']
  #allocation1 [shape = 'u32[72,128]{1,0:T(1,128)}', space=vmem, size = 0x9000, scoped, tag = 'internal scratch']
  %s0 = inlined_call_operand.vmem [shape: f32[8,1568], index: 0, kind: input, shape index: {}]
  %s1 = inlined_call_operand.vmem [shape: f32[1568,128], index: 1, kind: input, shape index: {}]
  %s2 = inlined_call_operand.vmem [shape: f32[1,128], index: 2, kind: input, shape index: {}]
  %s3 = inlined_call_operand.vmem [shape: f32[8,128], index: 3, kind: output, shape index: {}]
  %s4 = sld [smem:[#allocation0]]
  $region22: #{model_forward.5} parent=0
    _
  %s6 = ssub.s32 1, %s4
  %s7 = scalar_select 0, %s6, %s4
  // Predicated region
  $region2: #{model_forward.5} parent=0 // pred_check
    _
  $region3: #{model_forward.5} parent=0 // pred_check_branch
    %9 = sbr.rel (0) target = $region5
  $region4: #{model_forward.5} parent=0 // pred_region
    _
  $region5: #{model_forward.5} parent=0 // pred_fallthru
    _
  // Predicated region
  $region6: #{model_forward.5} parent=0 // pred_check
    _
  $region7: #{model_forward.5} parent=0 // pred_check_branch
    %11 = sbr.rel (0) target = $region9
  $region8: #{model_forward.5} parent=0 // pred_region
    _
  $region9: #{model_forward.5} parent=0 // pred_fallthru
    _
  // Predicated region
  $region10: #{model_forward.5} parent=0 // pred_check
    _
  $region11: #{model_forward.5} parent=0 // pred_check_branch
    %13 = sbr.rel (0) target = $region13
  $region12: #{model_forward.5} parent=0 // pred_region
    _
  $region13: #{model_forward.5} parent=0 // pred_fallthru
    _
  %v14 = vld [vmem:[%s0] sm:$0xff]
  %v15 = vld [vmem:[%s0 + $0x8] sm:$0xff]
  %v16 = vld [vmem:[%s0 + $0x10] sm:$0xff]
  %v17 = vld [vmem:[%s0 + $0x18] sm:$0xff]
  %v18 = vld [vmem:[%s0 + $0x20] sm:$0xff]
  %v19 = vld [vmem:[%s0 + $0x28] sm:$0xff]
  %v20 = vld [vmem:[%s0 + $0x30] sm:$0xff]
  %v21 = vld [vmem:[%s0 + $0x38] sm:$0xff]
  %v22 = vld [vmem:[%s0 + $0x40] sm:$0xff]
  %v23 = vld [vmem:[%s0 + $0x48] sm:$0xff]
  %v24 = vld [vmem:[%s0 + $0x50] sm:$0xff]
  %v25 = vld [vmem:[%s0 + $0x58] sm:$0xff]
  %v26 = vld [vmem:[%s0 + $0x60] sm:$0xff]
  %v27 = vld [vmem:[%s1] sm:$0xff]
  %v28 = vld [vmem:[%s1 + $0x8] sm:$0xff]
  %v29 = vld [vmem:[%s1 + $0x10] sm:$0xff]
  %v30 = vld [vmem:[%s1 + $0x18] sm:$0xff]
  %v31 = vld [vmem:[%s1 + $0x20] sm:$0xff]
  %v32 = vld [vmem:[%s1 + $0x28] sm:$0xff]
  %v33 = vld [vmem:[%s1 + $0x30] sm:$0xff]
  %v34 = vld [vmem:[%s1 + $0x38] sm:$0xff]
  %v35 = vld [vmem:[%s1 + $0x40] sm:$0xff]
  %v36 = vld [vmem:[%s1 + $0x48] sm:$0xff]
  %v37 = vld [vmem:[%s1 + $0x50] sm:$0xff]
  %v38 = vld [vmem:[%s1 + $0x58] sm:$0xff]
  %v39 = vld [vmem:[%s1 + $0x60] sm:$0xff]
  %v40 = vld [vmem:[%s1 + $0x68] sm:$0xff]
  %v41 = vld [vmem:[%s1 + $0x70] sm:$0xff]
  %v42 = vld [vmem:[%s1 + $0x78] sm:$0xff]
  %v43 = vld [vmem:[%s1 + $0x80] sm:$0xff]
  %v44 = vld [vmem:[%s1 + $0x88] sm:$0xff]
  %v45 = vld [vmem:[%s1 + $0x90] sm:$0xff]
  %v46 = vld [vmem:[%s1 + $0x98] sm:$0xff]
  %v47 = vld [vmem:[%s1 + $0xa0] sm:$0xff]
  %v48 = vld [vmem:[%s1 + $0xa8] sm:$0xff]
  %v49 = vld [vmem:[%s1 + $0xb0] sm:$0xff]
  %v50 = vld [vmem:[%s1 + $0xb8] sm:$0xff]
  %v51 = vld [vmem:[%s1 + $0xc0] sm:$0xff]
  %v52 = vld [vmem:[%s1 + $0xc8] sm:$0xff]
  %v53 = vld [vmem:[%s1 + $0xd0] sm:$0xff]
  %v54 = vld [vmem:[%s1 + $0xd8] sm:$0xff]
  %v55 = vld [vmem:[%s1 + $0xe0] sm:$0xff]
  %v56 = vld [vmem:[%s1 + $0xe8] sm:$0xff]
  %v57 = vld [vmem:[%s1 + $0xf0] sm:$0xff]
  %v58 = vld [vmem:[%s1 + $0xf8] sm:$0xff]
  %v59 = vld [vmem:[%s1 + $0x100] sm:$0xff]
  %v60 = vld [vmem:[%s1 + $0x108] sm:$0xff]
  %v61 = vld [vmem:[%s1 + $0x110] sm:$0xff]
  %v62 = vld [vmem:[%s1 + $0x118] sm:$0xff]
  %v63 = vld [vmem:[%s1 + $0x120] sm:$0xff]
  %v64 = vld [vmem:[%s1 + $0x128] sm:$0xff]
  %v65 = vld [vmem:[%s1 + $0x130] sm:$0xff]
  %v66 = vld [vmem:[%s1 + $0x138] sm:$0xff]
  %v67 = vld [vmem:[%s1 + $0x140] sm:$0xff]
  %v68 = vld [vmem:[%s1 + $0x148] sm:$0xff]
  %v69 = vld [vmem:[%s1 + $0x150] sm:$0xff]
  %v70 = vld [vmem:[%s1 + $0x158] sm:$0xff]
  %v71 = vld [vmem:[%s1 + $0x160] sm:$0xff]
  %v72 = vld [vmem:[%s1 + $0x168] sm:$0xff]
  %v73 = vld [vmem:[%s1 + $0x170] sm:$0xff]
  %v74 = vld [vmem:[%s1 + $0x178] sm:$0xff]
  %v75 = vld [vmem:[%s1 + $0x180] sm:$0xff]
  %v76 = vld [vmem:[%s1 + $0x188] sm:$0xff]
  %v77 = vld [vmem:[%s1 + $0x190] sm:$0xff]
  %v78 = vld [vmem:[%s1 + $0x198] sm:$0xff]
  %v79 = vld [vmem:[%s1 + $0x1a0] sm:$0xff]
  %v80 = vld [vmem:[%s1 + $0x1a8] sm:$0xff]
  %v81 = vld [vmem:[%s1 + $0x1b0] sm:$0xff]
  %v82 = vld [vmem:[%s1 + $0x1b8] sm:$0xff]
  %v83 = vld [vmem:[%s1 + $0x1c0] sm:$0xff]
  %v84 = vld [vmem:[%s1 + $0x1c8] sm:$0xff]
  %v85 = vld [vmem:[%s1 + $0x1d0] sm:$0xff]
  %v86 = vld [vmem:[%s1 + $0x1d8] sm:$0xff]
  %v87 = vld [vmem:[%s1 + $0x1e0] sm:$0xff]
  %v88 = vld [vmem:[%s1 + $0x1e8] sm:$0xff]
  %v89 = vld [vmem:[%s1 + $0x1f0] sm:$0xff]
  %v90 = vld [vmem:[%s1 + $0x1f8] sm:$0xff]
  %v91 = vld [vmem:[%s1 + $0x200] sm:$0xff]
  %v92 = vld [vmem:[%s1 + $0x208] sm:$0xff]
  %v93 = vld [vmem:[%s1 + $0x210] sm:$0xff]
  %v94 = vld [vmem:[%s1 + $0x218] sm:$0xff]
  %v95 = vld [vmem:[%s1 + $0x220] sm:$0xff]
  %v96 = vld [vmem:[%s1 + $0x228] sm:$0xff]
  %v97 = vld [vmem:[%s1 + $0x230] sm:$0xff]
  %v98 = vld [vmem:[%s1 + $0x238] sm:$0xff]
  %v99 = vld [vmem:[%s1 + $0x240] sm:$0xff]
  %v100 = vld [vmem:[%s1 + $0x248] sm:$0xff]
  %v101 = vld [vmem:[%s1 + $0x250] sm:$0xff]
  %v102 = vld [vmem:[%s1 + $0x258] sm:$0xff]
  %v103 = vld [vmem:[%s1 + $0x260] sm:$0xff]
  %v104 = vld [vmem:[%s1 + $0x268] sm:$0xff]
  %v105 = vld [vmem:[%s1 + $0x270] sm:$0xff]
  %v106 = vld [vmem:[%s1 + $0x278] sm:$0xff]
  %v107 = vld [vmem:[%s1 + $0x280] sm:$0xff]
  %v108 = vld [vmem:[%s1 + $0x288] sm:$0xff]
  %v109 = vld [vmem:[%s1 + $0x290] sm:$0xff]
  %v110 = vld [vmem:[%s1 + $0x298] sm:$0xff]
  %v111 = vld [vmem:[%s1 + $0x2a0] sm:$0xff]
  %v112 = vld [vmem:[%s1 + $0x2a8] sm:$0xff]
  %v113 = vld [vmem:[%s1 + $0x2b0] sm:$0xff]
  %v114 = vld [vmem:[%s1 + $0x2b8] sm:$0xff]
  %v115 = vld [vmem:[%s1 + $0x2c0] sm:$0xff]
  %v116 = vld [vmem:[%s1 + $0x2c8] sm:$0xff]
  %v117 = vld [vmem:[%s1 + $0x2d0] sm:$0xff]
  %v118 = vld [vmem:[%s1 + $0x2d8] sm:$0xff]
  %v119 = vld [vmem:[%s1 + $0x2e0] sm:$0xff]
  %v120 = vld [vmem:[%s1 + $0x2e8] sm:$0xff]
  %v121 = vld [vmem:[%s1 + $0x2f0] sm:$0xff]
  %v122 = vld [vmem:[%s1 + $0x2f8] sm:$0xff]
  %v123 = vld [vmem:[%s1 + $0x300] sm:$0xff]
  %v124 = vld [vmem:[%s1 + $0x308] sm:$0xff]
  %v125 = vld [vmem:[%s1 + $0x310] sm:$0xff]
  %v126 = vld [vmem:[%s1 + $0x318] sm:$0xff]
  %v127 = vld [vmem:[%s1 + $0x320] sm:$0xff]
  %v128 = vld [vmem:[%s1 + $0x328] sm:$0xff]
  %v129 = vld [vmem:[%s1 + $0x330] sm:$0xff]
  %v130 = vld [vmem:[%s1 + $0x338] sm:$0xff]
  %v131 = vld [vmem:[%s1 + $0x340] sm:$0xff]
  %v132 = vld [vmem:[%s1 + $0x348] sm:$0xff]
  %v133 = vld [vmem:[%s1 + $0x350] sm:$0xff]
  %v134 = vld [vmem:[%s1 + $0x358] sm:$0xff]
  %v135 = vld [vmem:[%s1 + $0x360] sm:$0xff]
  %v136 = vld [vmem:[%s1 + $0x368] sm:$0xff]
  %v137 = vld [vmem:[%s1 + $0x370] sm:$0xff]
  %v138 = vld [vmem:[%s1 + $0x378] sm:$0xff]
  %v139 = vld [vmem:[%s1 + $0x380] sm:$0xff]
  %v140 = vld [vmem:[%s1 + $0x388] sm:$0xff]
  %v141 = vld [vmem:[%s1 + $0x390] sm:$0xff]
  %v142 = vld [vmem:[%s1 + $0x398] sm:$0xff]
  %v143 = vld [vmem:[%s1 + $0x3a0] sm:$0xff]
  %v144 = vld [vmem:[%s1 + $0x3a8] sm:$0xff]
  %v145 = vld [vmem:[%s1 + $0x3b0] sm:$0xff]
  %v146 = vld [vmem:[%s1 + $0x3b8] sm:$0xff]
  %v147 = vld [vmem:[%s1 + $0x3c0] sm:$0xff]
  %v148 = vld [vmem:[%s1 + $0x3c8] sm:$0xff]
  %v149 = vld [vmem:[%s1 + $0x3d0] sm:$0xff]
  %v150 = vld [vmem:[%s1 + $0x3d8] sm:$0xff]
  %v151 = vld [vmem:[%s1 + $0x3e0] sm:$0xff]
  %v152 = vld [vmem:[%s1 + $0x3e8] sm:$0xff]
  %v153 = vld [vmem:[%s1 + $0x3f0] sm:$0xff]
  %v154 = vld [vmem:[%s1 + $0x3f8] sm:$0xff]
  %v155 = vld [vmem:[%s1 + $0x400] sm:$0xff]
  %v156 = vld [vmem:[%s1 + $0x408] sm:$0xff]
  %v157 = vld [vmem:[%s1 + $0x410] sm:$0xff]
  %v158 = vld [vmem:[%s1 + $0x418] sm:$0xff]
  %v159 = vld [vmem:[%s1 + $0x420] sm:$0xff]
  %v160 = vld [vmem:[%s1 + $0x428] sm:$0xff]
  %v161 = vld [vmem:[%s1 + $0x430] sm:$0xff]
  %v162 = vld [vmem:[%s1 + $0x438] sm:$0xff]
  %v163 = vld [vmem:[%s1 + $0x440] sm:$0xff]
  %v164 = vld [vmem:[%s1 + $0x448] sm:$0xff]
  %v165 = vld [vmem:[%s1 + $0x450] sm:$0xff]
  %v166 = vld [vmem:[%s1 + $0x458] sm:$0xff]
  %v167 = vld [vmem:[%s1 + $0x460] sm:$0xff]
  %v168 = vld [vmem:[%s1 + $0x468] sm:$0xff]
  %v169 = vld [vmem:[%s1 + $0x470] sm:$0xff]
  %v170 = vld [vmem:[%s1 + $0x478] sm:$0xff]
  %v171 = vld [vmem:[%s1 + $0x480] sm:$0xff]
  %v172 = vld [vmem:[%s1 + $0x488] sm:$0xff]
  %v173 = vld [vmem:[%s1 + $0x490] sm:$0xff]
  %v174 = vld [vmem:[%s1 + $0x498] sm:$0xff]
  %v175 = vld [vmem:[%s1 + $0x4a0] sm:$0xff]
  %v176 = vld [vmem:[%s1 + $0x4a8] sm:$0xff]
  %v177 = vld [vmem:[%s1 + $0x4b0] sm:$0xff]
  %v178 = vld [vmem:[%s1 + $0x4b8] sm:$0xff]
  %v179 = vld [vmem:[%s1 + $0x4c0] sm:$0xff]
  %v180 = vld [vmem:[%s1 + $0x4c8] sm:$0xff]
  %v181 = vld [vmem:[%s1 + $0x4d0] sm:$0xff]
  %v182 = vld [vmem:[%s1 + $0x4d8] sm:$0xff]
  %v183 = vld [vmem:[%s1 + $0x4e0] sm:$0xff]
  %v184 = vld [vmem:[%s1 + $0x4e8] sm:$0xff]
  %v185 = vld [vmem:[%s1 + $0x4f0] sm:$0xff]
  %v186 = vld [vmem:[%s1 + $0x4f8] sm:$0xff]
  %v187 = vld [vmem:[%s1 + $0x500] sm:$0xff]
  %v188 = vld [vmem:[%s1 + $0x508] sm:$0xff]
  %v189 = vld [vmem:[%s1 + $0x510] sm:$0xff]
  %v190 = vld [vmem:[%s1 + $0x518] sm:$0xff]
  %v191 = vld [vmem:[%s1 + $0x520] sm:$0xff]
  %v192 = vld [vmem:[%s1 + $0x528] sm:$0xff]
  %v193 = vld [vmem:[%s1 + $0x530] sm:$0xff]
  %v194 = vld [vmem:[%s1 + $0x538] sm:$0xff]
  %v195 = vld [vmem:[%s1 + $0x540] sm:$0xff]
  %v196 = vld [vmem:[%s1 + $0x548] sm:$0xff]
  %v197 = vld [vmem:[%s1 + $0x550] sm:$0xff]
  %v198 = vld [vmem:[%s1 + $0x558] sm:$0xff]
  %v199 = vld [vmem:[%s1 + $0x560] sm:$0xff]
  %v200 = vld [vmem:[%s1 + $0x568] sm:$0xff]
  %v201 = vld [vmem:[%s1 + $0x570] sm:$0xff]
  %v202 = vld [vmem:[%s1 + $0x578] sm:$0xff]
  %v203 = vld [vmem:[%s1 + $0x580] sm:$0xff]
  %v204 = vld [vmem:[%s1 + $0x588] sm:$0xff]
  %v205 = vld [vmem:[%s1 + $0x590] sm:$0xff]
  %v206 = vld [vmem:[%s1 + $0x598] sm:$0xff]
  %v207 = vld [vmem:[%s1 + $0x5a0] sm:$0xff]
  %v208 = vld [vmem:[%s1 + $0x5a8] sm:$0xff]
  %v209 = vld [vmem:[%s1 + $0x5b0] sm:$0xff]
  %v210 = vld [vmem:[%s1 + $0x5b8] sm:$0xff]
  %v211 = vld [vmem:[%s1 + $0x5c0] sm:$0xff]
  %v212 = vld [vmem:[%s1 + $0x5c8] sm:$0xff]
  %v213 = vld [vmem:[%s1 + $0x5d0] sm:$0xff]
  %v214 = vld [vmem:[%s1 + $0x5d8] sm:$0xff]
  %v215 = vld [vmem:[%s1 + $0x5e0] sm:$0xff]
  %v216 = vld [vmem:[%s1 + $0x5e8] sm:$0xff]
  %v217 = vld [vmem:[%s1 + $0x5f0] sm:$0xff]
  %v218 = vld [vmem:[%s1 + $0x5f8] sm:$0xff]
  %v219 = vld [vmem:[%s1 + $0x600] sm:$0xff]
  %v220 = vld [vmem:[%s1 + $0x608] sm:$0xff]
  %v221 = vld [vmem:[%s1 + $0x610] sm:$0xff]
  %v222 = vld [vmem:[%s1 + $0x618] sm:$0xff]
  %v223 = vld [vmem:[%s2] sm:$0x1]
  %v225 = vperm.slane %v223, 0
  %vm227 = vcmask 261120
  %v229 = vsel %vm227, %v26, 0
  %231 = vmatpush.msra.mxu0 %v42
  %232 = vmatpush.msra.mxu0 %v41
  %233 = vmatpush.msra.mxu0 %v40
  %234 = vmatpush.msra.mxu0 %v39
  %235 = vmatpush.msra.mxu0 %v38
  %236 = vmatpush.msra.mxu0 %v37
  %237 = vmatpush.msra.mxu0 %v36
  %238 = vmatpush.msra.mxu0 %v35
  %239 = vmatpush.msra.mxu0 %v34
  %240 = vmatpush.msra.mxu0 %v33
  %241 = vmatpush.msra.mxu0 %v32
  %242 = vmatpush.msra.mxu0 %v31
  %243 = vmatpush.msra.mxu0 %v30
  %244 = vmatpush.msra.mxu0 %v29
  %245 = vmatpush.msra.mxu0 %v28
  %246 = vmatpush.msra.mxu0 %v27
  %247 = vmatmul.f32.gmra.mxu0 %v14
  %v248 = vpop.f32.mrf.mxu0
  %v249 = vadd.f32 %v225, %v248
  %250 = vdwg.mxu0
  %251 = vmatpush.msra.mxu0 %v58
  %252 = vmatpush.msra.mxu0 %v57
  %253 = vmatpush.msra.mxu0 %v56
  %254 = vmatpush.msra.mxu0 %v55
  %255 = vmatpush.msra.mxu0 %v54
  %256 = vmatpush.msra.mxu0 %v53
  %257 = vmatpush.msra.mxu0 %v52
  %258 = vmatpush.msra.mxu0 %v51
  %259 = vmatpush.msra.mxu0 %v50
  %260 = vmatpush.msra.mxu0 %v49
  %261 = vmatpush.msra.mxu0 %v48
  %262 = vmatpush.msra.mxu0 %v47
  %263 = vmatpush.msra.mxu0 %v46
  %264 = vmatpush.msra.mxu0 %v45
  %265 = vmatpush.msra.mxu0 %v44
  %266 = vmatpush.msra.mxu0 %v43
  %267 = vmatmul.f32.gmra.mxu0 %v15
  %v268 = vpop.f32.mrf.mxu0
  %v269 = vadd.f32 %v249, %v268
  %270 = vdwg.mxu0
  %271 = vmatpush.msra.mxu0 %v74
  %272 = vmatpush.msra.mxu0 %v73
  %273 = vmatpush.msra.mxu0 %v72
  %274 = vmatpush.msra.mxu0 %v71
  %275 = vmatpush.msra.mxu0 %v70
  %276 = vmatpush.msra.mxu0 %v69
  %277 = vmatpush.msra.mxu0 %v68
  %278 = vmatpush.msra.mxu0 %v67
  %279 = vmatpush.msra.mxu0 %v66
  %280 = vmatpush.msra.mxu0 %v65
  %281 = vmatpush.msra.mxu0 %v64
  %282 = vmatpush.msra.mxu0 %v63
  %283 = vmatpush.msra.mxu0 %v62
  %284 = vmatpush.msra.mxu0 %v61
  %285 = vmatpush.msra.mxu0 %v60
  %286 = vmatpush.msra.mxu0 %v59
  %287 = vmatmul.f32.gmra.mxu0 %v16
  %v288 = vpop.f32.mrf.mxu0
  %v289 = vadd.f32 %v269, %v288
  %290 = vdwg.mxu0
  %291 = vmatpush.msra.mxu0 %v90
  %292 = vmatpush.msra.mxu0 %v89
  %293 = vmatpush.msra.mxu0 %v88
  %294 = vmatpush.msra.mxu0 %v87
  %295 = vmatpush.msra.mxu0 %v86
  %296 = vmatpush.msra.mxu0 %v85
  %297 = vmatpush.msra.mxu0 %v84
  %298 = vmatpush.msra.mxu0 %v83
  %299 = vmatpush.msra.mxu0 %v82
  %300 = vmatpush.msra.mxu0 %v81
  %301 = vmatpush.msra.mxu0 %v80
  %302 = vmatpush.msra.mxu0 %v79
  %303 = vmatpush.msra.mxu0 %v78
  %304 = vmatpush.msra.mxu0 %v77
  %305 = vmatpush.msra.mxu0 %v76
  %306 = vmatpush.msra.mxu0 %v75
  %307 = vmatmul.f32.gmra.mxu0 %v17
  %v308 = vpop.f32.mrf.mxu0
  %v309 = vadd.f32 %v289, %v308
  %310 = vdwg.mxu0
  %311 = vmatpush.msra.mxu0 %v106
  %312 = vmatpush.msra.mxu0 %v105
  %313 = vmatpush.msra.mxu0 %v104
  %314 = vmatpush.msra.mxu0 %v103
  %315 = vmatpush.msra.mxu0 %v102
  %316 = vmatpush.msra.mxu0 %v101
  %317 = vmatpush.msra.mxu0 %v100
  %318 = vmatpush.msra.mxu0 %v99
  %319 = vmatpush.msra.mxu0 %v98
  %320 = vmatpush.msra.mxu0 %v97
  %321 = vmatpush.msra.mxu0 %v96
  %322 = vmatpush.msra.mxu0 %v95
  %323 = vmatpush.msra.mxu0 %v94
  %324 = vmatpush.msra.mxu0 %v93
  %325 = vmatpush.msra.mxu0 %v92
  %326 = vmatpush.msra.mxu0 %v91
  %327 = vmatmul.f32.gmra.mxu0 %v18
  %v328 = vpop.f32.mrf.mxu0
  %v329 = vadd.f32 %v309, %v328
  %330 = vdwg.mxu0
  %331 = vmatpush.msra.mxu0 %v122
  %332 = vmatpush.msra.mxu0 %v121
  %333 = vmatpush.msra.mxu0 %v120
  %334 = vmatpush.msra.mxu0 %v119
  %335 = vmatpush.msra.mxu0 %v118
  %336 = vmatpush.msra.mxu0 %v117
  %337 = vmatpush.msra.mxu0 %v116
  %338 = vmatpush.msra.mxu0 %v115
  %339 = vmatpush.msra.mxu0 %v114
  %340 = vmatpush.msra.mxu0 %v113
  %341 = vmatpush.msra.mxu0 %v112
  %342 = vmatpush.msra.mxu0 %v111
  %343 = vmatpush.msra.mxu0 %v110
  %344 = vmatpush.msra.mxu0 %v109
  %345 = vmatpush.msra.mxu0 %v108
  %346 = vmatpush.msra.mxu0 %v107
  %347 = vmatmul.f32.gmra.mxu0 %v19
  %v348 = vpop.f32.mrf.mxu0
  %v349 = vadd.f32 %v329, %v348
  %350 = vdwg.mxu0
  %351 = vmatpush.msra.mxu0 %v138
  %352 = vmatpush.msra.mxu0 %v137
  %353 = vmatpush.msra.mxu0 %v136
  %354 = vmatpush.msra.mxu0 %v135
  %355 = vmatpush.msra.mxu0 %v134
  %356 = vmatpush.msra.mxu0 %v133
  %357 = vmatpush.msra.mxu0 %v132
  %358 = vmatpush.msra.mxu0 %v131
  %359 = vmatpush.msra.mxu0 %v130
  %360 = vmatpush.msra.mxu0 %v129
  %361 = vmatpush.msra.mxu0 %v128
  %362 = vmatpush.msra.mxu0 %v127
  %363 = vmatpush.msra.mxu0 %v126
  %364 = vmatpush.msra.mxu0 %v125
  %365 = vmatpush.msra.mxu0 %v124
  %366 = vmatpush.msra.mxu0 %v123
  %367 = vmatmul.f32.gmra.mxu0 %v20
  %v368 = vpop.f32.mrf.mxu0
  %v369 = vadd.f32 %v349, %v368
  %370 = vdwg.mxu0
  %371 = vmatpush.msra.mxu0 %v154
  %372 = vmatpush.msra.mxu0 %v153
  %373 = vmatpush.msra.mxu0 %v152
  %374 = vmatpush.msra.mxu0 %v151
  %375 = vmatpush.msra.mxu0 %v150
  %376 = vmatpush.msra.mxu0 %v149
  %377 = vmatpush.msra.mxu0 %v148
  %378 = vmatpush.msra.mxu0 %v147
  %379 = vmatpush.msra.mxu0 %v146
  %380 = vmatpush.msra.mxu0 %v145
  %381 = vmatpush.msra.mxu0 %v144
  %382 = vmatpush.msra.mxu0 %v143
  %383 = vmatpush.msra.mxu0 %v142
  %384 = vmatpush.msra.mxu0 %v141
  %385 = vmatpush.msra.mxu0 %v140
  %386 = vmatpush.msra.mxu0 %v139
  %387 = vmatmul.f32.gmra.mxu0 %v21
  %v388 = vpop.f32.mrf.mxu0
  %v389 = vadd.f32 %v369, %v388
  %390 = vdwg.mxu0
  %391 = vmatpush.msra.mxu0 %v170
  %392 = vmatpush.msra.mxu0 %v169
  %393 = vmatpush.msra.mxu0 %v168
  %394 = vmatpush.msra.mxu0 %v167
  %395 = vmatpush.msra.mxu0 %v166
  %396 = vmatpush.msra.mxu0 %v165
  %397 = vmatpush.msra.mxu0 %v164
  %398 = vmatpush.msra.mxu0 %v163
  %399 = vmatpush.msra.mxu0 %v162
  %400 = vmatpush.msra.mxu0 %v161
  %401 = vmatpush.msra.mxu0 %v160
  %402 = vmatpush.msra.mxu0 %v159
  %403 = vmatpush.msra.mxu0 %v158
  %404 = vmatpush.msra.mxu0 %v157
  %405 = vmatpush.msra.mxu0 %v156
  %406 = vmatpush.msra.mxu0 %v155
  %407 = vmatmul.f32.gmra.mxu0 %v22
  %v408 = vpop.f32.mrf.mxu0
  %v409 = vadd.f32 %v389, %v408
  %410 = vdwg.mxu0
  %411 = vmatpush.msra.mxu0 %v186
  %412 = vmatpush.msra.mxu0 %v185
  %413 = vmatpush.msra.mxu0 %v184
  %414 = vmatpush.msra.mxu0 %v183
  %415 = vmatpush.msra.mxu0 %v182
  %416 = vmatpush.msra.mxu0 %v181
  %417 = vmatpush.msra.mxu0 %v180
  %418 = vmatpush.msra.mxu0 %v179
  %419 = vmatpush.msra.mxu0 %v178
  %420 = vmatpush.msra.mxu0 %v177
  %421 = vmatpush.msra.mxu0 %v176
  %422 = vmatpush.msra.mxu0 %v175
  %423 = vmatpush.msra.mxu0 %v174
  %424 = vmatpush.msra.mxu0 %v173
  %425 = vmatpush.msra.mxu0 %v172
  %426 = vmatpush.msra.mxu0 %v171
  %427 = vmatmul.f32.gmra.mxu0 %v23
  %v428 = vpop.f32.mrf.mxu0
  %v429 = vadd.f32 %v409, %v428
  %430 = vdwg.mxu0
  %431 = vmatpush.msra.mxu0 %v202
  %432 = vmatpush.msra.mxu0 %v201
  %433 = vmatpush.msra.mxu0 %v200
  %434 = vmatpush.msra.mxu0 %v199
  %435 = vmatpush.msra.mxu0 %v198
  %436 = vmatpush.msra.mxu0 %v197
  %437 = vmatpush.msra.mxu0 %v196
  %438 = vmatpush.msra.mxu0 %v195
  %439 = vmatpush.msra.mxu0 %v194
  %440 = vmatpush.msra.mxu0 %v193
  %441 = vmatpush.msra.mxu0 %v192
  %442 = vmatpush.msra.mxu0 %v191
  %443 = vmatpush.msra.mxu0 %v190
  %444 = vmatpush.msra.mxu0 %v189
  %445 = vmatpush.msra.mxu0 %v188
  %446 = vmatpush.msra.mxu0 %v187
  %447 = vmatmul.f32.gmra.mxu0 %v24
  %v448 = vpop.f32.mrf.mxu0
  %v449 = vadd.f32 %v429, %v448
  %450 = vdwg.mxu0
  %451 = vmatpush.msra.mxu0 %v218
  %452 = vmatpush.msra.mxu0 %v217
  %453 = vmatpush.msra.mxu0 %v216
  %454 = vmatpush.msra.mxu0 %v215
  %455 = vmatpush.msra.mxu0 %v214
  %456 = vmatpush.msra.mxu0 %v213
  %457 = vmatpush.msra.mxu0 %v212
  %458 = vmatpush.msra.mxu0 %v211
  %459 = vmatpush.msra.mxu0 %v210
  %460 = vmatpush.msra.mxu0 %v209
  %461 = vmatpush.msra.mxu0 %v208
  %462 = vmatpush.msra.mxu0 %v207
  %463 = vmatpush.msra.mxu0 %v206
  %464 = vmatpush.msra.mxu0 %v205
  %465 = vmatpush.msra.mxu0 %v204
  %466 = vmatpush.msra.mxu0 %v203
  %467 = vmatmul.f32.gmra.mxu0 %v25
  %v468 = vpop.f32.mrf.mxu0
  %v469 = vadd.f32 %v449, %v468
  %470 = vdwg.mxu0
  %471 = vmatpush.msra.mxu0 0.0
  %472 = vmatpush.msra.mxu0 0.0
  %473 = vmatpush.msra.mxu0 0.0
  %474 = vmatpush.msra.mxu0 0.0
  %475 = vmatpush.msra.mxu0 0.0
  %476 = vmatpush.msra.mxu0 0.0
  %477 = vmatpush.msra.mxu0 0.0
  %478 = vmatpush.msra.mxu0 0.0
  %479 = vmatpush.msra.mxu0 0.0
  %480 = vmatpush.msra.mxu0 0.0
  %481 = vmatpush.msra.mxu0 0.0
  %482 = vmatpush.msra.mxu0 0.0
  %483 = vmatpush.msra.mxu0 %v222
  %484 = vmatpush.msra.mxu0 %v221
  %485 = vmatpush.msra.mxu0 %v220
  %486 = vmatpush.msra.mxu0 %v219
  %487 = vmatmul.f32.gmra.mxu0 %v229
  %v488 = vpop.f32.mrf.mxu0
  %v489 = vadd.f32 %v469, %v488
  %490 = vdwg.mxu0
  %491 = vst [vmem:[%s3] sm:$0xff] %v489
  // Predicated region
  $region14: #{model_forward.5} parent=0 // pred_check
    _
  $region15: #{model_forward.5} parent=0 // pred_check_branch
    %493 = sbr.rel (0) target = $region17
  $region16: #{model_forward.5} parent=0 // pred_region
    _
  $region17: #{model_forward.5} parent=0 // pred_fallthru
    _
  // Predicated region
  $region18: #{model_forward.5} parent=0 // pred_check
    _
  $region19: #{model_forward.5} parent=0 // pred_check_branch
    %495 = sbr.rel (0) target = $region21
  $region20: #{model_forward.5} parent=0 // pred_region
    _
  $region21: #{model_forward.5} parent=0 // pred_fallthru
    _

// kernel: model_forward.4
$region0: #{model_forward.4}
  #allocation0 [shape = 'u32[]', space=smem, size = 0x4, offset = 0x4, fixed_abs, tag = 'smem constant byte address 0x4 - core index']
  #allocation1 [shape = 'u32[72,128]{1,0:T(1,128)}', space=vmem, size = 0x9000, scoped, tag = 'internal scratch']
  %s0 = inlined_call_operand.vmem [shape: f32[2,2,9,288], index: 0, kind: input, shape index: {}]
  %s1 = inlined_call_operand.vmem [shape: f32[1440,224], index: 1, kind: input, shape index: {}]
  %s2 = inlined_call_operand.vmem [shape: f32[1440,224], index: 2, kind: input, shape index: {}]
  %s3 = inlined_call_operand.vmem [shape: f32[1,224], index: 3, kind: input, shape index: {}]
  %s4 = inlined_call_operand.vmem [shape: f32[2,7,224], index: 4, kind: output, shape index: {}]
  %s5 = sld [smem:[#allocation0]]
  $region49: #{model_forward.4} parent=0
    _
  %s7 = ssub.s32 1, %s5
  %s8 = scalar_select 0, %s7, %s5
  loop: start=0, step=1, limit=4
  $region2: #{model_forward.4} parent=0 // loop_pre_header
    _
  $region3: #{model_forward.4} parent=0 // loop_header
    %s10 = sphi 0, %s14
    %p11 = scmp.ge.s32.totalorder %s10, 4
    %s20 = sphi 0, %s22
    %s23 = sphi 0, %s20
    %s24 = sphi 0, %s23
    %s40 = sphi 0, %s24
    %s44 = sphi 0, %s44
    %s46 = sphi 0, %s44
    %s47 = sphi 0, %s46
    %s61 = sphi 0, %s47
    %s65 = sphi 0, %s65
    %s67 = sphi 0, %s65
    %s68 = sphi 0, %s67
    %s82 = sphi 0, %s68
    %s86 = sphi 0, %s86
    %s88 = sphi 0, %s86
    %s89 = sphi 0, %s88
    %s103 = sphi 0, %s89
    %s109 = sphi 0, %s111
    %s112 = sphi 0, %s109
    %s113 = sphi 0, %s112
    %s129 = sphi 0, %s113
  $region4: #{model_forward.4} parent=0 // loop_header_branch
    %13 = sbr.rel (%p11) target = $region8
  $region5: #{model_forward.4} parent=0 // loop_body
    %s15 = ssub.s32 %s10, 1
    %s16 = ssub.s32 %s10, 2
    %s17 = sadd.s32 %s10, 1
    %s18 = ssub.s32 %s10, %s17
    %p19 = scmp.eq.s32.totalorder %s18, 0
    %s21 = sadd.s32 %s20, 1
    %s22 = scalar_select %p19, %s20, %s21
    %p25 = pneg %p19
    %p26 = scmp.eq.s32.totalorder %s10, 1
    %p27 = por %p25, %p26
    %p28 = scmp.ne.s32.totalorder %s20, %s23
    %p29 = scmp.eq.s32.totalorder %s10, 0
    %p30 = por %p28, %p29
    %p31 = scmp.ne.s32.totalorder %s20, %s23
    %p32 = scmp.eq.s32.totalorder %s15, 1
    %p33 = por %p31, %p32
    %p34 = scmp.ne.s32.totalorder %s23, %s24
    %p35 = scmp.eq.s32.totalorder %s15, 0
    %p36 = por %p34, %p35
    %p37 = scmp.ne.s32.totalorder %s23, %s24
    %p38 = scmp.eq.s32.totalorder %s16, 1
    %p39 = por %p37, %p38
    %p41 = scmp.ne.s32.totalorder %s24, %s40
    %p42 = scmp.eq.s32.totalorder %s16, 0
    %p43 = por %p41, %p42
    %s45 = sadd.s32 %s44, 1
    %p48 = scmp.eq.s32.totalorder %s10, 1
    %p49 = scmp.ne.s32.totalorder %s44, %s46
    %p50 = scmp.eq.s32.totalorder %s10, 0
    %p51 = por %p49, %p50
    %p52 = scmp.ne.s32.totalorder %s44, %s46
    %p53 = scmp.eq.s32.totalorder %s15, 1
    %p54 = por %p52, %p53
    %p55 = scmp.ne.s32.totalorder %s46, %s47
    %p56 = scmp.eq.s32.totalorder %s15, 0
    %p57 = por %p55, %p56
    %p58 = scmp.ne.s32.totalorder %s46, %s47
    %p59 = scmp.eq.s32.totalorder %s16, 1
    %p60 = por %p58, %p59
    %p62 = scmp.ne.s32.totalorder %s47, %s61
    %p63 = scmp.eq.s32.totalorder %s16, 0
    %p64 = por %p62, %p63
    %s66 = sadd.s32 %s65, 1
    %p69 = scmp.eq.s32.totalorder %s10, 1
    %p70 = scmp.ne.s32.totalorder %s65, %s67
    %p71 = scmp.eq.s32.totalorder %s10, 0
    %p72 = por %p70, %p71
    %p73 = scmp.ne.s32.totalorder %s65, %s67
    %p74 = scmp.eq.s32.totalorder %s15, 1
    %p75 = por %p73, %p74
    %p76 = scmp.ne.s32.totalorder %s67, %s68
    %p77 = scmp.eq.s32.totalorder %s15, 0
    %p78 = por %p76, %p77
    %p79 = scmp.ne.s32.totalorder %s67, %s68
    %p80 = scmp.eq.s32.totalorder %s16, 1
    %p81 = por %p79, %p80
    %p83 = scmp.ne.s32.totalorder %s68, %s82
    %p84 = scmp.eq.s32.totalorder %s16, 0
    %p85 = por %p83, %p84
    %s87 = sadd.s32 %s86, 1
    %p90 = scmp.eq.s32.totalorder %s10, 1
    %p91 = scmp.ne.s32.totalorder %s86, %s88
    %p92 = scmp.eq.s32.totalorder %s10, 0
    %p93 = por %p91, %p92
    %p94 = scmp.ne.s32.totalorder %s86, %s88
    %p95 = scmp.eq.s32.totalorder %s15, 1
    %p96 = por %p94, %p95
    %p97 = scmp.ne.s32.totalorder %s88, %s89
    %p98 = scmp.eq.s32.totalorder %s15, 0
    %p99 = por %p97, %p98
    %p100 = scmp.ne.s32.totalorder %s88, %s89
    %p101 = scmp.eq.s32.totalorder %s16, 1
    %p102 = por %p100, %p101
    %p104 = scmp.ne.s32.totalorder %s89, %s103
    %p105 = scmp.eq.s32.totalorder %s16, 0
    %p106 = por %p104, %p105
    %s107 = ssub.s32 %s10, %s17
    %p108 = scmp.eq.s32.totalorder %s107, 0
    %s110 = sadd.s32 %s109, 1
    %s111 = scalar_select %p108, %s109, %s110
    %p114 = pneg %p108
    %p115 = scmp.eq.s32.totalorder %s10, 1
    %p116 = por %p114, %p115
    %p117 = scmp.ne.s32.totalorder %s109, %s112
    %p118 = scmp.eq.s32.totalorder %s10, 0
    %p119 = por %p117, %p118
    %p120 = scmp.ne.s32.totalorder %s109, %s112
    %p121 = scmp.eq.s32.totalorder %s15, 1
    %p122 = por %p120, %p121
    %p123 = scmp.ne.s32.totalorder %s112, %s113
    %p124 = scmp.eq.s32.totalorder %s15, 0
    %p125 = por %p123, %p124
    %p126 = scmp.ne.s32.totalorder %s112, %s113
    %p127 = scmp.eq.s32.totalorder %s16, 1
    %p128 = por %p126, %p127
    %p130 = scmp.ne.s32.totalorder %s113, %s129
    %p131 = scmp.eq.s32.totalorder %s16, 0
    %p132 = por %p130, %p131
    %p133 = scmp.le.s32.totalorder 1, %s10
    %p134 = scmp.lt.s32.totalorder %s10, 3
    %p135 = pnand %p133, %p134
    %p136 = pneg %p135
    // Predicated region
    $region9: #{model_forward.4} parent=5 // pred_check
      _
    $region10: #{model_forward.4} parent=5 // pred_check_branch
      %138 = sbr.rel (%p135) target = $region12
    $region11: #{model_forward.4} parent=5 // pred_region
      %s139 = ssub.s32 %s10, 1
      // Predicated region
      $region13: #{model_forward.4} parent=11 // pred_check
        %p140 = pneg %p57
      $region14: #{model_forward.4} parent=11 // pred_check_branch
        %142 = sbr.rel (%p140) target = $region16
      $region15: #{model_forward.4} parent=11 // pred_region
        _
      $region16: #{model_forward.4} parent=11 // pred_fallthru
        _
      // Predicated region
      $region17: #{model_forward.4} parent=11 // pred_check
        %p143 = pneg %p78
      $region18: #{model_forward.4} parent=11 // pred_check_branch
        %145 = sbr.rel (%p143) target = $region20
      $region19: #{model_forward.4} parent=11 // pred_region
        _
      $region20: #{model_forward.4} parent=11 // pred_fallthru
        _
      // Predicated region
      $region21: #{model_forward.4} parent=11 // pred_check
        %p146 = pneg %p99
      $region22: #{model_forward.4} parent=11 // pred_check_branch
        %148 = sbr.rel (%p146) target = $region24
      $region23: #{model_forward.4} parent=11 // pred_region
        _
      $region24: #{model_forward.4} parent=11 // pred_fallthru
        _
    $region12: #{model_forward.4} parent=5 // pred_fallthru
      _
    %p149 = scmp.lt.s32.totalorder %s10, 2
    // Predicated region
    $region25: #{model_forward.4} parent=5 // pred_check
      %p150 = pneg %p149
    $region26: #{model_forward.4} parent=5 // pred_check_branch
      %152 = sbr.rel (%p150) target = $region28
    $region27: #{model_forward.4} parent=5 // pred_region
      // Predicated region
      $region29: #{model_forward.4} parent=27 // pred_check
        %p153 = pneg %p30
      $region30: #{model_forward.4} parent=27 // pred_check_branch
        %155 = sbr.rel (%p153) target = $region32
      $region31: #{model_forward.4} parent=27 // pred_region
        %p156 = scmp.lt.s32.totalorder %s10, 1
        %s157 = scalar_select %p156, %s10, 1
        %s158 = smul.addr %s157, 12
        %s159 = smul.addr %s158, 8
        %s160 = scalar_lea.vmem %s0, %s159
      $region32: #{model_forward.4} parent=27 // pred_fallthru
        _
    $region28: #{model_forward.4} parent=5 // pred_fallthru
      _
    %p161 = scmp.le.s32.totalorder 1, %s10
    %p162 = scmp.lt.s32.totalorder %s10, 3
    %p163 = pnand %p161, %p162
    %p164 = pneg %p163
    // Predicated region
    $region33: #{model_forward.4} parent=5 // pred_check
      _
    $region34: #{model_forward.4} parent=5 // pred_check_branch
      %166 = sbr.rel (%p163) target = $region36
    $region35: #{model_forward.4} parent=5 // pred_region
      %s167 = ssub.s32 %s10, 1
      %p168 = scmp.lt.s32.totalorder %s15, 1
      %s169 = scalar_select %p168, %s15, 1
      %s170 = smul.addr %s169, 12
      %s171 = smul.addr %s170, 8
      %s172 = scalar_lea.vmem %s0, %s171
      %p173 = pneg %p36
      %p174 = pneg %p33
      %p175 = pneg %p57
      %p176 = pneg %p54
      %p177 = pneg %p78
      %p178 = pneg %p75
      %p179 = pneg %p99
      %p180 = pneg %p96
      %p181 = pneg %p125
      %p182 = pneg %p122
      %p183 = scmp.lt.s32.totalorder %s15, 1
      %s184 = scalar_select %p183, %s15, 1
      %s185 = smul.addr %s184, 2
      %s186 = smul.addr %s185, 8
      %s187 = scalar_lea.vmem %s4, %s186
      %p188 = scmp.lt.s32.totalorder %s15, 1
      %s189 = scalar_select %p188, %s15, 1
      %s190 = smul.addr %s189, 12
      %s191 = smul.addr %s190, 8
      %s192 = scalar_lea.vmem %s0, %s191
      %p193 = scmp.lt.s32.totalorder %s15, 1
      %s194 = scalar_select %p193, %s15, 1
      %s195 = smul.addr %s194, 2
      %s196 = smul.addr %s195, 8
      %s197 = scalar_lea.vmem %s4, %s196
      %v198 = vld [vmem:[%s192] sm:$0x7f]
      %v199 = vld [vmem:[%s192 + $0x8] sm:$0x7f]
      %v200 = vld [vmem:[%s192 + $0x10] sm:$0x7f]
      %s201 = scalar_lea.vmem %s192, 48
      %v202 = vld [vmem:[%s201] sm:$0x7f]
      %v203 = vld [vmem:[%s201 + $0x8] sm:$0x7f]
      %v204 = vld [vmem:[%s201 + $0x10] sm:$0x7f]
      %v205 = vld [vmem:[%s192] sm:$0xfe]
      %v206 = vld [vmem:[%s192 + $0x8] sm:$0xfe]
      %v207 = vld [vmem:[%s192 + $0x10] sm:$0xfe]
      %v208 = vld [vmem:[%s201] sm:$0xfe]
      %v209 = vld [vmem:[%s201 + $0x8] sm:$0xfe]
      %v210 = vld [vmem:[%s201 + $0x10] sm:$0xfe]
      %v211 = vld [vmem:[%s192] sm:$0xfc]
      %v212 = vld [vmem:[%s192 + $0x8] sm:$0xfc]
      %v213 = vld [vmem:[%s192 + $0x10] sm:$0xfc]
      %v214 = vld [vmem:[%s192 + $0x18] sm:$0x1]
      %v215 = vld [vmem:[%s192 + $0x20] sm:$0x1]
      %v216 = vld [vmem:[%s192 + $0x28] sm:$0x1]
      %220 = vrot.lane.b32.xlu0 %v202, 32
      %v221 = vpop.permute.xlu0 %220
      %222 = vrot.lane.b32.xlu0 %v203, 32
      %v223 = vpop.permute.xlu0 %222
      %224 = vrot.lane.b32.xlu0 %v204, 32
      %v225 = vpop.permute.xlu0 %224
      %vm226 = vcmask 261120
      %v227 = vsel %vm226, %v221, %v223
      %v228 = vsel %vm226, %v223, %v225
      %v235 = vrot.slane %v205, 1
      %v236 = vrot.slane %v206, 1
      %v237 = vrot.slane %v207, 1
      %238 = vrot.lane.b32.xlu0 %v235, 64
      %v239 = vpop.permute.xlu0 %238
      %240 = vrot.lane.b32.xlu0 %v236, 64
      %v241 = vpop.permute.xlu0 %240
      %242 = vrot.lane.b32.xlu0 %v237, 64
      %v243 = vpop.permute.xlu0 %242
      %vm244 = vcmask 523264
      %v245 = vsel %vm244, %v239, %v241
      %v246 = vsel %vm244, %v241, %v243
      %v253 = vrot.slane %v208, 1
      %v254 = vrot.slane %v209, 1
      %v255 = vrot.slane %v210, 1
      %256 = vrot.lane.b32.xlu0 %v253, 96
      %v257 = vpop.permute.xlu0 %256
      %258 = vrot.lane.b32.xlu0 %v254, 96
      %v259 = vpop.permute.xlu0 %258
      %260 = vrot.lane.b32.xlu0 %v255, 96
      %v261 = vpop.permute.xlu0 %260
      %vm262 = vcmask 785408
      %v263 = vsel %vm262, %v257, %v259
      %v264 = vsel %vm262, %v259, %v261
      %vm274 = vcmask 1045504
      %v275 = vrot.slane %v211, 2
      %v276 = vrot.slane %v214, 2
      %v277 = vsel %vm274, %v275, %v276
      %v278 = vrot.slane %v212, 2
      %v279 = vrot.slane %v215, 2
      %v280 = vsel %vm274, %v278, %v279
      %v281 = vrot.slane %v213, 2
      %v282 = vrot.slane %v216, 2
      %v283 = vsel %vm274, %v281, %v282
      %v286 = vsel %vm226, %v200, %v221
      %v287 = vsel %vm244, %v228, %v239
      %v288 = vsel %vm262, %v246, %v257
      %v289 = vld [vmem:[%s201] sm:$0xfc]
      %v290 = vld [vmem:[%s201 + $0x8] sm:$0xfc]
      %v291 = vld [vmem:[%s201 + $0x10] sm:$0xfc]
      %v292 = vld [vmem:[%s201 + $0x18] sm:$0x1]
      %v293 = vld [vmem:[%s201 + $0x20] sm:$0x1]
      %v294 = vld [vmem:[%s201 + $0x28] sm:$0x1]
      %295 = vrot.lane.b32.xlu0 %v235, 32
      %v296 = vpop.permute.xlu0 %295
      %297 = vrot.lane.b32.xlu0 %v236, 32
      %v298 = vpop.permute.xlu0 %297
      %299 = vrot.lane.b32.xlu0 %v237, 32
      %v300 = vpop.permute.xlu0 %299
      %v301 = vsel %vm226, %v296, %v298
      %v302 = vsel %vm226, %v298, %v300
      %306 = vrot.lane.b32.xlu0 %v253, 64
      %v307 = vpop.permute.xlu0 %306
      %308 = vrot.lane.b32.xlu0 %v254, 64
      %v309 = vpop.permute.xlu0 %308
      %310 = vrot.lane.b32.xlu0 %v255, 64
      %v311 = vpop.permute.xlu0 %310
      %v312 = vsel %vm244, %v307, %v309
      %v313 = vsel %vm244, %v309, %v311
      %317 = vrot.lane.b32.xlu0 %v277, 96
      %v318 = vpop.permute.xlu0 %317
      %319 = vrot.lane.b32.xlu0 %v280, 96
      %v320 = vpop.permute.xlu0 %319
      %321 = vrot.lane.b32.xlu0 %v283, 96
      %v322 = vpop.permute.xlu0 %321
      %v323 = vsel %vm262, %v318, %v320
      %v324 = vsel %vm262, %v320, %v322
      %v334 = vrot.slane %v289, 2
      %v335 = vrot.slane %v292, 2
      %v336 = vsel %vm274, %v334, %v335
      %v337 = vrot.slane %v290, 2
      %v338 = vrot.slane %v293, 2
      %v339 = vsel %vm274, %v337, %v338
      %v340 = vrot.slane %v291, 2
      %v341 = vrot.slane %v294, 2
      %v342 = vsel %vm274, %v340, %v341
      %v345 = vsel %vm226, %v204, %v296
      %v346 = vsel %vm244, %v302, %v307
      %v347 = vsel %vm262, %v313, %v318
      %v348 = vld [vmem:[%s1] sm:$0xff]
      %v349 = vld [vmem:[%s1 + $0x8] sm:$0xff]
      %v350 = vld [vmem:[%s1 + $0x10] sm:$0xff]
      %v351 = vld [vmem:[%s1 + $0x18] sm:$0xff]
      %v352 = vld [vmem:[%s1 + $0x20] sm:$0xff]
      %v353 = vld [vmem:[%s1 + $0x28] sm:$0xff]
      %v354 = vld [vmem:[%s1 + $0x30] sm:$0xff]
      %v355 = vld [vmem:[%s1 + $0x38] sm:$0xff]
      %v356 = vld [vmem:[%s1 + $0x40] sm:$0xff]
      %v357 = vld [vmem:[%s1 + $0x48] sm:$0xff]
      %v358 = vld [vmem:[%s1 + $0x50] sm:$0xff]
      %v359 = vld [vmem:[%s1 + $0x58] sm:$0xff]
      %v360 = vld [vmem:[%s1 + $0x60] sm:$0xff]
      %v361 = vld [vmem:[%s1 + $0x68] sm:$0xff]
      %v362 = vld [vmem:[%s1 + $0x70] sm:$0xff]
      %v363 = vld [vmem:[%s1 + $0x78] sm:$0xff]
      %v364 = vld [vmem:[%s1 + $0x80] sm:$0xff]
      %v365 = vld [vmem:[%s1 + $0x88] sm:$0xff]
      %v366 = vld [vmem:[%s1 + $0x90] sm:$0xff]
      %v367 = vld [vmem:[%s1 + $0x98] sm:$0xff]
      %v368 = vld [vmem:[%s1 + $0xa0] sm:$0xff]
      %v369 = vld [vmem:[%s1 + $0xa8] sm:$0xff]
      %v370 = vld [vmem:[%s1 + $0xb0] sm:$0xff]
      %v371 = vld [vmem:[%s1 + $0xb8] sm:$0xff]
      %v372 = vld [vmem:[%s1 + $0xc0] sm:$0xff]
      %v373 = vld [vmem:[%s1 + $0xc8] sm:$0xff]
      %v374 = vld [vmem:[%s1 + $0xd0] sm:$0xff]
      %v375 = vld [vmem:[%s1 + $0xd8] sm:$0xff]
      %v376 = vld [vmem:[%s1 + $0xe0] sm:$0xff]
      %v377 = vld [vmem:[%s1 + $0xe8] sm:$0xff]
      %v378 = vld [vmem:[%s1 + $0xf0] sm:$0xff]
      %v379 = vld [vmem:[%s1 + $0xf8] sm:$0xff]
      %v380 = vld [vmem:[%s1 + $0x100] sm:$0xff]
      %v381 = vld [vmem:[%s1 + $0x108] sm:$0xff]
      %v382 = vld [vmem:[%s1 + $0x110] sm:$0xff]
      %v383 = vld [vmem:[%s1 + $0x118] sm:$0xff]
      %v384 = vld [vmem:[%s1 + $0x120] sm:$0xff]
      %v385 = vld [vmem:[%s1 + $0x128] sm:$0xff]
      %v386 = vld [vmem:[%s1 + $0x130] sm:$0xff]
      %v387 = vld [vmem:[%s1 + $0x138] sm:$0xff]
      %v388 = vld [vmem:[%s1 + $0x140] sm:$0xff]
      %v389 = vld [vmem:[%s1 + $0x148] sm:$0xff]
      %v390 = vld [vmem:[%s1 + $0x150] sm:$0xff]
      %v391 = vld [vmem:[%s1 + $0x158] sm:$0xff]
      %v392 = vld [vmem:[%s1 + $0x160] sm:$0xff]
      %v393 = vld [vmem:[%s1 + $0x168] sm:$0xff]
      %v394 = vld [vmem:[%s1 + $0x170] sm:$0xff]
      %v395 = vld [vmem:[%s1 + $0x178] sm:$0xff]
      %v396 = vld [vmem:[%s1 + $0x180] sm:$0xff]
      %v397 = vld [vmem:[%s1 + $0x188] sm:$0xff]
      %v398 = vld [vmem:[%s1 + $0x190] sm:$0xff]
      %v399 = vld [vmem:[%s1 + $0x198] sm:$0xff]
      %v400 = vld [vmem:[%s1 + $0x1a0] sm:$0xff]
      %v401 = vld [vmem:[%s1 + $0x1a8] sm:$0xff]
      %v402 = vld [vmem:[%s1 + $0x1b0] sm:$0xff]
      %v403 = vld [vmem:[%s1 + $0x1b8] sm:$0xff]
      %v404 = vld [vmem:[%s1 + $0x1c0] sm:$0xff]
      %v405 = vld [vmem:[%s1 + $0x1c8] sm:$0xff]
      %v406 = vld [vmem:[%s1 + $0x1d0] sm:$0xff]
      %v407 = vld [vmem:[%s1 + $0x1d8] sm:$0xff]
      %v408 = vld [vmem:[%s1 + $0x1e0] sm:$0xff]
      %v409 = vld [vmem:[%s1 + $0x1e8] sm:$0xff]
      %v410 = vld [vmem:[%s1 + $0x1f0] sm:$0xff]
      %v411 = vld [vmem:[%s1 + $0x1f8] sm:$0xff]
      %v412 = vld [vmem:[%s1 + $0x200] sm:$0xff]
      %v413 = vld [vmem:[%s1 + $0x208] sm:$0xff]
      %v414 = vld [vmem:[%s1 + $0x210] sm:$0xff]
      %v415 = vld [vmem:[%s1 + $0x218] sm:$0xff]
      %v416 = vld [vmem:[%s1 + $0x220] sm:$0xff]
      %v417 = vld [vmem:[%s1 + $0x228] sm:$0xff]
      %v418 = vld [vmem:[%s1 + $0x230] sm:$0xff]
      %v419 = vld [vmem:[%s1 + $0x238] sm:$0xff]
      %v420 = vld [vmem:[%s1 + $0x240] sm:$0xff]
      %v421 = vld [vmem:[%s1 + $0x248] sm:$0xff]
      %v422 = vld [vmem:[%s1 + $0x250] sm:$0xff]
      %v423 = vld [vmem:[%s1 + $0x258] sm:$0xff]
      %v424 = vld [vmem:[%s1 + $0x260] sm:$0xff]
      %v425 = vld [vmem:[%s1 + $0x268] sm:$0xff]
      %v426 = vld [vmem:[%s1 + $0x270] sm:$0xff]
      %v427 = vld [vmem:[%s1 + $0x278] sm:$0xff]
      %v428 = vld [vmem:[%s1 + $0x280] sm:$0xff]
      %v429 = vld [vmem:[%s1 + $0x288] sm:$0xff]
      %v430 = vld [vmem:[%s1 + $0x290] sm:$0xff]
      %v431 = vld [vmem:[%s1 + $0x298] sm:$0xff]
      %v432 = vld [vmem:[%s1 + $0x2a0] sm:$0xff]
      %v433 = vld [vmem:[%s1 + $0x2a8] sm:$0xff]
      %v434 = vld [vmem:[%s1 + $0x2b0] sm:$0xff]
      %v435 = vld [vmem:[%s1 + $0x2b8] sm:$0xff]
      %v436 = vld [vmem:[%s1 + $0x2c0] sm:$0xff]
      %v437 = vld [vmem:[%s1 + $0x2c8] sm:$0xff]
      %v438 = vld [vmem:[%s1 + $0x2d0] sm:$0xff]
      %v439 = vld [vmem:[%s1 + $0x2d8] sm:$0xff]
      %v440 = vld [vmem:[%s1 + $0x2e0] sm:$0xff]
      %v441 = vld [vmem:[%s1 + $0x2e8] sm:$0xff]
      %v442 = vld [vmem:[%s1 + $0x2f0] sm:$0xff]
      %v443 = vld [vmem:[%s1 + $0x2f8] sm:$0xff]
      %v444 = vld [vmem:[%s1 + $0x300] sm:$0xff]
      %v445 = vld [vmem:[%s1 + $0x308] sm:$0xff]
      %v446 = vld [vmem:[%s1 + $0x310] sm:$0xff]
      %v447 = vld [vmem:[%s1 + $0x318] sm:$0xff]
      %v448 = vld [vmem:[%s1 + $0x320] sm:$0xff]
      %v449 = vld [vmem:[%s1 + $0x328] sm:$0xff]
      %v450 = vld [vmem:[%s1 + $0x330] sm:$0xff]
      %v451 = vld [vmem:[%s1 + $0x338] sm:$0xff]
      %v452 = vld [vmem:[%s1 + $0x340] sm:$0xff]
      %v453 = vld [vmem:[%s1 + $0x348] sm:$0xff]
      %v454 = vld [vmem:[%s1 + $0x350] sm:$0xff]
      %v455 = vld [vmem:[%s1 + $0x358] sm:$0xff]
      %v456 = vld [vmem:[%s1 + $0x360] sm:$0xff]
      %v457 = vld [vmem:[%s1 + $0x368] sm:$0xff]
      %v458 = vld [vmem:[%s1 + $0x370] sm:$0xff]
      %v459 = vld [vmem:[%s1 + $0x378] sm:$0xff]
      %v460 = vld [vmem:[%s1 + $0x380] sm:$0xff]
      %v461 = vld [vmem:[%s1 + $0x388] sm:$0xff]
      %v462 = vld [vmem:[%s1 + $0x390] sm:$0xff]
      %v463 = vld [vmem:[%s1 + $0x398] sm:$0xff]
      %v464 = vld [vmem:[%s1 + $0x3a0] sm:$0xff]
      %v465 = vld [vmem:[%s1 + $0x3a8] sm:$0xff]
      %v466 = vld [vmem:[%s1 + $0x3b0] sm:$0xff]
      %v467 = vld [vmem:[%s1 + $0x3b8] sm:$0xff]
      %v468 = vld [vmem:[%s1 + $0x3c0] sm:$0xff]
      %v469 = vld [vmem:[%s1 + $0x3c8] sm:$0xff]
      %v470 = vld [vmem:[%s1 + $0x3d0] sm:$0xff]
      %v471 = vld [vmem:[%s1 + $0x3d8] sm:$0xff]
      %v472 = vld [vmem:[%s1 + $0x3e0] sm:$0xff]
      %v473 = vld [vmem:[%s1 + $0x3e8] sm:$0xff]
      %v474 = vld [vmem:[%s1 + $0x3f0] sm:$0xff]
      %v475 = vld [vmem:[%s1 + $0x3f8] sm:$0xff]
      %v476 = vld [vmem:[%s1 + $0x400] sm:$0xff]
      %v477 = vld [vmem:[%s1 + $0x408] sm:$0xff]
      %v478 = vld [vmem:[%s1 + $0x410] sm:$0xff]
      %v479 = vld [vmem:[%s1 + $0x418] sm:$0xff]
      %v480 = vld [vmem:[%s1 + $0x420] sm:$0xff]
      %v481 = vld [vmem:[%s1 + $0x428] sm:$0xff]
      %v482 = vld [vmem:[%s1 + $0x430] sm:$0xff]
      %v483 = vld [vmem:[%s1 + $0x438] sm:$0xff]
      %v484 = vld [vmem:[%s1 + $0x440] sm:$0xff]
      %v485 = vld [vmem:[%s1 + $0x448] sm:$0xff]
      %v486 = vld [vmem:[%s1 + $0x450] sm:$0xff]
      %v487 = vld [vmem:[%s1 + $0x458] sm:$0xff]
      %v488 = vld [vmem:[%s1 + $0x460] sm:$0xff]
      %v489 = vld [vmem:[%s1 + $0x468] sm:$0xff]
      %v490 = vld [vmem:[%s1 + $0x470] sm:$0xff]
      %v491 = vld [vmem:[%s1 + $0x478] sm:$0xff]
      %v492 = vld [vmem:[%s1 + $0x480] sm:$0xff]
      %v493 = vld [vmem:[%s1 + $0x488] sm:$0xff]
      %v494 = vld [vmem:[%s1 + $0x490] sm:$0xff]
      %v495 = vld [vmem:[%s1 + $0x498] sm:$0xff]
      %v496 = vld [vmem:[%s1 + $0x4a0] sm:$0xff]
      %v497 = vld [vmem:[%s1 + $0x4a8] sm:$0xff]
      %v498 = vld [vmem:[%s1 + $0x4b0] sm:$0xff]
      %v499 = vld [vmem:[%s1 + $0x4b8] sm:$0xff]
      %v500 = vld [vmem:[%s1 + $0x4c0] sm:$0xff]
      %v501 = vld [vmem:[%s1 + $0x4c8] sm:$0xff]
      %v502 = vld [vmem:[%s1 + $0x4d0] sm:$0xff]
      %v503 = vld [vmem:[%s1 + $0x4d8] sm:$0xff]
      %v504 = vld [vmem:[%s1 + $0x4e0] sm:$0xff]
      %v505 = vld [vmem:[%s1 + $0x4e8] sm:$0xff]
      %v506 = vld [vmem:[%s1 + $0x4f0] sm:$0xff]
      %v507 = vld [vmem:[%s1 + $0x4f8] sm:$0xff]
      %v508 = vld [vmem:[%s1 + $0x500] sm:$0xff]
      %v509 = vld [vmem:[%s1 + $0x508] sm:$0xff]
      %v510 = vld [vmem:[%s1 + $0x510] sm:$0xff]
      %v511 = vld [vmem:[%s1 + $0x518] sm:$0xff]
      %v512 = vld [vmem:[%s1 + $0x520] sm:$0xff]
      %v513 = vld [vmem:[%s1 + $0x528] sm:$0xff]
      %v514 = vld [vmem:[%s1 + $0x530] sm:$0xff]
      %v515 = vld [vmem:[%s1 + $0x538] sm:$0xff]
      %v516 = vld [vmem:[%s1 + $0x540] sm:$0xff]
      %v517 = vld [vmem:[%s1 + $0x548] sm:$0xff]
      %v518 = vld [vmem:[%s1 + $0x550] sm:$0xff]
      %v519 = vld [vmem:[%s1 + $0x558] sm:$0xff]
      %v520 = vld [vmem:[%s1 + $0x560] sm:$0xff]
      %v521 = vld [vmem:[%s1 + $0x568] sm:$0xff]
      %v522 = vld [vmem:[%s1 + $0x570] sm:$0xff]
      %v523 = vld [vmem:[%s1 + $0x578] sm:$0xff]
      %v524 = vld [vmem:[%s1 + $0x580] sm:$0xff]
      %v525 = vld [vmem:[%s1 + $0x588] sm:$0xff]
      %v526 = vld [vmem:[%s1 + $0x590] sm:$0xff]
      %v527 = vld [vmem:[%s1 + $0x598] sm:$0xff]
      %v528 = vld [vmem:[%s1 + $0x5a0] sm:$0xff]
      %v529 = vld [vmem:[%s1 + $0x5a8] sm:$0xff]
      %v530 = vld [vmem:[%s1 + $0x5b0] sm:$0xff]
      %v531 = vld [vmem:[%s1 + $0x5b8] sm:$0xff]
      %v532 = vld [vmem:[%s1 + $0x5c0] sm:$0xff]
      %v533 = vld [vmem:[%s1 + $0x5c8] sm:$0xff]
      %v534 = vld [vmem:[%s1 + $0x5d0] sm:$0xff]
      %v535 = vld [vmem:[%s1 + $0x5d8] sm:$0xff]
      %v536 = vld [vmem:[%s1 + $0x5e0] sm:$0xff]
      %v537 = vld [vmem:[%s1 + $0x5e8] sm:$0xff]
      %v538 = vld [vmem:[%s1 + $0x5f0] sm:$0xff]
      %v539 = vld [vmem:[%s1 + $0x5f8] sm:$0xff]
      %v540 = vld [vmem:[%s1 + $0x600] sm:$0xff]
      %v541 = vld [vmem:[%s1 + $0x608] sm:$0xff]
      %v542 = vld [vmem:[%s1 + $0x610] sm:$0xff]
      %v543 = vld [vmem:[%s1 + $0x618] sm:$0xff]
      %v544 = vld [vmem:[%s1 + $0x620] sm:$0xff]
      %v545 = vld [vmem:[%s1 + $0x628] sm:$0xff]
      %v546 = vld [vmem:[%s1 + $0x630] sm:$0xff]
      %v547 = vld [vmem:[%s1 + $0x638] sm:$0xff]
      %v548 = vld [vmem:[%s1 + $0x640] sm:$0xff]
      %v549 = vld [vmem:[%s1 + $0x648] sm:$0xff]
      %v550 = vld [vmem:[%s1 + $0x650] sm:$0xff]
      %v551 = vld [vmem:[%s1 + $0x658] sm:$0xff]
      %v552 = vld [vmem:[%s1 + $0x660] sm:$0xff]
      %v553 = vld [vmem:[%s1 + $0x668] sm:$0xff]
      %v554 = vld [vmem:[%s1 + $0x670] sm:$0xff]
      %v555 = vld [vmem:[%s1 + $0x678] sm:$0xff]
      %v556 = vld [vmem:[%s1 + $0x680] sm:$0xff]
      %v557 = vld [vmem:[%s1 + $0x688] sm:$0xff]
      %v558 = vld [vmem:[%s1 + $0x690] sm:$0xff]
      %v559 = vld [vmem:[%s1 + $0x698] sm:$0xff]
      %v560 = vld [vmem:[%s1 + $0x6a0] sm:$0xff]
      %v561 = vld [vmem:[%s1 + $0x6a8] sm:$0xff]
      %v562 = vld [vmem:[%s1 + $0x6b0] sm:$0xff]
      %v563 = vld [vmem:[%s1 + $0x6b8] sm:$0xff]
      %v564 = vld [vmem:[%s1 + $0x6c0] sm:$0xff]
      %v565 = vld [vmem:[%s1 + $0x6c8] sm:$0xff]
      %v566 = vld [vmem:[%s1 + $0x6d0] sm:$0xff]
      %v567 = vld [vmem:[%s1 + $0x6d8] sm:$0xff]
      %v568 = vld [vmem:[%s1 + $0x6e0] sm:$0xff]
      %v569 = vld [vmem:[%s1 + $0x6e8] sm:$0xff]
      %v570 = vld [vmem:[%s1 + $0x6f0] sm:$0xff]
      %v571 = vld [vmem:[%s1 + $0x6f8] sm:$0xff]
      %v572 = vld [vmem:[%s1 + $0x700] sm:$0xff]
      %v573 = vld [vmem:[%s1 + $0x708] sm:$0xff]
      %v574 = vld [vmem:[%s1 + $0x710] sm:$0xff]
      %v575 = vld [vmem:[%s1 + $0x718] sm:$0xff]
      %v576 = vld [vmem:[%s1 + $0x720] sm:$0xff]
      %v577 = vld [vmem:[%s1 + $0x728] sm:$0xff]
      %v578 = vld [vmem:[%s1 + $0x730] sm:$0xff]
      %v579 = vld [vmem:[%s1 + $0x738] sm:$0xff]
      %v580 = vld [vmem:[%s1 + $0x740] sm:$0xff]
      %v581 = vld [vmem:[%s1 + $0x748] sm:$0xff]
      %v582 = vld [vmem:[%s1 + $0x750] sm:$0xff]
      %v583 = vld [vmem:[%s1 + $0x758] sm:$0xff]
      %v584 = vld [vmem:[%s1 + $0x760] sm:$0xff]
      %v585 = vld [vmem:[%s1 + $0x768] sm:$0xff]
      %v586 = vld [vmem:[%s1 + $0x770] sm:$0xff]
      %v587 = vld [vmem:[%s1 + $0x778] sm:$0xff]
      %v588 = vld [vmem:[%s1 + $0x780] sm:$0xff]
      %v589 = vld [vmem:[%s1 + $0x788] sm:$0xff]
      %v590 = vld [vmem:[%s1 + $0x790] sm:$0xff]
      %v591 = vld [vmem:[%s1 + $0x798] sm:$0xff]
      %v592 = vld [vmem:[%s1 + $0x7a0] sm:$0xff]
      %v593 = vld [vmem:[%s1 + $0x7a8] sm:$0xff]
      %v594 = vld [vmem:[%s1 + $0x7b0] sm:$0xff]
      %v595 = vld [vmem:[%s1 + $0x7b8] sm:$0xff]
      %v596 = vld [vmem:[%s1 + $0x7c0] sm:$0xff]
      %v597 = vld [vmem:[%s1 + $0x7c8] sm:$0xff]
      %v598 = vld [vmem:[%s1 + $0x7d0] sm:$0xff]
      %v599 = vld [vmem:[%s1 + $0x7d8] sm:$0xff]
      %v600 = vld [vmem:[%s1 + $0x7e0] sm:$0xff]
      %v601 = vld [vmem:[%s1 + $0x7e8] sm:$0xff]
      %v602 = vld [vmem:[%s1 + $0x7f0] sm:$0xff]
      %v603 = vld [vmem:[%s1 + $0x7f8] sm:$0xff]
      %v604 = vld [vmem:[%s1 + $0x800] sm:$0xff]
      %v605 = vld [vmem:[%s1 + $0x808] sm:$0xff]
      %v606 = vld [vmem:[%s1 + $0x810] sm:$0xff]
      %v607 = vld [vmem:[%s1 + $0x818] sm:$0xff]
      %v608 = vld [vmem:[%s1 + $0x820] sm:$0xff]
      %v609 = vld [vmem:[%s1 + $0x828] sm:$0xff]
      %v610 = vld [vmem:[%s1 + $0x830] sm:$0xff]
      %v611 = vld [vmem:[%s1 + $0x838] sm:$0xff]
      %v612 = vld [vmem:[%s1 + $0x840] sm:$0xff]
      %v613 = vld [vmem:[%s1 + $0x848] sm:$0xff]
      %v614 = vld [vmem:[%s1 + $0x850] sm:$0xff]
      %v615 = vld [vmem:[%s1 + $0x858] sm:$0xff]
      %v616 = vld [vmem:[%s1 + $0x860] sm:$0xff]
      %v617 = vld [vmem:[%s1 + $0x868] sm:$0xff]
      %v618 = vld [vmem:[%s1 + $0x870] sm:$0xff]
      %v619 = vld [vmem:[%s1 + $0x878] sm:$0xff]
      %v620 = vld [vmem:[%s1 + $0x880] sm:$0xff]
      %v621 = vld [vmem:[%s1 + $0x888] sm:$0xff]
      %v622 = vld [vmem:[%s1 + $0x890] sm:$0xff]
      %v623 = vld [vmem:[%s1 + $0x898] sm:$0xff]
      %v624 = vld [vmem:[%s1 + $0x8a0] sm:$0xff]
      %v625 = vld [vmem:[%s1 + $0x8a8] sm:$0xff]
      %v626 = vld [vmem:[%s1 + $0x8b0] sm:$0xff]
      %v627 = vld [vmem:[%s1 + $0x8b8] sm:$0xff]
      %v628 = vld [vmem:[%s1 + $0x8c0] sm:$0xff]
      %v629 = vld [vmem:[%s1 + $0x8c8] sm:$0xff]
      %v630 = vld [vmem:[%s1 + $0x8d0] sm:$0xff]
      %v631 = vld [vmem:[%s1 + $0x8d8] sm:$0xff]
      %v632 = vld [vmem:[%s1 + $0x8e0] sm:$0xff]
      %v633 = vld [vmem:[%s1 + $0x8e8] sm:$0xff]
      %v634 = vld [vmem:[%s1 + $0x8f0] sm:$0xff]
      %v635 = vld [vmem:[%s1 + $0x8f8] sm:$0xff]
      %v636 = vld [vmem:[%s1 + $0x900] sm:$0xff]
      %v637 = vld [vmem:[%s1 + $0x908] sm:$0xff]
      %v638 = vld [vmem:[%s1 + $0x910] sm:$0xff]
      %v639 = vld [vmem:[%s1 + $0x918] sm:$0xff]
      %v640 = vld [vmem:[%s1 + $0x920] sm:$0xff]
      %v641 = vld [vmem:[%s1 + $0x928] sm:$0xff]
      %v642 = vld [vmem:[%s1 + $0x930] sm:$0xff]
      %v643 = vld [vmem:[%s1 + $0x938] sm:$0xff]
      %v644 = vld [vmem:[%s1 + $0x940] sm:$0xff]
      %v645 = vld [vmem:[%s1 + $0x948] sm:$0xff]
      %v646 = vld [vmem:[%s1 + $0x950] sm:$0xff]
      %v647 = vld [vmem:[%s1 + $0x958] sm:$0xff]
      %v648 = vld [vmem:[%s1 + $0x960] sm:$0xff]
      %v649 = vld [vmem:[%s1 + $0x968] sm:$0xff]
      %v650 = vld [vmem:[%s1 + $0x970] sm:$0xff]
      %v651 = vld [vmem:[%s1 + $0x978] sm:$0xff]
      %v652 = vld [vmem:[%s1 + $0x980] sm:$0xff]
      %v653 = vld [vmem:[%s1 + $0x988] sm:$0xff]
      %v654 = vld [vmem:[%s1 + $0x990] sm:$0xff]
      %v655 = vld [vmem:[%s1 + $0x998] sm:$0xff]
      %v656 = vld [vmem:[%s1 + $0x9a0] sm:$0xff]
      %v657 = vld [vmem:[%s1 + $0x9a8] sm:$0xff]
      %v658 = vld [vmem:[%s1 + $0x9b0] sm:$0xff]
      %v659 = vld [vmem:[%s1 + $0x9b8] sm:$0xff]
      %v660 = vld [vmem:[%s1 + $0x9c0] sm:$0xff]
      %v661 = vld [vmem:[%s1 + $0x9c8] sm:$0xff]
      %v662 = vld [vmem:[%s1 + $0x9d0] sm:$0xff]
      %v663 = vld [vmem:[%s1 + $0x9d8] sm:$0xff]
      %v664 = vld [vmem:[%s1 + $0x9e0] sm:$0xff]
      %v665 = vld [vmem:[%s1 + $0x9e8] sm:$0xff]
      %v666 = vld [vmem:[%s1 + $0x9f0] sm:$0xff]
      %v667 = vld [vmem:[%s1 + $0x9f8] sm:$0xff]
      %v668 = vld [vmem:[%s1 + $0xa00] sm:$0xff]
      %v669 = vld [vmem:[%s1 + $0xa08] sm:$0xff]
      %v670 = vld [vmem:[%s1 + $0xa10] sm:$0xff]
      %v671 = vld [vmem:[%s1 + $0xa18] sm:$0xff]
      %v672 = vld [vmem:[%s1 + $0xa20] sm:$0xff]
      %v673 = vld [vmem:[%s1 + $0xa28] sm:$0xff]
      %v674 = vld [vmem:[%s1 + $0xa30] sm:$0xff]
      %v675 = vld [vmem:[%s1 + $0xa38] sm:$0xff]
      %v676 = vld [vmem:[%s1 + $0xa40] sm:$0xff]
      %v677 = vld [vmem:[%s1 + $0xa48] sm:$0xff]
      %v678 = vld [vmem:[%s1 + $0xa50] sm:$0xff]
      %v679 = vld [vmem:[%s1 + $0xa58] sm:$0xff]
      %v680 = vld [vmem:[%s1 + $0xa60] sm:$0xff]
      %v681 = vld [vmem:[%s1 + $0xa68] sm:$0xff]
      %v682 = vld [vmem:[%s1 + $0xa70] sm:$0xff]
      %v683 = vld [vmem:[%s1 + $0xa78] sm:$0xff]
      %v684 = vld [vmem:[%s1 + $0xa80] sm:$0xff]
      %v685 = vld [vmem:[%s1 + $0xa88] sm:$0xff]
      %v686 = vld [vmem:[%s1 + $0xa90] sm:$0xff]
      %v687 = vld [vmem:[%s1 + $0xa98] sm:$0xff]
      %v688 = vld [vmem:[%s1 + $0xaa0] sm:$0xff]
      %v689 = vld [vmem:[%s1 + $0xaa8] sm:$0xff]
      %v690 = vld [vmem:[%s1 + $0xab0] sm:$0xff]
      %v691 = vld [vmem:[%s1 + $0xab8] sm:$0xff]
      %v692 = vld [vmem:[%s1 + $0xac0] sm:$0xff]
      %v693 = vld [vmem:[%s1 + $0xac8] sm:$0xff]
      %v694 = vld [vmem:[%s1 + $0xad0] sm:$0xff]
      %v695 = vld [vmem:[%s1 + $0xad8] sm:$0xff]
      %v696 = vld [vmem:[%s1 + $0xae0] sm:$0xff]
      %v697 = vld [vmem:[%s1 + $0xae8] sm:$0xff]
      %v698 = vld [vmem:[%s1 + $0xaf0] sm:$0xff]
      %v699 = vld [vmem:[%s1 + $0xaf8] sm:$0xff]
      %v700 = vld [vmem:[%s1 + $0xb00] sm:$0xff]
      %v701 = vld [vmem:[%s1 + $0xb08] sm:$0xff]
      %v702 = vld [vmem:[%s1 + $0xb10] sm:$0xff]
      %v703 = vld [vmem:[%s1 + $0xb18] sm:$0xff]
      %v704 = vld [vmem:[%s1 + $0xb20] sm:$0xff]
      %v705 = vld [vmem:[%s1 + $0xb28] sm:$0xff]
      %v706 = vld [vmem:[%s1 + $0xb30] sm:$0xff]
      %v707 = vld [vmem:[%s1 + $0xb38] sm:$0xff]
      %v708 = vld [vmem:[%s2] sm:$0xff]
      %v709 = vld [vmem:[%s2 + $0x8] sm:$0xff]
      %v710 = vld [vmem:[%s2 + $0x10] sm:$0xff]
      %v711 = vld [vmem:[%s2 + $0x18] sm:$0xff]
      %v712 = vld [vmem:[%s2 + $0x20] sm:$0xff]
      %v713 = vld [vmem:[%s2 + $0x28] sm:$0xff]
      %v714 = vld [vmem:[%s2 + $0x30] sm:$0xff]
      %v715 = vld [vmem:[%s2 + $0x38] sm:$0xff]
      %v716 = vld [vmem:[%s2 + $0x40] sm:$0xff]
      %v717 = vld [vmem:[%s2 + $0x48] sm:$0xff]
      %v718 = vld [vmem:[%s2 + $0x50] sm:$0xff]
      %v719 = vld [vmem:[%s2 + $0x58] sm:$0xff]
      %v720 = vld [vmem:[%s2 + $0x60] sm:$0xff]
      %v721 = vld [vmem:[%s2 + $0x68] sm:$0xff]
      %v722 = vld [vmem:[%s2 + $0x70] sm:$0xff]
      %v723 = vld [vmem:[%s2 + $0x78] sm:$0xff]
      %v724 = vld [vmem:[%s2 + $0x80] sm:$0xff]
      %v725 = vld [vmem:[%s2 + $0x88] sm:$0xff]
      %v726 = vld [vmem:[%s2 + $0x90] sm:$0xff]
      %v727 = vld [vmem:[%s2 + $0x98] sm:$0xff]
      %v728 = vld [vmem:[%s2 + $0xa0] sm:$0xff]
      %v729 = vld [vmem:[%s2 + $0xa8] sm:$0xff]
      %v730 = vld [vmem:[%s2 + $0xb0] sm:$0xff]
      %v731 = vld [vmem:[%s2 + $0xb8] sm:$0xff]
      %v732 = vld [vmem:[%s2 + $0xc0] sm:$0xff]
      %v733 = vld [vmem:[%s2 + $0xc8] sm:$0xff]
      %v734 = vld [vmem:[%s2 + $0xd0] sm:$0xff]
      %v735 = vld [vmem:[%s2 + $0xd8] sm:$0xff]
      %v736 = vld [vmem:[%s2 + $0xe0] sm:$0xff]
      %v737 = vld [vmem:[%s2 + $0xe8] sm:$0xff]
      %v738 = vld [vmem:[%s2 + $0xf0] sm:$0xff]
      %v739 = vld [vmem:[%s2 + $0xf8] sm:$0xff]
      %v740 = vld [vmem:[%s2 + $0x100] sm:$0xff]
      %v741 = vld [vmem:[%s2 + $0x108] sm:$0xff]
      %v742 = vld [vmem:[%s2 + $0x110] sm:$0xff]
      %v743 = vld [vmem:[%s2 + $0x118] sm:$0xff]
      %v744 = vld [vmem:[%s2 + $0x120] sm:$0xff]
      %v745 = vld [vmem:[%s2 + $0x128] sm:$0xff]
      %v746 = vld [vmem:[%s2 + $0x130] sm:$0xff]
      %v747 = vld [vmem:[%s2 + $0x138] sm:$0xff]
      %v748 = vld [vmem:[%s2 + $0x140] sm:$0xff]
      %v749 = vld [vmem:[%s2 + $0x148] sm:$0xff]
      %v750 = vld [vmem:[%s2 + $0x150] sm:$0xff]
      %v751 = vld [vmem:[%s2 + $0x158] sm:$0xff]
      %v752 = vld [vmem:[%s2 + $0x160] sm:$0xff]
      %v753 = vld [vmem:[%s2 + $0x168] sm:$0xff]
      %v754 = vld [vmem:[%s2 + $0x170] sm:$0xff]
      %v755 = vld [vmem:[%s2 + $0x178] sm:$0xff]
      %v756 = vld [vmem:[%s2 + $0x180] sm:$0xff]
      %v757 = vld [vmem:[%s2 + $0x188] sm:$0xff]
      %v758 = vld [vmem:[%s2 + $0x190] sm:$0xff]
      %v759 = vld [vmem:[%s2 + $0x198] sm:$0xff]
      %v760 = vld [vmem:[%s2 + $0x1a0] sm:$0xff]
      %v761 = vld [vmem:[%s2 + $0x1a8] sm:$0xff]
      %v762 = vld [vmem:[%s2 + $0x1b0] sm:$0xff]
      %v763 = vld [vmem:[%s2 + $0x1b8] sm:$0xff]
      %v764 = vld [vmem:[%s2 + $0x1c0] sm:$0xff]
      %v765 = vld [vmem:[%s2 + $0x1c8] sm:$0xff]
      %v766 = vld [vmem:[%s2 + $0x1d0] sm:$0xff]
      %v767 = vld [vmem:[%s2 + $0x1d8] sm:$0xff]
      %v768 = vld [vmem:[%s2 + $0x1e0] sm:$0xff]
      %v769 = vld [vmem:[%s2 + $0x1e8] sm:$0xff]
      %v770 = vld [vmem:[%s2 + $0x1f0] sm:$0xff]
      %v771 = vld [vmem:[%s2 + $0x1f8] sm:$0xff]
      %v772 = vld [vmem:[%s2 + $0x200] sm:$0xff]
      %v773 = vld [vmem:[%s2 + $0x208] sm:$0xff]
      %v774 = vld [vmem:[%s2 + $0x210] sm:$0xff]
      %v775 = vld [vmem:[%s2 + $0x218] sm:$0xff]
      %v776 = vld [vmem:[%s2 + $0x220] sm:$0xff]
      %v777 = vld [vmem:[%s2 + $0x228] sm:$0xff]
      %v778 = vld [vmem:[%s2 + $0x230] sm:$0xff]
      %v779 = vld [vmem:[%s2 + $0x238] sm:$0xff]
      %v780 = vld [vmem:[%s2 + $0x240] sm:$0xff]
      %v781 = vld [vmem:[%s2 + $0x248] sm:$0xff]
      %v782 = vld [vmem:[%s2 + $0x250] sm:$0xff]
      %v783 = vld [vmem:[%s2 + $0x258] sm:$0xff]
      %v784 = vld [vmem:[%s2 + $0x260] sm:$0xff]
      %v785 = vld [vmem:[%s2 + $0x268] sm:$0xff]
      %v786 = vld [vmem:[%s2 + $0x270] sm:$0xff]
      %v787 = vld [vmem:[%s2 + $0x278] sm:$0xff]
      %v788 = vld [vmem:[%s2 + $0x280] sm:$0xff]
      %v789 = vld [vmem:[%s2 + $0x288] sm:$0xff]
      %v790 = vld [vmem:[%s2 + $0x290] sm:$0xff]
      %v791 = vld [vmem:[%s2 + $0x298] sm:$0xff]
      %v792 = vld [vmem:[%s2 + $0x2a0] sm:$0xff]
      %v793 = vld [vmem:[%s2 + $0x2a8] sm:$0xff]
      %v794 = vld [vmem:[%s2 + $0x2b0] sm:$0xff]
      %v795 = vld [vmem:[%s2 + $0x2b8] sm:$0xff]
      %v796 = vld [vmem:[%s2 + $0x2c0] sm:$0xff]
      %v797 = vld [vmem:[%s2 + $0x2c8] sm:$0xff]
      %v798 = vld [vmem:[%s2 + $0x2d0] sm:$0xff]
      %v799 = vld [vmem:[%s2 + $0x2d8] sm:$0xff]
      %v800 = vld [vmem:[%s2 + $0x2e0] sm:$0xff]
      %v801 = vld [vmem:[%s2 + $0x2e8] sm:$0xff]
      %v802 = vld [vmem:[%s2 + $0x2f0] sm:$0xff]
      %v803 = vld [vmem:[%s2 + $0x2f8] sm:$0xff]
      %v804 = vld [vmem:[%s2 + $0x300] sm:$0xff]
      %v805 = vld [vmem:[%s2 + $0x308] sm:$0xff]
      %v806 = vld [vmem:[%s2 + $0x310] sm:$0xff]
      %v807 = vld [vmem:[%s2 + $0x318] sm:$0xff]
      %v808 = vld [vmem:[%s2 + $0x320] sm:$0xff]
      %v809 = vld [vmem:[%s2 + $0x328] sm:$0xff]
      %v810 = vld [vmem:[%s2 + $0x330] sm:$0xff]
      %v811 = vld [vmem:[%s2 + $0x338] sm:$0xff]
      %v812 = vld [vmem:[%s2 + $0x340] sm:$0xff]
      %v813 = vld [vmem:[%s2 + $0x348] sm:$0xff]
      %v814 = vld [vmem:[%s2 + $0x350] sm:$0xff]
      %v815 = vld [vmem:[%s2 + $0x358] sm:$0xff]
      %v816 = vld [vmem:[%s2 + $0x360] sm:$0xff]
      %v817 = vld [vmem:[%s2 + $0x368] sm:$0xff]
      %v818 = vld [vmem:[%s2 + $0x370] sm:$0xff]
      %v819 = vld [vmem:[%s2 + $0x378] sm:$0xff]
      %v820 = vld [vmem:[%s2 + $0x380] sm:$0xff]
      %v821 = vld [vmem:[%s2 + $0x388] sm:$0xff]
      %v822 = vld [vmem:[%s2 + $0x390] sm:$0xff]
      %v823 = vld [vmem:[%s2 + $0x398] sm:$0xff]
      %v824 = vld [vmem:[%s2 + $0x3a0] sm:$0xff]
      %v825 = vld [vmem:[%s2 + $0x3a8] sm:$0xff]
      %v826 = vld [vmem:[%s2 + $0x3b0] sm:$0xff]
      %v827 = vld [vmem:[%s2 + $0x3b8] sm:$0xff]
      %v828 = vld [vmem:[%s2 + $0x3c0] sm:$0xff]
      %v829 = vld [vmem:[%s2 + $0x3c8] sm:$0xff]
      %v830 = vld [vmem:[%s2 + $0x3d0] sm:$0xff]
      %v831 = vld [vmem:[%s2 + $0x3d8] sm:$0xff]
      %v832 = vld [vmem:[%s2 + $0x3e0] sm:$0xff]
      %v833 = vld [vmem:[%s2 + $0x3e8] sm:$0xff]
      %v834 = vld [vmem:[%s2 + $0x3f0] sm:$0xff]
      %v835 = vld [vmem:[%s2 + $0x3f8] sm:$0xff]
      %v836 = vld [vmem:[%s2 + $0x400] sm:$0xff]
      %v837 = vld [vmem:[%s2 + $0x408] sm:$0xff]
      %v838 = vld [vmem:[%s2 + $0x410] sm:$0xff]
      %v839 = vld [vmem:[%s2 + $0x418] sm:$0xff]
      %v840 = vld [vmem:[%s2 + $0x420] sm:$0xff]
      %v841 = vld [vmem:[%s2 + $0x428] sm:$0xff]
      %v842 = vld [vmem:[%s2 + $0x430] sm:$0xff]
      %v843 = vld [vmem:[%s2 + $0x438] sm:$0xff]
      %v844 = vld [vmem:[%s2 + $0x440] sm:$0xff]
      %v845 = vld [vmem:[%s2 + $0x448] sm:$0xff]
      %v846 = vld [vmem:[%s2 + $0x450] sm:$0xff]
      %v847 = vld [vmem:[%s2 + $0x458] sm:$0xff]
      %v848 = vld [vmem:[%s2 + $0x460] sm:$0xff]
      %v849 = vld [vmem:[%s2 + $0x468] sm:$0xff]
      %v850 = vld [vmem:[%s2 + $0x470] sm:$0xff]
      %v851 = vld [vmem:[%s2 + $0x478] sm:$0xff]
      %v852 = vld [vmem:[%s2 + $0x480] sm:$0xff]
      %v853 = vld [vmem:[%s2 + $0x488] sm:$0xff]
      %v854 = vld [vmem:[%s2 + $0x490] sm:$0xff]
      %v855 = vld [vmem:[%s2 + $0x498] sm:$0xff]
      %v856 = vld [vmem:[%s2 + $0x4a0] sm:$0xff]
      %v857 = vld [vmem:[%s2 + $0x4a8] sm:$0xff]
      %v858 = vld [vmem:[%s2 + $0x4b0] sm:$0xff]
      %v859 = vld [vmem:[%s2 + $0x4b8] sm:$0xff]
      %v860 = vld [vmem:[%s2 + $0x4c0] sm:$0xff]
      %v861 = vld [vmem:[%s2 + $0x4c8] sm:$0xff]
      %v862 = vld [vmem:[%s2 + $0x4d0] sm:$0xff]
      %v863 = vld [vmem:[%s2 + $0x4d8] sm:$0xff]
      %v864 = vld [vmem:[%s2 + $0x4e0] sm:$0xff]
      %v865 = vld [vmem:[%s2 + $0x4e8] sm:$0xff]
      %v866 = vld [vmem:[%s2 + $0x4f0] sm:$0xff]
      %v867 = vld [vmem:[%s2 + $0x4f8] sm:$0xff]
      %v868 = vld [vmem:[%s2 + $0x500] sm:$0xff]
      %v869 = vld [vmem:[%s2 + $0x508] sm:$0xff]
      %v870 = vld [vmem:[%s2 + $0x510] sm:$0xff]
      %v871 = vld [vmem:[%s2 + $0x518] sm:$0xff]
      %v872 = vld [vmem:[%s2 + $0x520] sm:$0xff]
      %v873 = vld [vmem:[%s2 + $0x528] sm:$0xff]
      %v874 = vld [vmem:[%s2 + $0x530] sm:$0xff]
      %v875 = vld [vmem:[%s2 + $0x538] sm:$0xff]
      %v876 = vld [vmem:[%s2 + $0x540] sm:$0xff]
      %v877 = vld [vmem:[%s2 + $0x548] sm:$0xff]
      %v878 = vld [vmem:[%s2 + $0x550] sm:$0xff]
      %v879 = vld [vmem:[%s2 + $0x558] sm:$0xff]
      %v880 = vld [vmem:[%s2 + $0x560] sm:$0xff]
      %v881 = vld [vmem:[%s2 + $0x568] sm:$0xff]
      %v882 = vld [vmem:[%s2 + $0x570] sm:$0xff]
      %v883 = vld [vmem:[%s2 + $0x578] sm:$0xff]
      %v884 = vld [vmem:[%s2 + $0x580] sm:$0xff]
      %v885 = vld [vmem:[%s2 + $0x588] sm:$0xff]
      %v886 = vld [vmem:[%s2 + $0x590] sm:$0xff]
      %v887 = vld [vmem:[%s2 + $0x598] sm:$0xff]
      %v888 = vld [vmem:[%s2 + $0x5a0] sm:$0xff]
      %v889 = vld [vmem:[%s2 + $0x5a8] sm:$0xff]
      %v890 = vld [vmem:[%s2 + $0x5b0] sm:$0xff]
      %v891 = vld [vmem:[%s2 + $0x5b8] sm:$0xff]
      %v892 = vld [vmem:[%s2 + $0x5c0] sm:$0xff]
      %v893 = vld [vmem:[%s2 + $0x5c8] sm:$0xff]
      %v894 = vld [vmem:[%s2 + $0x5d0] sm:$0xff]
      %v895 = vld [vmem:[%s2 + $0x5d8] sm:$0xff]
      %v896 = vld [vmem:[%s2 + $0x5e0] sm:$0xff]
      %v897 = vld [vmem:[%s2 + $0x5e8] sm:$0xff]
      %v898 = vld [vmem:[%s2 + $0x5f0] sm:$0xff]
      %v899 = vld [vmem:[%s2 + $0x5f8] sm:$0xff]
      %v900 = vld [vmem:[%s2 + $0x600] sm:$0xff]
      %v901 = vld [vmem:[%s2 + $0x608] sm:$0xff]
      %v902 = vld [vmem:[%s2 + $0x610] sm:$0xff]
      %v903 = vld [vmem:[%s2 + $0x618] sm:$0xff]
      %v904 = vld [vmem:[%s2 + $0x620] sm:$0xff]
      %v905 = vld [vmem:[%s2 + $0x628] sm:$0xff]
      %v906 = vld [vmem:[%s2 + $0x630] sm:$0xff]
      %v907 = vld [vmem:[%s2 + $0x638] sm:$0xff]
      %v908 = vld [vmem:[%s2 + $0x640] sm:$0xff]
      %v909 = vld [vmem:[%s2 + $0x648] sm:$0xff]
      %v910 = vld [vmem:[%s2 + $0x650] sm:$0xff]
      %v911 = vld [vmem:[%s2 + $0x658] sm:$0xff]
      %v912 = vld [vmem:[%s2 + $0x660] sm:$0xff]
      %v913 = vld [vmem:[%s2 + $0x668] sm:$0xff]
      %v914 = vld [vmem:[%s2 + $0x670] sm:$0xff]
      %v915 = vld [vmem:[%s2 + $0x678] sm:$0xff]
      %v916 = vld [vmem:[%s2 + $0x680] sm:$0xff]
      %v917 = vld [vmem:[%s2 + $0x688] sm:$0xff]
      %v918 = vld [vmem:[%s2 + $0x690] sm:$0xff]
      %v919 = vld [vmem:[%s2 + $0x698] sm:$0xff]
      %v920 = vld [vmem:[%s2 + $0x6a0] sm:$0xff]
      %v921 = vld [vmem:[%s2 + $0x6a8] sm:$0xff]
      %v922 = vld [vmem:[%s2 + $0x6b0] sm:$0xff]
      %v923 = vld [vmem:[%s2 + $0x6b8] sm:$0xff]
      %v924 = vld [vmem:[%s2 + $0x6c0] sm:$0xff]
      %v925 = vld [vmem:[%s2 + $0x6c8] sm:$0xff]
      %v926 = vld [vmem:[%s2 + $0x6d0] sm:$0xff]
      %v927 = vld [vmem:[%s2 + $0x6d8] sm:$0xff]
      %v928 = vld [vmem:[%s2 + $0x6e0] sm:$0xff]
      %v929 = vld [vmem:[%s2 + $0x6e8] sm:$0xff]
      %v930 = vld [vmem:[%s2 + $0x6f0] sm:$0xff]
      %v931 = vld [vmem:[%s2 + $0x6f8] sm:$0xff]
      %v932 = vld [vmem:[%s2 + $0x700] sm:$0xff]
      %v933 = vld [vmem:[%s2 + $0x708] sm:$0xff]
      %v934 = vld [vmem:[%s2 + $0x710] sm:$0xff]
      %v935 = vld [vmem:[%s2 + $0x718] sm:$0xff]
      %v936 = vld [vmem:[%s2 + $0x720] sm:$0xff]
      %v937 = vld [vmem:[%s2 + $0x728] sm:$0xff]
      %v938 = vld [vmem:[%s2 + $0x730] sm:$0xff]
      %v939 = vld [vmem:[%s2 + $0x738] sm:$0xff]
      %v940 = vld [vmem:[%s2 + $0x740] sm:$0xff]
      %v941 = vld [vmem:[%s2 + $0x748] sm:$0xff]
      %v942 = vld [vmem:[%s2 + $0x750] sm:$0xff]
      %v943 = vld [vmem:[%s2 + $0x758] sm:$0xff]
      %v944 = vld [vmem:[%s2 + $0x760] sm:$0xff]
      %v945 = vld [vmem:[%s2 + $0x768] sm:$0xff]
      %v946 = vld [vmem:[%s2 + $0x770] sm:$0xff]
      %v947 = vld [vmem:[%s2 + $0x778] sm:$0xff]
      %v948 = vld [vmem:[%s2 + $0x780] sm:$0xff]
      %v949 = vld [vmem:[%s2 + $0x788] sm:$0xff]
      %v950 = vld [vmem:[%s2 + $0x790] sm:$0xff]
      %v951 = vld [vmem:[%s2 + $0x798] sm:$0xff]
      %v952 = vld [vmem:[%s2 + $0x7a0] sm:$0xff]
      %v953 = vld [vmem:[%s2 + $0x7a8] sm:$0xff]
      %v954 = vld [vmem:[%s2 + $0x7b0] sm:$0xff]
      %v955 = vld [vmem:[%s2 + $0x7b8] sm:$0xff]
      %v956 = vld [vmem:[%s2 + $0x7c0] sm:$0xff]
      %v957 = vld [vmem:[%s2 + $0x7c8] sm:$0xff]
      %v958 = vld [vmem:[%s2 + $0x7d0] sm:$0xff]
      %v959 = vld [vmem:[%s2 + $0x7d8] sm:$0xff]
      %v960 = vld [vmem:[%s2 + $0x7e0] sm:$0xff]
      %v961 = vld [vmem:[%s2 + $0x7e8] sm:$0xff]
      %v962 = vld [vmem:[%s2 + $0x7f0] sm:$0xff]
      %v963 = vld [vmem:[%s2 + $0x7f8] sm:$0xff]
      %v964 = vld [vmem:[%s2 + $0x800] sm:$0xff]
      %v965 = vld [vmem:[%s2 + $0x808] sm:$0xff]
      %v966 = vld [vmem:[%s2 + $0x810] sm:$0xff]
      %v967 = vld [vmem:[%s2 + $0x818] sm:$0xff]
      %v968 = vld [vmem:[%s2 + $0x820] sm:$0xff]
      %v969 = vld [vmem:[%s2 + $0x828] sm:$0xff]
      %v970 = vld [vmem:[%s2 + $0x830] sm:$0xff]
      %v971 = vld [vmem:[%s2 + $0x838] sm:$0xff]
      %v972 = vld [vmem:[%s2 + $0x840] sm:$0xff]
      %v973 = vld [vmem:[%s2 + $0x848] sm:$0xff]
      %v974 = vld [vmem:[%s2 + $0x850] sm:$0xff]
      %v975 = vld [vmem:[%s2 + $0x858] sm:$0xff]
      %v976 = vld [vmem:[%s2 + $0x860] sm:$0xff]
      %v977 = vld [vmem:[%s2 + $0x868] sm:$0xff]
      %v978 = vld [vmem:[%s2 + $0x870] sm:$0xff]
      %v979 = vld [vmem:[%s2 + $0x878] sm:$0xff]
      %v980 = vld [vmem:[%s2 + $0x880] sm:$0xff]
      %v981 = vld [vmem:[%s2 + $0x888] sm:$0xff]
      %v982 = vld [vmem:[%s2 + $0x890] sm:$0xff]
      %v983 = vld [vmem:[%s2 + $0x898] sm:$0xff]
      %v984 = vld [vmem:[%s2 + $0x8a0] sm:$0xff]
      %v985 = vld [vmem:[%s2 + $0x8a8] sm:$0xff]
      %v986 = vld [vmem:[%s2 + $0x8b0] sm:$0xff]
      %v987 = vld [vmem:[%s2 + $0x8b8] sm:$0xff]
      %v988 = vld [vmem:[%s2 + $0x8c0] sm:$0xff]
      %v989 = vld [vmem:[%s2 + $0x8c8] sm:$0xff]
      %v990 = vld [vmem:[%s2 + $0x8d0] sm:$0xff]
      %v991 = vld [vmem:[%s2 + $0x8d8] sm:$0xff]
      %v992 = vld [vmem:[%s2 + $0x8e0] sm:$0xff]
      %v993 = vld [vmem:[%s2 + $0x8e8] sm:$0xff]
      %v994 = vld [vmem:[%s2 + $0x8f0] sm:$0xff]
      %v995 = vld [vmem:[%s2 + $0x8f8] sm:$0xff]
      %v996 = vld [vmem:[%s2 + $0x900] sm:$0xff]
      %v997 = vld [vmem:[%s2 + $0x908] sm:$0xff]
      %v998 = vld [vmem:[%s2 + $0x910] sm:$0xff]
      %v999 = vld [vmem:[%s2 + $0x918] sm:$0xff]
      %v1000 = vld [vmem:[%s2 + $0x920] sm:$0xff]
      %v1001 = vld [vmem:[%s2 + $0x928] sm:$0xff]
      %v1002 = vld [vmem:[%s2 + $0x930] sm:$0xff]
      %v1003 = vld [vmem:[%s2 + $0x938] sm:$0xff]
      %v1004 = vld [vmem:[%s2 + $0x940] sm:$0xff]
      %v1005 = vld [vmem:[%s2 + $0x948] sm:$0xff]
      %v1006 = vld [vmem:[%s2 + $0x950] sm:$0xff]
      %v1007 = vld [vmem:[%s2 + $0x958] sm:$0xff]
      %v1008 = vld [vmem:[%s2 + $0x960] sm:$0xff]
      %v1009 = vld [vmem:[%s2 + $0x968] sm:$0xff]
      %v1010 = vld [vmem:[%s2 + $0x970] sm:$0xff]
      %v1011 = vld [vmem:[%s2 + $0x978] sm:$0xff]
      %v1012 = vld [vmem:[%s2 + $0x980] sm:$0xff]
      %v1013 = vld [vmem:[%s2 + $0x988] sm:$0xff]
      %v1014 = vld [vmem:[%s2 + $0x990] sm:$0xff]
      %v1015 = vld [vmem:[%s2 + $0x998] sm:$0xff]
      %v1016 = vld [vmem:[%s2 + $0x9a0] sm:$0xff]
      %v1017 = vld [vmem:[%s2 + $0x9a8] sm:$0xff]
      %v1018 = vld [vmem:[%s2 + $0x9b0] sm:$0xff]
      %v1019 = vld [vmem:[%s2 + $0x9b8] sm:$0xff]
      %v1020 = vld [vmem:[%s2 + $0x9c0] sm:$0xff]
      %v1021 = vld [vmem:[%s2 + $0x9c8] sm:$0xff]
      %v1022 = vld [vmem:[%s2 + $0x9d0] sm:$0xff]
      %v1023 = vld [vmem:[%s2 + $0x9d8] sm:$0xff]
      %v1024 = vld [vmem:[%s2 + $0x9e0] sm:$0xff]
      %v1025 = vld [vmem:[%s2 + $0x9e8] sm:$0xff]
      %v1026 = vld [vmem:[%s2 + $0x9f0] sm:$0xff]
      %v1027 = vld [vmem:[%s2 + $0x9f8] sm:$0xff]
      %v1028 = vld [vmem:[%s2 + $0xa00] sm:$0xff]
      %v1029 = vld [vmem:[%s2 + $0xa08] sm:$0xff]
      %v1030 = vld [vmem:[%s2 + $0xa10] sm:$0xff]
      %v1031 = vld [vmem:[%s2 + $0xa18] sm:$0xff]
      %v1032 = vld [vmem:[%s2 + $0xa20] sm:$0xff]
      %v1033 = vld [vmem:[%s2 + $0xa28] sm:$0xff]
      %v1034 = vld [vmem:[%s2 + $0xa30] sm:$0xff]
      %v1035 = vld [vmem:[%s2 + $0xa38] sm:$0xff]
      %v1036 = vld [vmem:[%s2 + $0xa40] sm:$0xff]
      %v1037 = vld [vmem:[%s2 + $0xa48] sm:$0xff]
      %v1038 = vld [vmem:[%s2 + $0xa50] sm:$0xff]
      %v1039 = vld [vmem:[%s2 + $0xa58] sm:$0xff]
      %v1040 = vld [vmem:[%s2 + $0xa60] sm:$0xff]
      %v1041 = vld [vmem:[%s2 + $0xa68] sm:$0xff]
      %v1042 = vld [vmem:[%s2 + $0xa70] sm:$0xff]
      %v1043 = vld [vmem:[%s2 + $0xa78] sm:$0xff]
      %v1044 = vld [vmem:[%s2 + $0xa80] sm:$0xff]
      %v1045 = vld [vmem:[%s2 + $0xa88] sm:$0xff]
      %v1046 = vld [vmem:[%s2 + $0xa90] sm:$0xff]
      %v1047 = vld [vmem:[%s2 + $0xa98] sm:$0xff]
      %v1048 = vld [vmem:[%s2 + $0xaa0] sm:$0xff]
      %v1049 = vld [vmem:[%s2 + $0xaa8] sm:$0xff]
      %v1050 = vld [vmem:[%s2 + $0xab0] sm:$0xff]
      %v1051 = vld [vmem:[%s2 + $0xab8] sm:$0xff]
      %v1052 = vld [vmem:[%s2 + $0xac0] sm:$0xff]
      %v1053 = vld [vmem:[%s2 + $0xac8] sm:$0xff]
      %v1054 = vld [vmem:[%s2 + $0xad0] sm:$0xff]
      %v1055 = vld [vmem:[%s2 + $0xad8] sm:$0xff]
      %v1056 = vld [vmem:[%s2 + $0xae0] sm:$0xff]
      %v1057 = vld [vmem:[%s2 + $0xae8] sm:$0xff]
      %v1058 = vld [vmem:[%s2 + $0xaf0] sm:$0xff]
      %v1059 = vld [vmem:[%s2 + $0xaf8] sm:$0xff]
      %v1060 = vld [vmem:[%s2 + $0xb00] sm:$0xff]
      %v1061 = vld [vmem:[%s2 + $0xb08] sm:$0xff]
      %v1062 = vld [vmem:[%s2 + $0xb10] sm:$0xff]
      %v1063 = vld [vmem:[%s2 + $0xb18] sm:$0xff]
      %v1064 = vld [vmem:[%s2 + $0xb20] sm:$0xff]
      %v1065 = vld [vmem:[%s2 + $0xb28] sm:$0xff]
      %v1066 = vld [vmem:[%s2 + $0xb30] sm:$0xff]
      %v1067 = vld [vmem:[%s2 + $0xb38] sm:$0xff]
      %v1068 = vsel %vm226, %v283, 0
      %1070 = vmatpush.msra.mxu0 %v378
      %1071 = vmatpush.msra.mxu0 %v376
      %1072 = vmatpush.msra.mxu0 %v374
      %1073 = vmatpush.msra.mxu0 %v372
      %1074 = vmatpush.msra.mxu0 %v370
      %1075 = vmatpush.msra.mxu0 %v368
      %1076 = vmatpush.msra.mxu0 %v366
      %1077 = vmatpush.msra.mxu0 %v364
      %1078 = vmatpush.msra.mxu0 %v362
      %1079 = vmatpush.msra.mxu0 %v360
      %1080 = vmatpush.msra.mxu0 %v358
      %1081 = vmatpush.msra.mxu0 %v356
      %1082 = vmatpush.msra.mxu0 %v354
      %1083 = vmatpush.msra.mxu0 %v352
      %1084 = vmatpush.msra.mxu0 %v350
      %1085 = vmatpush.msra.mxu0 %v348
      %1086 = vmatmul.f32.gmra.mxu0 %v198
      %v1087 = vpop.f32.mrf.mxu0
      %v1088 = vadd.f32 0.0, %v1087
      %1089 = vdwg.mxu0
      %1090 = vmatpush.msra.mxu0 %v410
      %1091 = vmatpush.msra.mxu0 %v408
      %1092 = vmatpush.msra.mxu0 %v406
      %1093 = vmatpush.msra.mxu0 %v404
      %1094 = vmatpush.msra.mxu0 %v402
      %1095 = vmatpush.msra.mxu0 %v400
      %1096 = vmatpush.msra.mxu0 %v398
      %1097 = vmatpush.msra.mxu0 %v396
      %1098 = vmatpush.msra.mxu0 %v394
      %1099 = vmatpush.msra.mxu0 %v392
      %1100 = vmatpush.msra.mxu0 %v390
      %1101 = vmatpush.msra.mxu0 %v388
      %1102 = vmatpush.msra.mxu0 %v386
      %1103 = vmatpush.msra.mxu0 %v384
      %1104 = vmatpush.msra.mxu0 %v382
      %1105 = vmatpush.msra.mxu0 %v380
      %1106 = vmatmul.f32.gmra.mxu0 %v199
      %v1107 = vpop.f32.mrf.mxu0
      %v1108 = vadd.f32 %v1088, %v1107
      %1109 = vdwg.mxu0
      %1110 = vmatpush.msra.mxu0 %v442
      %1111 = vmatpush.msra.mxu0 %v440
      %1112 = vmatpush.msra.mxu0 %v438
      %1113 = vmatpush.msra.mxu0 %v436
      %1114 = vmatpush.msra.mxu0 %v434
      %1115 = vmatpush.msra.mxu0 %v432
      %1116 = vmatpush.msra.mxu0 %v430
      %1117 = vmatpush.msra.mxu0 %v428
      %1118 = vmatpush.msra.mxu0 %v426
      %1119 = vmatpush.msra.mxu0 %v424
      %1120 = vmatpush.msra.mxu0 %v422
      %1121 = vmatpush.msra.mxu0 %v420
      %1122 = vmatpush.msra.mxu0 %v418
      %1123 = vmatpush.msra.mxu0 %v416
      %1124 = vmatpush.msra.mxu0 %v414
      %1125 = vmatpush.msra.mxu0 %v412
      %1126 = vmatmul.f32.gmra.mxu0 %v286
      %v1127 = vpop.f32.mrf.mxu0
      %v1128 = vadd.f32 %v1108, %v1127
      %1129 = vdwg.mxu0
      %1130 = vmatpush.msra.mxu0 %v474
      %1131 = vmatpush.msra.mxu0 %v472
      %1132 = vmatpush.msra.mxu0 %v470
      %1133 = vmatpush.msra.mxu0 %v468
      %1134 = vmatpush.msra.mxu0 %v466
      %1135 = vmatpush.msra.mxu0 %v464
      %1136 = vmatpush.msra.mxu0 %v462
      %1137 = vmatpush.msra.mxu0 %v460
      %1138 = vmatpush.msra.mxu0 %v458
      %1139 = vmatpush.msra.mxu0 %v456
      %1140 = vmatpush.msra.mxu0 %v454
      %1141 = vmatpush.msra.mxu0 %v452
      %1142 = vmatpush.msra.mxu0 %v450
      %1143 = vmatpush.msra.mxu0 %v448
      %1144 = vmatpush.msra.mxu0 %v446
      %1145 = vmatpush.msra.mxu0 %v444
      %1146 = vmatmul.f32.gmra.mxu0 %v227
      %v1147 = vpop.f32.mrf.mxu0
      %v1148 = vadd.f32 %v1128, %v1147
      %1149 = vdwg.mxu0
      %1150 = vmatpush.msra.mxu0 %v506
      %1151 = vmatpush.msra.mxu0 %v504
      %1152 = vmatpush.msra.mxu0 %v502
      %1153 = vmatpush.msra.mxu0 %v500
      %1154 = vmatpush.msra.mxu0 %v498
      %1155 = vmatpush.msra.mxu0 %v496
      %1156 = vmatpush.msra.mxu0 %v494
      %1157 = vmatpush.msra.mxu0 %v492
      %1158 = vmatpush.msra.mxu0 %v490
      %1159 = vmatpush.msra.mxu0 %v488
      %1160 = vmatpush.msra.mxu0 %v486
      %1161 = vmatpush.msra.mxu0 %v484
      %1162 = vmatpush.msra.mxu0 %v482
      %1163 = vmatpush.msra.mxu0 %v480
      %1164 = vmatpush.msra.mxu0 %v478
      %1165 = vmatpush.msra.mxu0 %v476
      %1166 = vmatmul.f32.gmra.mxu0 %v287
      %v1167 = vpop.f32.mrf.mxu0
      %v1168 = vadd.f32 %v1148, %v1167
      %1169 = vdwg.mxu0
      %1170 = vmatpush.msra.mxu0 %v538
      %1171 = vmatpush.msra.mxu0 %v536
      %1172 = vmatpush.msra.mxu0 %v534
      %1173 = vmatpush.msra.mxu0 %v532
      %1174 = vmatpush.msra.mxu0 %v530
      %1175 = vmatpush.msra.mxu0 %v528
      %1176 = vmatpush.msra.mxu0 %v526
      %1177 = vmatpush.msra.mxu0 %v524
      %1178 = vmatpush.msra.mxu0 %v522
      %1179 = vmatpush.msra.mxu0 %v520
      %1180 = vmatpush.msra.mxu0 %v518
      %1181 = vmatpush.msra.mxu0 %v516
      %1182 = vmatpush.msra.mxu0 %v514
      %1183 = vmatpush.msra.mxu0 %v512
      %1184 = vmatpush.msra.mxu0 %v510
      %1185 = vmatpush.msra.mxu0 %v508
      %1186 = vmatmul.f32.gmra.mxu0 %v245
      %v1187 = vpop.f32.mrf.mxu0
      %v1188 = vadd.f32 %v1168, %v1187
      %1189 = vdwg.mxu0
      %1190 = vmatpush.msra.mxu0 %v570
      %1191 = vmatpush.msra.mxu0 %v568
      %1192 = vmatpush.msra.mxu0 %v566
      %1193 = vmatpush.msra.mxu0 %v564
      %1194 = vmatpush.msra.mxu0 %v562
      %1195 = vmatpush.msra.mxu0 %v560
      %1196 = vmatpush.msra.mxu0 %v558
      %1197 = vmatpush.msra.mxu0 %v556
      %1198 = vmatpush.msra.mxu0 %v554
      %1199 = vmatpush.msra.mxu0 %v552
      %1200 = vmatpush.msra.mxu0 %v550
      %1201 = vmatpush.msra.mxu0 %v548
      %1202 = vmatpush.msra.mxu0 %v546
      %1203 = vmatpush.msra.mxu0 %v544
      %1204 = vmatpush.msra.mxu0 %v542
      %1205 = vmatpush.msra.mxu0 %v540
      %1206 = vmatmul.f32.gmra.mxu0 %v288
      %v1207 = vpop.f32.mrf.mxu0
      %v1208 = vadd.f32 %v1188, %v1207
      %1209 = vdwg.mxu0
      %1210 = vmatpush.msra.mxu0 %v602
      %1211 = vmatpush.msra.mxu0 %v600
      %1212 = vmatpush.msra.mxu0 %v598
      %1213 = vmatpush.msra.mxu0 %v596
      %1214 = vmatpush.msra.mxu0 %v594
      %1215 = vmatpush.msra.mxu0 %v592
      %1216 = vmatpush.msra.mxu0 %v590
      %1217 = vmatpush.msra.mxu0 %v588
      %1218 = vmatpush.msra.mxu0 %v586
      %1219 = vmatpush.msra.mxu0 %v584
      %1220 = vmatpush.msra.mxu0 %v582
      %1221 = vmatpush.msra.mxu0 %v580
      %1222 = vmatpush.msra.mxu0 %v578
      %1223 = vmatpush.msra.mxu0 %v576
      %1224 = vmatpush.msra.mxu0 %v574
      %1225 = vmatpush.msra.mxu0 %v572
      %1226 = vmatmul.f32.gmra.mxu0 %v263
      %v1227 = vpop.f32.mrf.mxu0
      %v1228 = vadd.f32 %v1208, %v1227
      %1229 = vdwg.mxu0
      %1230 = vmatpush.msra.mxu0 %v634
      %1231 = vmatpush.msra.mxu0 %v632
      %1232 = vmatpush.msra.mxu0 %v630
      %1233 = vmatpush.msra.mxu0 %v628
      %1234 = vmatpush.msra.mxu0 %v626
      %1235 = vmatpush.msra.mxu0 %v624
      %1236 = vmatpush.msra.mxu0 %v622
      %1237 = vmatpush.msra.mxu0 %v620
      %1238 = vmatpush.msra.mxu0 %v618
      %1239 = vmatpush.msra.mxu0 %v616
      %1240 = vmatpush.msra.mxu0 %v614
      %1241 = vmatpush.msra.mxu0 %v612
      %1242 = vmatpush.msra.mxu0 %v610
      %1243 = vmatpush.msra.mxu0 %v608
      %1244 = vmatpush.msra.mxu0 %v606
      %1245 = vmatpush.msra.mxu0 %v604
      %1246 = vmatmul.f32.gmra.mxu0 %v264
      %v1247 = vpop.f32.mrf.mxu0
      %v1248 = vadd.f32 %v1228, %v1247
      %1249 = vdwg.mxu0
      %1250 = vmatpush.msra.mxu0 %v666
      %1251 = vmatpush.msra.mxu0 %v664
      %1252 = vmatpush.msra.mxu0 %v662
      %1253 = vmatpush.msra.mxu0 %v660
      %1254 = vmatpush.msra.mxu0 %v658
      %1255 = vmatpush.msra.mxu0 %v656
      %1256 = vmatpush.msra.mxu0 %v654
      %1257 = vmatpush.msra.mxu0 %v652
      %1258 = vmatpush.msra.mxu0 %v650
      %1259 = vmatpush.msra.mxu0 %v648
      %1260 = vmatpush.msra.mxu0 %v646
      %1261 = vmatpush.msra.mxu0 %v644
      %1262 = vmatpush.msra.mxu0 %v642
      %1263 = vmatpush.msra.mxu0 %v640
      %1264 = vmatpush.msra.mxu0 %v638
      %1265 = vmatpush.msra.mxu0 %v636
      %1266 = vmatmul.f32.gmra.mxu0 %v277
      %v1267 = vpop.f32.mrf.mxu0
      %v1268 = vadd.f32 %v1248, %v1267
      %1269 = vdwg.mxu0
      %1270 = vmatpush.msra.mxu0 %v698
      %1271 = vmatpush.msra.mxu0 %v696
      %1272 = vmatpush.msra.mxu0 %v694
      %1273 = vmatpush.msra.mxu0 %v692
      %1274 = vmatpush.msra.mxu0 %v690
      %1275 = vmatpush.msra.mxu0 %v688
      %1276 = vmatpush.msra.mxu0 %v686
      %1277 = vmatpush.msra.mxu0 %v684
      %1278 = vmatpush.msra.mxu0 %v682
      %1279 = vmatpush.msra.mxu0 %v680
      %1280 = vmatpush.msra.mxu0 %v678
      %1281 = vmatpush.msra.mxu0 %v676
      %1282 = vmatpush.msra.mxu0 %v674
      %1283 = vmatpush.msra.mxu0 %v672
      %1284 = vmatpush.msra.mxu0 %v670
      %1285 = vmatpush.msra.mxu0 %v668
      %1286 = vmatmul.f32.gmra.mxu0 %v280
      %v1287 = vpop.f32.mrf.mxu0
      %v1288 = vadd.f32 %v1268, %v1287
      %1289 = vdwg.mxu0
      %1290 = vmatpush.msra.mxu0 0.0
      %1291 = vmatpush.msra.mxu0 0.0
      %1292 = vmatpush.msra.mxu0 0.0
      %1293 = vmatpush.msra.mxu0 0.0
      %1294 = vmatpush.msra.mxu0 0.0
      %1295 = vmatpush.msra.mxu0 0.0
      %1296 = vmatpush.msra.mxu0 0.0
      %1297 = vmatpush.msra.mxu0 0.0
      %1298 = vmatpush.msra.mxu0 0.0
      %1299 = vmatpush.msra.mxu0 0.0
      %1300 = vmatpush.msra.mxu0 0.0
      %1301 = vmatpush.msra.mxu0 0.0
      %1302 = vmatpush.msra.mxu0 %v706
      %1303 = vmatpush.msra.mxu0 %v704
      %1304 = vmatpush.msra.mxu0 %v702
      %1305 = vmatpush.msra.mxu0 %v700
      %1306 = vmatmul.f32.gmra.mxu0 %v1068
      %v1307 = vpop.f32.mrf.mxu0
      %v1308 = vadd.f32 %v1288, %v1307
      %1309 = vdwg.mxu0
      %1310 = vmatpush.msra.mxu0 %v379
      %1311 = vmatpush.msra.mxu0 %v377
      %1312 = vmatpush.msra.mxu0 %v375
      %1313 = vmatpush.msra.mxu0 %v373
      %1314 = vmatpush.msra.mxu0 %v371
      %1315 = vmatpush.msra.mxu0 %v369
      %1316 = vmatpush.msra.mxu0 %v367
      %1317 = vmatpush.msra.mxu0 %v365
      %1318 = vmatpush.msra.mxu0 %v363
      %1319 = vmatpush.msra.mxu0 %v361
      %1320 = vmatpush.msra.mxu0 %v359
      %1321 = vmatpush.msra.mxu0 %v357
      %1322 = vmatpush.msra.mxu0 %v355
      %1323 = vmatpush.msra.mxu0 %v353
      %1324 = vmatpush.msra.mxu0 %v351
      %1325 = vmatpush.msra.mxu0 %v349
      %1326 = vmatmul.f32.gmra.mxu0 %v198
      %v1327 = vpop.f32.mrf.mxu0
      %v1328 = vadd.f32 0.0, %v1327
      %1329 = vdwg.mxu0
      %1330 = vmatpush.msra.mxu0 %v411
      %1331 = vmatpush.msra.mxu0 %v409
      %1332 = vmatpush.msra.mxu0 %v407
      %1333 = vmatpush.msra.mxu0 %v405
      %1334 = vmatpush.msra.mxu0 %v403
      %1335 = vmatpush.msra.mxu0 %v401
      %1336 = vmatpush.msra.mxu0 %v399
      %1337 = vmatpush.msra.mxu0 %v397
      %1338 = vmatpush.msra.mxu0 %v395
      %1339 = vmatpush.msra.mxu0 %v393
      %1340 = vmatpush.msra.mxu0 %v391
      %1341 = vmatpush.msra.mxu0 %v389
      %1342 = vmatpush.msra.mxu0 %v387
      %1343 = vmatpush.msra.mxu0 %v385
      %1344 = vmatpush.msra.mxu0 %v383
      %1345 = vmatpush.msra.mxu0 %v381
      %1346 = vmatmul.f32.gmra.mxu0 %v199
      %v1347 = vpop.f32.mrf.mxu0
      %v1348 = vadd.f32 %v1328, %v1347
      %1349 = vdwg.mxu0
      %1350 = vmatpush.msra.mxu0 %v443
      %1351 = vmatpush.msra.mxu0 %v441
      %1352 = vmatpush.msra.mxu0 %v439
      %1353 = vmatpush.msra.mxu0 %v437
      %1354 = vmatpush.msra.mxu0 %v435
      %1355 = vmatpush.msra.mxu0 %v433
      %1356 = vmatpush.msra.mxu0 %v431
      %1357 = vmatpush.msra.mxu0 %v429
      %1358 = vmatpush.msra.mxu0 %v427
      %1359 = vmatpush.msra.mxu0 %v425
      %1360 = vmatpush.msra.mxu0 %v423
      %1361 = vmatpush.msra.mxu0 %v421
      %1362 = vmatpush.msra.mxu0 %v419
      %1363 = vmatpush.msra.mxu0 %v417
      %1364 = vmatpush.msra.mxu0 %v415
      %1365 = vmatpush.msra.mxu0 %v413
      %1366 = vmatmul.f32.gmra.mxu0 %v286
      %v1367 = vpop.f32.mrf.mxu0
      %v1368 = vadd.f32 %v1348, %v1367
      %1369 = vdwg.mxu0
      %1370 = vmatpush.msra.mxu0 %v475
      %1371 = vmatpush.msra.mxu0 %v473
      %1372 = vmatpush.msra.mxu0 %v471
      %1373 = vmatpush.msra.mxu0 %v469
      %1374 = vmatpush.msra.mxu0 %v467
      %1375 = vmatpush.msra.mxu0 %v465
      %1376 = vmatpush.msra.mxu0 %v463
      %1377 = vmatpush.msra.mxu0 %v461
      %1378 = vmatpush.msra.mxu0 %v459
      %1379 = vmatpush.msra.mxu0 %v457
      %1380 = vmatpush.msra.mxu0 %v455
      %1381 = vmatpush.msra.mxu0 %v453
      %1382 = vmatpush.msra.mxu0 %v451
      %1383 = vmatpush.msra.mxu0 %v449
      %1384 = vmatpush.msra.mxu0 %v447
      %1385 = vmatpush.msra.mxu0 %v445
      %1386 = vmatmul.f32.gmra.mxu0 %v227
      %v1387 = vpop.f32.mrf.mxu0
      %v1388 = vadd.f32 %v1368, %v1387
      %1389 = vdwg.mxu0
      %1390 = vmatpush.msra.mxu0 %v507
      %1391 = vmatpush.msra.mxu0 %v505
      %1392 = vmatpush.msra.mxu0 %v503
      %1393 = vmatpush.msra.mxu0 %v501
      %1394 = vmatpush.msra.mxu0 %v499
      %1395 = vmatpush.msra.mxu0 %v497
      %1396 = vmatpush.msra.mxu0 %v495
      %1397 = vmatpush.msra.mxu0 %v493
      %1398 = vmatpush.msra.mxu0 %v491
      %1399 = vmatpush.msra.mxu0 %v489
      %1400 = vmatpush.msra.mxu0 %v487
      %1401 = vmatpush.msra.mxu0 %v485
      %1402 = vmatpush.msra.mxu0 %v483
      %1403 = vmatpush.msra.mxu0 %v481
      %1404 = vmatpush.msra.mxu0 %v479
      %1405 = vmatpush.msra.mxu0 %v477
      %1406 = vmatmul.f32.gmra.mxu0 %v287
      %v1407 = vpop.f32.mrf.mxu0
      %v1408 = vadd.f32 %v1388, %v1407
      %1409 = vdwg.mxu0
      %1410 = vmatpush.msra.mxu0 %v539
      %1411 = vmatpush.msra.mxu0 %v537
      %1412 = vmatpush.msra.mxu0 %v535
      %1413 = vmatpush.msra.mxu0 %v533
      %1414 = vmatpush.msra.mxu0 %v531
      %1415 = vmatpush.msra.mxu0 %v529
      %1416 = vmatpush.msra.mxu0 %v527
      %1417 = vmatpush.msra.mxu0 %v525
      %1418 = vmatpush.msra.mxu0 %v523
      %1419 = vmatpush.msra.mxu0 %v521
      %1420 = vmatpush.msra.mxu0 %v519
      %1421 = vmatpush.msra.mxu0 %v517
      %1422 = vmatpush.msra.mxu0 %v515
      %1423 = vmatpush.msra.mxu0 %v513
      %1424 = vmatpush.msra.mxu0 %v511
      %1425 = vmatpush.msra.mxu0 %v509
      %1426 = vmatmul.f32.gmra.mxu0 %v245
      %v1427 = vpop.f32.mrf.mxu0
      %v1428 = vadd.f32 %v1408, %v1427
      %1429 = vdwg.mxu0
      %1430 = vmatpush.msra.mxu0 %v571
      %1431 = vmatpush.msra.mxu0 %v569
      %1432 = vmatpush.msra.mxu0 %v567
      %1433 = vmatpush.msra.mxu0 %v565
      %1434 = vmatpush.msra.mxu0 %v563
      %1435 = vmatpush.msra.mxu0 %v561
      %1436 = vmatpush.msra.mxu0 %v559
      %1437 = vmatpush.msra.mxu0 %v557
      %1438 = vmatpush.msra.mxu0 %v555
      %1439 = vmatpush.msra.mxu0 %v553
      %1440 = vmatpush.msra.mxu0 %v551
      %1441 = vmatpush.msra.mxu0 %v549
      %1442 = vmatpush.msra.mxu0 %v547
      %1443 = vmatpush.msra.mxu0 %v545
      %1444 = vmatpush.msra.mxu0 %v543
      %1445 = vmatpush.msra.mxu0 %v541
      %1446 = vmatmul.f32.gmra.mxu0 %v288
      %v1447 = vpop.f32.mrf.mxu0
      %v1448 = vadd.f32 %v1428, %v1447
      %1449 = vdwg.mxu0
      %1450 = vmatpush.msra.mxu0 %v603
      %1451 = vmatpush.msra.mxu0 %v601
      %1452 = vmatpush.msra.mxu0 %v599
      %1453 = vmatpush.msra.mxu0 %v597
      %1454 = vmatpush.msra.mxu0 %v595
      %1455 = vmatpush.msra.mxu0 %v593
      %1456 = vmatpush.msra.mxu0 %v591
      %1457 = vmatpush.msra.mxu0 %v589
      %1458 = vmatpush.msra.mxu0 %v587
      %1459 = vmatpush.msra.mxu0 %v585
      %1460 = vmatpush.msra.mxu0 %v583
      %1461 = vmatpush.msra.mxu0 %v581
      %1462 = vmatpush.msra.mxu0 %v579
      %1463 = vmatpush.msra.mxu0 %v577
      %1464 = vmatpush.msra.mxu0 %v575
      %1465 = vmatpush.msra.mxu0 %v573
      %1466 = vmatmul.f32.gmra.mxu0 %v263
      %v1467 = vpop.f32.mrf.mxu0
      %v1468 = vadd.f32 %v1448, %v1467
      %1469 = vdwg.mxu0
      %1470 = vmatpush.msra.mxu0 %v635
      %1471 = vmatpush.msra.mxu0 %v633
      %1472 = vmatpush.msra.mxu0 %v631
      %1473 = vmatpush.msra.mxu0 %v629
      %1474 = vmatpush.msra.mxu0 %v627
      %1475 = vmatpush.msra.mxu0 %v625
      %1476 = vmatpush.msra.mxu0 %v623
      %1477 = vmatpush.msra.mxu0 %v621
      %1478 = vmatpush.msra.mxu0 %v619
      %1479 = vmatpush.msra.mxu0 %v617
      %1480 = vmatpush.msra.mxu0 %v615
      %1481 = vmatpush.msra.mxu0 %v613
      %1482 = vmatpush.msra.mxu0 %v611
      %1483 = vmatpush.msra.mxu0 %v609
      %1484 = vmatpush.msra.mxu0 %v607
      %1485 = vmatpush.msra.mxu0 %v605
      %1486 = vmatmul.f32.gmra.mxu0 %v264
      %v1487 = vpop.f32.mrf.mxu0
      %v1488 = vadd.f32 %v1468, %v1487
      %1489 = vdwg.mxu0
      %1490 = vmatpush.msra.mxu0 %v667
      %1491 = vmatpush.msra.mxu0 %v665
      %1492 = vmatpush.msra.mxu0 %v663
      %1493 = vmatpush.msra.mxu0 %v661
      %1494 = vmatpush.msra.mxu0 %v659
      %1495 = vmatpush.msra.mxu0 %v657
      %1496 = vmatpush.msra.mxu0 %v655
      %1497 = vmatpush.msra.mxu0 %v653
      %1498 = vmatpush.msra.mxu0 %v651
      %1499 = vmatpush.msra.mxu0 %v649
      %1500 = vmatpush.msra.mxu0 %v647
      %1501 = vmatpush.msra.mxu0 %v645
      %1502 = vmatpush.msra.mxu0 %v643
      %1503 = vmatpush.msra.mxu0 %v641
      %1504 = vmatpush.msra.mxu0 %v639
      %1505 = vmatpush.msra.mxu0 %v637
      %1506 = vmatmul.f32.gmra.mxu0 %v277
      %v1507 = vpop.f32.mrf.mxu0
      %v1508 = vadd.f32 %v1488, %v1507
      %1509 = vdwg.mxu0
      %1510 = vmatpush.msra.mxu0 %v699
      %1511 = vmatpush.msra.mxu0 %v697
      %1512 = vmatpush.msra.mxu0 %v695
      %1513 = vmatpush.msra.mxu0 %v693
      %1514 = vmatpush.msra.mxu0 %v691
      %1515 = vmatpush.msra.mxu0 %v689
      %1516 = vmatpush.msra.mxu0 %v687
      %1517 = vmatpush.msra.mxu0 %v685
      %1518 = vmatpush.msra.mxu0 %v683
      %1519 = vmatpush.msra.mxu0 %v681
      %1520 = vmatpush.msra.mxu0 %v679
      %1521 = vmatpush.msra.mxu0 %v677
      %1522 = vmatpush.msra.mxu0 %v675
      %1523 = vmatpush.msra.mxu0 %v673
      %1524 = vmatpush.msra.mxu0 %v671
      %1525 = vmatpush.msra.mxu0 %v669
      %1526 = vmatmul.f32.gmra.mxu0 %v280
      %v1527 = vpop.f32.mrf.mxu0
      %v1528 = vadd.f32 %v1508, %v1527
      %1529 = vdwg.mxu0
      %1530 = vmatpush.msra.mxu0 0.0
      %1531 = vmatpush.msra.mxu0 0.0
      %1532 = vmatpush.msra.mxu0 0.0
      %1533 = vmatpush.msra.mxu0 0.0
      %1534 = vmatpush.msra.mxu0 0.0
      %1535 = vmatpush.msra.mxu0 0.0
      %1536 = vmatpush.msra.mxu0 0.0
      %1537 = vmatpush.msra.mxu0 0.0
      %1538 = vmatpush.msra.mxu0 0.0
      %1539 = vmatpush.msra.mxu0 0.0
      %1540 = vmatpush.msra.mxu0 0.0
      %1541 = vmatpush.msra.mxu0 0.0
      %1542 = vmatpush.msra.mxu0 %v707
      %1543 = vmatpush.msra.mxu0 %v705
      %1544 = vmatpush.msra.mxu0 %v703
      %1545 = vmatpush.msra.mxu0 %v701
      %1546 = vmatmul.f32.gmra.mxu0 %v1068
      %v1547 = vpop.f32.mrf.mxu0
      %v1548 = vadd.f32 %v1528, %v1547
      %1549 = vdwg.mxu0
      %1550 = vmatpush.msra.mxu0 %v738
      %1551 = vmatpush.msra.mxu0 %v736
      %1552 = vmatpush.msra.mxu0 %v734
      %1553 = vmatpush.msra.mxu0 %v732
      %1554 = vmatpush.msra.mxu0 %v730
      %1555 = vmatpush.msra.mxu0 %v728
      %1556 = vmatpush.msra.mxu0 %v726
      %1557 = vmatpush.msra.mxu0 %v724
      %1558 = vmatpush.msra.mxu0 %v722
      %1559 = vmatpush.msra.mxu0 %v720
      %1560 = vmatpush.msra.mxu0 %v718
      %1561 = vmatpush.msra.mxu0 %v716
      %1562 = vmatpush.msra.mxu0 %v714
      %1563 = vmatpush.msra.mxu0 %v712
      %1564 = vmatpush.msra.mxu0 %v710
      %1565 = vmatpush.msra.mxu0 %v708
      %1566 = vmatmul.f32.gmra.mxu0 %v198
      %v1567 = vpop.f32.mrf.mxu0
      %v1568 = vadd.f32 0.0, %v1567
      %1569 = vdwg.mxu0
      %1570 = vmatpush.msra.mxu0 %v770
      %1571 = vmatpush.msra.mxu0 %v768
      %1572 = vmatpush.msra.mxu0 %v766
      %1573 = vmatpush.msra.mxu0 %v764
      %1574 = vmatpush.msra.mxu0 %v762
      %1575 = vmatpush.msra.mxu0 %v760
      %1576 = vmatpush.msra.mxu0 %v758
      %1577 = vmatpush.msra.mxu0 %v756
      %1578 = vmatpush.msra.mxu0 %v754
      %1579 = vmatpush.msra.mxu0 %v752
      %1580 = vmatpush.msra.mxu0 %v750
      %1581 = vmatpush.msra.mxu0 %v748
      %1582 = vmatpush.msra.mxu0 %v746
      %1583 = vmatpush.msra.mxu0 %v744
      %1584 = vmatpush.msra.mxu0 %v742
      %1585 = vmatpush.msra.mxu0 %v740
      %1586 = vmatmul.f32.gmra.mxu0 %v199
      %v1587 = vpop.f32.mrf.mxu0
      %v1588 = vadd.f32 %v1568, %v1587
      %1589 = vdwg.mxu0
      %1590 = vmatpush.msra.mxu0 %v802
      %1591 = vmatpush.msra.mxu0 %v800
      %1592 = vmatpush.msra.mxu0 %v798
      %1593 = vmatpush.msra.mxu0 %v796
      %1594 = vmatpush.msra.mxu0 %v794
      %1595 = vmatpush.msra.mxu0 %v792
      %1596 = vmatpush.msra.mxu0 %v790
      %1597 = vmatpush.msra.mxu0 %v788
      %1598 = vmatpush.msra.mxu0 %v786
      %1599 = vmatpush.msra.mxu0 %v784
      %1600 = vmatpush.msra.mxu0 %v782
      %1601 = vmatpush.msra.mxu0 %v780
      %1602 = vmatpush.msra.mxu0 %v778
      %1603 = vmatpush.msra.mxu0 %v776
      %1604 = vmatpush.msra.mxu0 %v774
      %1605 = vmatpush.msra.mxu0 %v772
      %1606 = vmatmul.f32.gmra.mxu0 %v286
      %v1607 = vpop.f32.mrf.mxu0
      %v1608 = vadd.f32 %v1588, %v1607
      %1609 = vdwg.mxu0
      %1610 = vmatpush.msra.mxu0 %v834
      %1611 = vmatpush.msra.mxu0 %v832
      %1612 = vmatpush.msra.mxu0 %v830
      %1613 = vmatpush.msra.mxu0 %v828
      %1614 = vmatpush.msra.mxu0 %v826
      %1615 = vmatpush.msra.mxu0 %v824
      %1616 = vmatpush.msra.mxu0 %v822
      %1617 = vmatpush.msra.mxu0 %v820
      %1618 = vmatpush.msra.mxu0 %v818
      %1619 = vmatpush.msra.mxu0 %v816
      %1620 = vmatpush.msra.mxu0 %v814
      %1621 = vmatpush.msra.mxu0 %v812
      %1622 = vmatpush.msra.mxu0 %v810
      %1623 = vmatpush.msra.mxu0 %v808
      %1624 = vmatpush.msra.mxu0 %v806
      %1625 = vmatpush.msra.mxu0 %v804
      %1626 = vmatmul.f32.gmra.mxu0 %v227
      %v1627 = vpop.f32.mrf.mxu0
      %v1628 = vadd.f32 %v1608, %v1627
      %1629 = vdwg.mxu0
      %1630 = vmatpush.msra.mxu0 %v866
      %1631 = vmatpush.msra.mxu0 %v864
      %1632 = vmatpush.msra.mxu0 %v862
      %1633 = vmatpush.msra.mxu0 %v860
      %1634 = vmatpush.msra.mxu0 %v858
      %1635 = vmatpush.msra.mxu0 %v856
      %1636 = vmatpush.msra.mxu0 %v854
      %1637 = vmatpush.msra.mxu0 %v852
      %1638 = vmatpush.msra.mxu0 %v850
      %1639 = vmatpush.msra.mxu0 %v848
      %1640 = vmatpush.msra.mxu0 %v846
      %1641 = vmatpush.msra.mxu0 %v844
      %1642 = vmatpush.msra.mxu0 %v842
      %1643 = vmatpush.msra.mxu0 %v840
      %1644 = vmatpush.msra.mxu0 %v838
      %1645 = vmatpush.msra.mxu0 %v836
      %1646 = vmatmul.f32.gmra.mxu0 %v287
      %v1647 = vpop.f32.mrf.mxu0
      %v1648 = vadd.f32 %v1628, %v1647
      %1649 = vdwg.mxu0
      %1650 = vmatpush.msra.mxu0 %v898
      %1651 = vmatpush.msra.mxu0 %v896
      %1652 = vmatpush.msra.mxu0 %v894
      %1653 = vmatpush.msra.mxu0 %v892
      %1654 = vmatpush.msra.mxu0 %v890
      %1655 = vmatpush.msra.mxu0 %v888
      %1656 = vmatpush.msra.mxu0 %v886
      %1657 = vmatpush.msra.mxu0 %v884
      %1658 = vmatpush.msra.mxu0 %v882
      %1659 = vmatpush.msra.mxu0 %v880
      %1660 = vmatpush.msra.mxu0 %v878
      %1661 = vmatpush.msra.mxu0 %v876
      %1662 = vmatpush.msra.mxu0 %v874
      %1663 = vmatpush.msra.mxu0 %v872
      %1664 = vmatpush.msra.mxu0 %v870
      %1665 = vmatpush.msra.mxu0 %v868
      %1666 = vmatmul.f32.gmra.mxu0 %v245
      %v1667 = vpop.f32.mrf.mxu0
      %v1668 = vadd.f32 %v1648, %v1667
      %1669 = vdwg.mxu0
      %1670 = vmatpush.msra.mxu0 %v930
      %1671 = vmatpush.msra.mxu0 %v928
      %1672 = vmatpush.msra.mxu0 %v926
      %1673 = vmatpush.msra.mxu0 %v924
      %1674 = vmatpush.msra.mxu0 %v922
      %1675 = vmatpush.msra.mxu0 %v920
      %1676 = vmatpush.msra.mxu0 %v918
      %1677 = vmatpush.msra.mxu0 %v916
      %1678 = vmatpush.msra.mxu0 %v914
      %1679 = vmatpush.msra.mxu0 %v912
      %1680 = vmatpush.msra.mxu0 %v910
      %1681 = vmatpush.msra.mxu0 %v908
      %1682 = vmatpush.msra.mxu0 %v906
      %1683 = vmatpush.msra.mxu0 %v904
      %1684 = vmatpush.msra.mxu0 %v902
      %1685 = vmatpush.msra.mxu0 %v900
      %1686 = vmatmul.f32.gmra.mxu0 %v288
      %v1687 = vpop.f32.mrf.mxu0
      %v1688 = vadd.f32 %v1668, %v1687
      %1689 = vdwg.mxu0
      %1690 = vmatpush.msra.mxu0 %v962
      %1691 = vmatpush.msra.mxu0 %v960
      %1692 = vmatpush.msra.mxu0 %v958
      %1693 = vmatpush.msra.mxu0 %v956
      %1694 = vmatpush.msra.mxu0 %v954
      %1695 = vmatpush.msra.mxu0 %v952
      %1696 = vmatpush.msra.mxu0 %v950
      %1697 = vmatpush.msra.mxu0 %v948
      %1698 = vmatpush.msra.mxu0 %v946
      %1699 = vmatpush.msra.mxu0 %v944
      %1700 = vmatpush.msra.mxu0 %v942
      %1701 = vmatpush.msra.mxu0 %v940
      %1702 = vmatpush.msra.mxu0 %v938
      %1703 = vmatpush.msra.mxu0 %v936
      %1704 = vmatpush.msra.mxu0 %v934
      %1705 = vmatpush.msra.mxu0 %v932
      %1706 = vmatmul.f32.gmra.mxu0 %v263
      %v1707 = vpop.f32.mrf.mxu0
      %v1708 = vadd.f32 %v1688, %v1707
      %1709 = vdwg.mxu0
      %1710 = vmatpush.msra.mxu0 %v994
      %1711 = vmatpush.msra.mxu0 %v992
      %1712 = vmatpush.msra.mxu0 %v990
      %1713 = vmatpush.msra.mxu0 %v988
      %1714 = vmatpush.msra.mxu0 %v986
      %1715 = vmatpush.msra.mxu0 %v984
      %1716 = vmatpush.msra.mxu0 %v982
      %1717 = vmatpush.msra.mxu0 %v980
      %1718 = vmatpush.msra.mxu0 %v978
      %1719 = vmatpush.msra.mxu0 %v976
      %1720 = vmatpush.msra.mxu0 %v974
      %1721 = vmatpush.msra.mxu0 %v972
      %1722 = vmatpush.msra.mxu0 %v970
      %1723 = vmatpush.msra.mxu0 %v968
      %1724 = vmatpush.msra.mxu0 %v966
      %1725 = vmatpush.msra.mxu0 %v964
      %1726 = vmatmul.f32.gmra.mxu0 %v264
      %v1727 = vpop.f32.mrf.mxu0
      %v1728 = vadd.f32 %v1708, %v1727
      %1729 = vdwg.mxu0
      %1730 = vmatpush.msra.mxu0 %v1026
      %1731 = vmatpush.msra.mxu0 %v1024
      %1732 = vmatpush.msra.mxu0 %v1022
      %1733 = vmatpush.msra.mxu0 %v1020
      %1734 = vmatpush.msra.mxu0 %v1018
      %1735 = vmatpush.msra.mxu0 %v1016
      %1736 = vmatpush.msra.mxu0 %v1014
      %1737 = vmatpush.msra.mxu0 %v1012
      %1738 = vmatpush.msra.mxu0 %v1010
      %1739 = vmatpush.msra.mxu0 %v1008
      %1740 = vmatpush.msra.mxu0 %v1006
      %1741 = vmatpush.msra.mxu0 %v1004
      %1742 = vmatpush.msra.mxu0 %v1002
      %1743 = vmatpush.msra.mxu0 %v1000
      %1744 = vmatpush.msra.mxu0 %v998
      %1745 = vmatpush.msra.mxu0 %v996
      %1746 = vmatmul.f32.gmra.mxu0 %v277
      %v1747 = vpop.f32.mrf.mxu0
      %v1748 = vadd.f32 %v1728, %v1747
      %1749 = vdwg.mxu0
      %1750 = vmatpush.msra.mxu0 %v1058
      %1751 = vmatpush.msra.mxu0 %v1056
      %1752 = vmatpush.msra.mxu0 %v1054
      %1753 = vmatpush.msra.mxu0 %v1052
      %1754 = vmatpush.msra.mxu0 %v1050
      %1755 = vmatpush.msra.mxu0 %v1048
      %1756 = vmatpush.msra.mxu0 %v1046
      %1757 = vmatpush.msra.mxu0 %v1044
      %1758 = vmatpush.msra.mxu0 %v1042
      %1759 = vmatpush.msra.mxu0 %v1040
      %1760 = vmatpush.msra.mxu0 %v1038
      %1761 = vmatpush.msra.mxu0 %v1036
      %1762 = vmatpush.msra.mxu0 %v1034
      %1763 = vmatpush.msra.mxu0 %v1032
      %1764 = vmatpush.msra.mxu0 %v1030
      %1765 = vmatpush.msra.mxu0 %v1028
      %1766 = vmatmul.f32.gmra.mxu0 %v280
      %v1767 = vpop.f32.mrf.mxu0
      %v1768 = vadd.f32 %v1748, %v1767
      %1769 = vdwg.mxu0
      %1770 = vmatpush.msra.mxu0 0.0
      %1771 = vmatpush.msra.mxu0 0.0
      %1772 = vmatpush.msra.mxu0 0.0
      %1773 = vmatpush.msra.mxu0 0.0
      %1774 = vmatpush.msra.mxu0 0.0
      %1775 = vmatpush.msra.mxu0 0.0
      %1776 = vmatpush.msra.mxu0 0.0
      %1777 = vmatpush.msra.mxu0 0.0
      %1778 = vmatpush.msra.mxu0 0.0
      %1779 = vmatpush.msra.mxu0 0.0
      %1780 = vmatpush.msra.mxu0 0.0
      %1781 = vmatpush.msra.mxu0 0.0
      %1782 = vmatpush.msra.mxu0 %v1066
      %1783 = vmatpush.msra.mxu0 %v1064
      %1784 = vmatpush.msra.mxu0 %v1062
      %1785 = vmatpush.msra.mxu0 %v1060
      %1786 = vmatmul.f32.gmra.mxu0 %v1068
      %v1787 = vpop.f32.mrf.mxu0
      %v1788 = vadd.f32 %v1768, %v1787
      %1789 = vdwg.mxu0
      %1790 = vmatpush.msra.mxu0 %v739
      %1791 = vmatpush.msra.mxu0 %v737
      %1792 = vmatpush.msra.mxu0 %v735
      %1793 = vmatpush.msra.mxu0 %v733
      %1794 = vmatpush.msra.mxu0 %v731
      %1795 = vmatpush.msra.mxu0 %v729
      %1796 = vmatpush.msra.mxu0 %v727
      %1797 = vmatpush.msra.mxu0 %v725
      %1798 = vmatpush.msra.mxu0 %v723
      %1799 = vmatpush.msra.mxu0 %v721
      %1800 = vmatpush.msra.mxu0 %v719
      %1801 = vmatpush.msra.mxu0 %v717
      %1802 = vmatpush.msra.mxu0 %v715
      %1803 = vmatpush.msra.mxu0 %v713
      %1804 = vmatpush.msra.mxu0 %v711
      %1805 = vmatpush.msra.mxu0 %v709
      %1806 = vmatmul.f32.gmra.mxu0 %v198
      %v1807 = vpop.f32.mrf.mxu0
      %v1808 = vadd.f32 0.0, %v1807
      %1809 = vdwg.mxu0
      %1810 = vmatpush.msra.mxu0 %v771
      %1811 = vmatpush.msra.mxu0 %v769
      %1812 = vmatpush.msra.mxu0 %v767
      %1813 = vmatpush.msra.mxu0 %v765
      %1814 = vmatpush.msra.mxu0 %v763
      %1815 = vmatpush.msra.mxu0 %v761
      %1816 = vmatpush.msra.mxu0 %v759
      %1817 = vmatpush.msra.mxu0 %v757
      %1818 = vmatpush.msra.mxu0 %v755
      %1819 = vmatpush.msra.mxu0 %v753
      %1820 = vmatpush.msra.mxu0 %v751
      %1821 = vmatpush.msra.mxu0 %v749
      %1822 = vmatpush.msra.mxu0 %v747
      %1823 = vmatpush.msra.mxu0 %v745
      %1824 = vmatpush.msra.mxu0 %v743
      %1825 = vmatpush.msra.mxu0 %v741
      %1826 = vmatmul.f32.gmra.mxu0 %v199
      %v1827 = vpop.f32.mrf.mxu0
      %v1828 = vadd.f32 %v1808, %v1827
      %1829 = vdwg.mxu0
      %1830 = vmatpush.msra.mxu0 %v803
      %1831 = vmatpush.msra.mxu0 %v801
      %1832 = vmatpush.msra.mxu0 %v799
      %1833 = vmatpush.msra.mxu0 %v797
      %1834 = vmatpush.msra.mxu0 %v795
      %1835 = vmatpush.msra.mxu0 %v793
      %1836 = vmatpush.msra.mxu0 %v791
      %1837 = vmatpush.msra.mxu0 %v789
      %1838 = vmatpush.msra.mxu0 %v787
      %1839 = vmatpush.msra.mxu0 %v785
      %1840 = vmatpush.msra.mxu0 %v783
      %1841 = vmatpush.msra.mxu0 %v781
      %1842 = vmatpush.msra.mxu0 %v779
      %1843 = vmatpush.msra.mxu0 %v777
      %1844 = vmatpush.msra.mxu0 %v775
      %1845 = vmatpush.msra.mxu0 %v773
      %1846 = vmatmul.f32.gmra.mxu0 %v286
      %v1847 = vpop.f32.mrf.mxu0
      %v1848 = vadd.f32 %v1828, %v1847
      %1849 = vdwg.mxu0
      %1850 = vmatpush.msra.mxu0 %v835
      %1851 = vmatpush.msra.mxu0 %v833
      %1852 = vmatpush.msra.mxu0 %v831
      %1853 = vmatpush.msra.mxu0 %v829
      %1854 = vmatpush.msra.mxu0 %v827
      %1855 = vmatpush.msra.mxu0 %v825
      %1856 = vmatpush.msra.mxu0 %v823
      %1857 = vmatpush.msra.mxu0 %v821
      %1858 = vmatpush.msra.mxu0 %v819
      %1859 = vmatpush.msra.mxu0 %v817
      %1860 = vmatpush.msra.mxu0 %v815
      %1861 = vmatpush.msra.mxu0 %v813
      %1862 = vmatpush.msra.mxu0 %v811
      %1863 = vmatpush.msra.mxu0 %v809
      %1864 = vmatpush.msra.mxu0 %v807
      %1865 = vmatpush.msra.mxu0 %v805
      %1866 = vmatmul.f32.gmra.mxu0 %v227
      %v1867 = vpop.f32.mrf.mxu0
      %v1868 = vadd.f32 %v1848, %v1867
      %1869 = vdwg.mxu0
      %1870 = vmatpush.msra.mxu0 %v867
      %1871 = vmatpush.msra.mxu0 %v865
      %1872 = vmatpush.msra.mxu0 %v863
      %1873 = vmatpush.msra.mxu0 %v861
      %1874 = vmatpush.msra.mxu0 %v859
      %1875 = vmatpush.msra.mxu0 %v857
      %1876 = vmatpush.msra.mxu0 %v855
      %1877 = vmatpush.msra.mxu0 %v853
      %1878 = vmatpush.msra.mxu0 %v851
      %1879 = vmatpush.msra.mxu0 %v849
      %1880 = vmatpush.msra.mxu0 %v847
      %1881 = vmatpush.msra.mxu0 %v845
      %1882 = vmatpush.msra.mxu0 %v843
      %1883 = vmatpush.msra.mxu0 %v841
      %1884 = vmatpush.msra.mxu0 %v839
      %1885 = vmatpush.msra.mxu0 %v837
      %1886 = vmatmul.f32.gmra.mxu0 %v287
      %v1887 = vpop.f32.mrf.mxu0
      %v1888 = vadd.f32 %v1868, %v1887
      %1889 = vdwg.mxu0
      %1890 = vmatpush.msra.mxu0 %v899
      %1891 = vmatpush.msra.mxu0 %v897
      %1892 = vmatpush.msra.mxu0 %v895
      %1893 = vmatpush.msra.mxu0 %v893
      %1894 = vmatpush.msra.mxu0 %v891
      %1895 = vmatpush.msra.mxu0 %v889
      %1896 = vmatpush.msra.mxu0 %v887
      %1897 = vmatpush.msra.mxu0 %v885
      %1898 = vmatpush.msra.mxu0 %v883
      %1899 = vmatpush.msra.mxu0 %v881
      %1900 = vmatpush.msra.mxu0 %v879
      %1901 = vmatpush.msra.mxu0 %v877
      %1902 = vmatpush.msra.mxu0 %v875
      %1903 = vmatpush.msra.mxu0 %v873
      %1904 = vmatpush.msra.mxu0 %v871
      %1905 = vmatpush.msra.mxu0 %v869
      %1906 = vmatmul.f32.gmra.mxu0 %v245
      %v1907 = vpop.f32.mrf.mxu0
      %v1908 = vadd.f32 %v1888, %v1907
      %1909 = vdwg.mxu0
      %1910 = vmatpush.msra.mxu0 %v931
      %1911 = vmatpush.msra.mxu0 %v929
      %1912 = vmatpush.msra.mxu0 %v927
      %1913 = vmatpush.msra.mxu0 %v925
      %1914 = vmatpush.msra.mxu0 %v923
      %1915 = vmatpush.msra.mxu0 %v921
      %1916 = vmatpush.msra.mxu0 %v919
      %1917 = vmatpush.msra.mxu0 %v917
      %1918 = vmatpush.msra.mxu0 %v915
      %1919 = vmatpush.msra.mxu0 %v913
      %1920 = vmatpush.msra.mxu0 %v911
      %1921 = vmatpush.msra.mxu0 %v909
      %1922 = vmatpush.msra.mxu0 %v907
      %1923 = vmatpush.msra.mxu0 %v905
      %1924 = vmatpush.msra.mxu0 %v903
      %1925 = vmatpush.msra.mxu0 %v901
      %1926 = vmatmul.f32.gmra.mxu0 %v288
      %v1927 = vpop.f32.mrf.mxu0
      %v1928 = vadd.f32 %v1908, %v1927
      %1929 = vdwg.mxu0
      %1930 = vmatpush.msra.mxu0 %v963
      %1931 = vmatpush.msra.mxu0 %v961
      %1932 = vmatpush.msra.mxu0 %v959
      %1933 = vmatpush.msra.mxu0 %v957
      %1934 = vmatpush.msra.mxu0 %v955
      %1935 = vmatpush.msra.mxu0 %v953
      %1936 = vmatpush.msra.mxu0 %v951
      %1937 = vmatpush.msra.mxu0 %v949
      %1938 = vmatpush.msra.mxu0 %v947
      %1939 = vmatpush.msra.mxu0 %v945
      %1940 = vmatpush.msra.mxu0 %v943
      %1941 = vmatpush.msra.mxu0 %v941
      %1942 = vmatpush.msra.mxu0 %v939
      %1943 = vmatpush.msra.mxu0 %v937
      %1944 = vmatpush.msra.mxu0 %v935
      %1945 = vmatpush.msra.mxu0 %v933
      %1946 = vmatmul.f32.gmra.mxu0 %v263
      %v1947 = vpop.f32.mrf.mxu0
      %v1948 = vadd.f32 %v1928, %v1947
      %1949 = vdwg.mxu0
      %1950 = vmatpush.msra.mxu0 %v995
      %1951 = vmatpush.msra.mxu0 %v993
      %1952 = vmatpush.msra.mxu0 %v991
      %1953 = vmatpush.msra.mxu0 %v989
      %1954 = vmatpush.msra.mxu0 %v987
      %1955 = vmatpush.msra.mxu0 %v985
      %1956 = vmatpush.msra.mxu0 %v983
      %1957 = vmatpush.msra.mxu0 %v981
      %1958 = vmatpush.msra.mxu0 %v979
      %1959 = vmatpush.msra.mxu0 %v977
      %1960 = vmatpush.msra.mxu0 %v975
      %1961 = vmatpush.msra.mxu0 %v973
      %1962 = vmatpush.msra.mxu0 %v971
      %1963 = vmatpush.msra.mxu0 %v969
      %1964 = vmatpush.msra.mxu0 %v967
      %1965 = vmatpush.msra.mxu0 %v965
      %1966 = vmatmul.f32.gmra.mxu0 %v264
      %v1967 = vpop.f32.mrf.mxu0
      %v1968 = vadd.f32 %v1948, %v1967
      %1969 = vdwg.mxu0
      %1970 = vmatpush.msra.mxu0 %v1027
      %1971 = vmatpush.msra.mxu0 %v1025
      %1972 = vmatpush.msra.mxu0 %v1023
      %1973 = vmatpush.msra.mxu0 %v1021
      %1974 = vmatpush.msra.mxu0 %v1019
      %1975 = vmatpush.msra.mxu0 %v1017
      %1976 = vmatpush.msra.mxu0 %v1015
      %1977 = vmatpush.msra.mxu0 %v1013
      %1978 = vmatpush.msra.mxu0 %v1011
      %1979 = vmatpush.msra.mxu0 %v1009
      %1980 = vmatpush.msra.mxu0 %v1007
      %1981 = vmatpush.msra.mxu0 %v1005
      %1982 = vmatpush.msra.mxu0 %v1003
      %1983 = vmatpush.msra.mxu0 %v1001
      %1984 = vmatpush.msra.mxu0 %v999
      %1985 = vmatpush.msra.mxu0 %v997
      %1986 = vmatmul.f32.gmra.mxu0 %v277
      %v1987 = vpop.f32.mrf.mxu0
      %v1988 = vadd.f32 %v1968, %v1987
      %1989 = vdwg.mxu0
      %1990 = vmatpush.msra.mxu0 %v1059
      %1991 = vmatpush.msra.mxu0 %v1057
      %1992 = vmatpush.msra.mxu0 %v1055
      %1993 = vmatpush.msra.mxu0 %v1053
      %1994 = vmatpush.msra.mxu0 %v1051
      %1995 = vmatpush.msra.mxu0 %v1049
      %1996 = vmatpush.msra.mxu0 %v1047
      %1997 = vmatpush.msra.mxu0 %v1045
      %1998 = vmatpush.msra.mxu0 %v1043
      %1999 = vmatpush.msra.mxu0 %v1041
      %2000 = vmatpush.msra.mxu0 %v1039
      %2001 = vmatpush.msra.mxu0 %v1037
      %2002 = vmatpush.msra.mxu0 %v1035
      %2003 = vmatpush.msra.mxu0 %v1033
      %2004 = vmatpush.msra.mxu0 %v1031
      %2005 = vmatpush.msra.mxu0 %v1029
      %2006 = vmatmul.f32.gmra.mxu0 %v280
      %v2007 = vpop.f32.mrf.mxu0
      %v2008 = vadd.f32 %v1988, %v2007
      %2009 = vdwg.mxu0
      %2010 = vmatpush.msra.mxu0 0.0
      %2011 = vmatpush.msra.mxu0 0.0
      %2012 = vmatpush.msra.mxu0 0.0
      %2013 = vmatpush.msra.mxu0 0.0
      %2014 = vmatpush.msra.mxu0 0.0
      %2015 = vmatpush.msra.mxu0 0.0
      %2016 = vmatpush.msra.mxu0 0.0
      %2017 = vmatpush.msra.mxu0 0.0
      %2018 = vmatpush.msra.mxu0 0.0
      %2019 = vmatpush.msra.mxu0 0.0
      %2020 = vmatpush.msra.mxu0 0.0
      %2021 = vmatpush.msra.mxu0 0.0
      %2022 = vmatpush.msra.mxu0 %v1067
      %2023 = vmatpush.msra.mxu0 %v1065
      %2024 = vmatpush.msra.mxu0 %v1063
      %2025 = vmatpush.msra.mxu0 %v1061
      %2026 = vmatmul.f32.gmra.mxu0 %v1068
      %v2027 = vpop.f32.mrf.mxu0
      %v2028 = vadd.f32 %v2008, %v2027
      %2029 = vdwg.mxu0
      %v2030 = vmax.f32 %v1308, %v1788
      %v2031 = vmax.f32 %v1548, %v2028
      %v2032 = vsel %vm226, %v342, 0
      %2034 = vmatpush.msra.mxu0 %v378
      %2035 = vmatpush.msra.mxu0 %v376
      %2036 = vmatpush.msra.mxu0 %v374
      %2037 = vmatpush.msra.mxu0 %v372
      %2038 = vmatpush.msra.mxu0 %v370
      %2039 = vmatpush.msra.mxu0 %v368
      %2040 = vmatpush.msra.mxu0 %v366
      %2041 = vmatpush.msra.mxu0 %v364
      %2042 = vmatpush.msra.mxu0 %v362
      %2043 = vmatpush.msra.mxu0 %v360
      %2044 = vmatpush.msra.mxu0 %v358
      %2045 = vmatpush.msra.mxu0 %v356
      %2046 = vmatpush.msra.mxu0 %v354
      %2047 = vmatpush.msra.mxu0 %v352
      %2048 = vmatpush.msra.mxu0 %v350
      %2049 = vmatpush.msra.mxu0 %v348
      %2050 = vmatmul.f32.gmra.mxu0 %v202
      %v2051 = vpop.f32.mrf.mxu0
      %v2052 = vadd.f32 0.0, %v2051
      %2053 = vdwg.mxu0
      %2054 = vmatpush.msra.mxu0 %v410
      %2055 = vmatpush.msra.mxu0 %v408
      %2056 = vmatpush.msra.mxu0 %v406
      %2057 = vmatpush.msra.mxu0 %v404
      %2058 = vmatpush.msra.mxu0 %v402
      %2059 = vmatpush.msra.mxu0 %v400
      %2060 = vmatpush.msra.mxu0 %v398
      %2061 = vmatpush.msra.mxu0 %v396
      %2062 = vmatpush.msra.mxu0 %v394
      %2063 = vmatpush.msra.mxu0 %v392
      %2064 = vmatpush.msra.mxu0 %v390
      %2065 = vmatpush.msra.mxu0 %v388
      %2066 = vmatpush.msra.mxu0 %v386
      %2067 = vmatpush.msra.mxu0 %v384
      %2068 = vmatpush.msra.mxu0 %v382
      %2069 = vmatpush.msra.mxu0 %v380
      %2070 = vmatmul.f32.gmra.mxu0 %v203
      %v2071 = vpop.f32.mrf.mxu0
      %v2072 = vadd.f32 %v2052, %v2071
      %2073 = vdwg.mxu0
      %2074 = vmatpush.msra.mxu0 %v442
      %2075 = vmatpush.msra.mxu0 %v440
      %2076 = vmatpush.msra.mxu0 %v438
      %2077 = vmatpush.msra.mxu0 %v436
      %2078 = vmatpush.msra.mxu0 %v434
      %2079 = vmatpush.msra.mxu0 %v432
      %2080 = vmatpush.msra.mxu0 %v430
      %2081 = vmatpush.msra.mxu0 %v428
      %2082 = vmatpush.msra.mxu0 %v426
      %2083 = vmatpush.msra.mxu0 %v424
      %2084 = vmatpush.msra.mxu0 %v422
      %2085 = vmatpush.msra.mxu0 %v420
      %2086 = vmatpush.msra.mxu0 %v418
      %2087 = vmatpush.msra.mxu0 %v416
      %2088 = vmatpush.msra.mxu0 %v414
      %2089 = vmatpush.msra.mxu0 %v412
      %2090 = vmatmul.f32.gmra.mxu0 %v345
      %v2091 = vpop.f32.mrf.mxu0
      %v2092 = vadd.f32 %v2072, %v2091
      %2093 = vdwg.mxu0
      %2094 = vmatpush.msra.mxu0 %v474
      %2095 = vmatpush.msra.mxu0 %v472
      %2096 = vmatpush.msra.mxu0 %v470
      %2097 = vmatpush.msra.mxu0 %v468
      %2098 = vmatpush.msra.mxu0 %v466
      %2099 = vmatpush.msra.mxu0 %v464
      %2100 = vmatpush.msra.mxu0 %v462
      %2101 = vmatpush.msra.mxu0 %v460
      %2102 = vmatpush.msra.mxu0 %v458
      %2103 = vmatpush.msra.mxu0 %v456
      %2104 = vmatpush.msra.mxu0 %v454
      %2105 = vmatpush.msra.mxu0 %v452
      %2106 = vmatpush.msra.mxu0 %v450
      %2107 = vmatpush.msra.mxu0 %v448
      %2108 = vmatpush.msra.mxu0 %v446
      %2109 = vmatpush.msra.mxu0 %v444
      %2110 = vmatmul.f32.gmra.mxu0 %v301
      %v2111 = vpop.f32.mrf.mxu0
      %v2112 = vadd.f32 %v2092, %v2111
      %2113 = vdwg.mxu0
      %2114 = vmatpush.msra.mxu0 %v506
      %2115 = vmatpush.msra.mxu0 %v504
      %2116 = vmatpush.msra.mxu0 %v502
      %2117 = vmatpush.msra.mxu0 %v500
      %2118 = vmatpush.msra.mxu0 %v498
      %2119 = vmatpush.msra.mxu0 %v496
      %2120 = vmatpush.msra.mxu0 %v494
      %2121 = vmatpush.msra.mxu0 %v492
      %2122 = vmatpush.msra.mxu0 %v490
      %2123 = vmatpush.msra.mxu0 %v488
      %2124 = vmatpush.msra.mxu0 %v486
      %2125 = vmatpush.msra.mxu0 %v484
      %2126 = vmatpush.msra.mxu0 %v482
      %2127 = vmatpush.msra.mxu0 %v480
      %2128 = vmatpush.msra.mxu0 %v478
      %2129 = vmatpush.msra.mxu0 %v476
      %2130 = vmatmul.f32.gmra.mxu0 %v346
      %v2131 = vpop.f32.mrf.mxu0
      %v2132 = vadd.f32 %v2112, %v2131
      %2133 = vdwg.mxu0
      %2134 = vmatpush.msra.mxu0 %v538
      %2135 = vmatpush.msra.mxu0 %v536
      %2136 = vmatpush.msra.mxu0 %v534
      %2137 = vmatpush.msra.mxu0 %v532
      %2138 = vmatpush.msra.mxu0 %v530
      %2139 = vmatpush.msra.mxu0 %v528
      %2140 = vmatpush.msra.mxu0 %v526
      %2141 = vmatpush.msra.mxu0 %v524
      %2142 = vmatpush.msra.mxu0 %v522
      %2143 = vmatpush.msra.mxu0 %v520
      %2144 = vmatpush.msra.mxu0 %v518
      %2145 = vmatpush.msra.mxu0 %v516
      %2146 = vmatpush.msra.mxu0 %v514
      %2147 = vmatpush.msra.mxu0 %v512
      %2148 = vmatpush.msra.mxu0 %v510
      %2149 = vmatpush.msra.mxu0 %v508
      %2150 = vmatmul.f32.gmra.mxu0 %v312
      %v2151 = vpop.f32.mrf.mxu0
      %v2152 = vadd.f32 %v2132, %v2151
      %2153 = vdwg.mxu0
      %2154 = vmatpush.msra.mxu0 %v570
      %2155 = vmatpush.msra.mxu0 %v568
      %2156 = vmatpush.msra.mxu0 %v566
      %2157 = vmatpush.msra.mxu0 %v564
      %2158 = vmatpush.msra.mxu0 %v562
      %2159 = vmatpush.msra.mxu0 %v560
      %2160 = vmatpush.msra.mxu0 %v558
      %2161 = vmatpush.msra.mxu0 %v556
      %2162 = vmatpush.msra.mxu0 %v554
      %2163 = vmatpush.msra.mxu0 %v552
      %2164 = vmatpush.msra.mxu0 %v550
      %2165 = vmatpush.msra.mxu0 %v548
      %2166 = vmatpush.msra.mxu0 %v546
      %2167 = vmatpush.msra.mxu0 %v544
      %2168 = vmatpush.msra.mxu0 %v542
      %2169 = vmatpush.msra.mxu0 %v540
      %2170 = vmatmul.f32.gmra.mxu0 %v347
      %v2171 = vpop.f32.mrf.mxu0
      %v2172 = vadd.f32 %v2152, %v2171
      %2173 = vdwg.mxu0
      %2174 = vmatpush.msra.mxu0 %v602
      %2175 = vmatpush.msra.mxu0 %v600
      %2176 = vmatpush.msra.mxu0 %v598
      %2177 = vmatpush.msra.mxu0 %v596
      %2178 = vmatpush.msra.mxu0 %v594
      %2179 = vmatpush.msra.mxu0 %v592
      %2180 = vmatpush.msra.mxu0 %v590
      %2181 = vmatpush.msra.mxu0 %v588
      %2182 = vmatpush.msra.mxu0 %v586
      %2183 = vmatpush.msra.mxu0 %v584
      %2184 = vmatpush.msra.mxu0 %v582
      %2185 = vmatpush.msra.mxu0 %v580
      %2186 = vmatpush.msra.mxu0 %v578
      %2187 = vmatpush.msra.mxu0 %v576
      %2188 = vmatpush.msra.mxu0 %v574
      %2189 = vmatpush.msra.mxu0 %v572
      %2190 = vmatmul.f32.gmra.mxu0 %v323
      %v2191 = vpop.f32.mrf.mxu0
      %v2192 = vadd.f32 %v2172, %v2191
      %2193 = vdwg.mxu0
      %2194 = vmatpush.msra.mxu0 %v634
      %2195 = vmatpush.msra.mxu0 %v632
      %2196 = vmatpush.msra.mxu0 %v630
      %2197 = vmatpush.msra.mxu0 %v628
      %2198 = vmatpush.msra.mxu0 %v626
      %2199 = vmatpush.msra.mxu0 %v624
      %2200 = vmatpush.msra.mxu0 %v622
      %2201 = vmatpush.msra.mxu0 %v620
      %2202 = vmatpush.msra.mxu0 %v618
      %2203 = vmatpush.msra.mxu0 %v616
      %2204 = vmatpush.msra.mxu0 %v614
      %2205 = vmatpush.msra.mxu0 %v612
      %2206 = vmatpush.msra.mxu0 %v610
      %2207 = vmatpush.msra.mxu0 %v608
      %2208 = vmatpush.msra.mxu0 %v606
      %2209 = vmatpush.msra.mxu0 %v604
      %2210 = vmatmul.f32.gmra.mxu0 %v324
      %v2211 = vpop.f32.mrf.mxu0
      %v2212 = vadd.f32 %v2192, %v2211
      %2213 = vdwg.mxu0
      %2214 = vmatpush.msra.mxu0 %v666
      %2215 = vmatpush.msra.mxu0 %v664
      %2216 = vmatpush.msra.mxu0 %v662
      %2217 = vmatpush.msra.mxu0 %v660
      %2218 = vmatpush.msra.mxu0 %v658
      %2219 = vmatpush.msra.mxu0 %v656
      %2220 = vmatpush.msra.mxu0 %v654
      %2221 = vmatpush.msra.mxu0 %v652
      %2222 = vmatpush.msra.mxu0 %v650
      %2223 = vmatpush.msra.mxu0 %v648
      %2224 = vmatpush.msra.mxu0 %v646
      %2225 = vmatpush.msra.mxu0 %v644
      %2226 = vmatpush.msra.mxu0 %v642
      %2227 = vmatpush.msra.mxu0 %v640
      %2228 = vmatpush.msra.mxu0 %v638
      %2229 = vmatpush.msra.mxu0 %v636
      %2230 = vmatmul.f32.gmra.mxu0 %v336
      %v2231 = vpop.f32.mrf.mxu0
      %v2232 = vadd.f32 %v2212, %v2231
      %2233 = vdwg.mxu0
      %2234 = vmatpush.msra.mxu0 %v698
      %2235 = vmatpush.msra.mxu0 %v696
      %2236 = vmatpush.msra.mxu0 %v694
      %2237 = vmatpush.msra.mxu0 %v692
      %2238 = vmatpush.msra.mxu0 %v690
      %2239 = vmatpush.msra.mxu0 %v688
      %2240 = vmatpush.msra.mxu0 %v686
      %2241 = vmatpush.msra.mxu0 %v684
      %2242 = vmatpush.msra.mxu0 %v682
      %2243 = vmatpush.msra.mxu0 %v680
      %2244 = vmatpush.msra.mxu0 %v678
      %2245 = vmatpush.msra.mxu0 %v676
      %2246 = vmatpush.msra.mxu0 %v674
      %2247 = vmatpush.msra.mxu0 %v672
      %2248 = vmatpush.msra.mxu0 %v670
      %2249 = vmatpush.msra.mxu0 %v668
      %2250 = vmatmul.f32.gmra.mxu0 %v339
      %v2251 = vpop.f32.mrf.mxu0
      %v2252 = vadd.f32 %v2232, %v2251
      %2253 = vdwg.mxu0
      %2254 = vmatpush.msra.mxu0 0.0
      %2255 = vmatpush.msra.mxu0 0.0
      %2256 = vmatpush.msra.mxu0 0.0
      %2257 = vmatpush.msra.mxu0 0.0
      %2258 = vmatpush.msra.mxu0 0.0
      %2259 = vmatpush.msra.mxu0 0.0
      %2260 = vmatpush.msra.mxu0 0.0
      %2261 = vmatpush.msra.mxu0 0.0
      %2262 = vmatpush.msra.mxu0 0.0
      %2263 = vmatpush.msra.mxu0 0.0
      %2264 = vmatpush.msra.mxu0 0.0
      %2265 = vmatpush.msra.mxu0 0.0
      %2266 = vmatpush.msra.mxu0 %v706
      %2267 = vmatpush.msra.mxu0 %v704
      %2268 = vmatpush.msra.mxu0 %v702
      %2269 = vmatpush.msra.mxu0 %v700
      %2270 = vmatmul.f32.gmra.mxu0 %v2032
      %v2271 = vpop.f32.mrf.mxu0
      %v2272 = vadd.f32 %v2252, %v2271
      %2273 = vdwg.mxu0
      %2274 = vmatpush.msra.mxu0 %v379
      %2275 = vmatpush.msra.mxu0 %v377
      %2276 = vmatpush.msra.mxu0 %v375
      %2277 = vmatpush.msra.mxu0 %v373
      %2278 = vmatpush.msra.mxu0 %v371
      %2279 = vmatpush.msra.mxu0 %v369
      %2280 = vmatpush.msra.mxu0 %v367
      %2281 = vmatpush.msra.mxu0 %v365
      %2282 = vmatpush.msra.mxu0 %v363
      %2283 = vmatpush.msra.mxu0 %v361
      %2284 = vmatpush.msra.mxu0 %v359
      %2285 = vmatpush.msra.mxu0 %v357
      %2286 = vmatpush.msra.mxu0 %v355
      %2287 = vmatpush.msra.mxu0 %v353
      %2288 = vmatpush.msra.mxu0 %v351
      %2289 = vmatpush.msra.mxu0 %v349
      %2290 = vmatmul.f32.gmra.mxu0 %v202
      %v2291 = vpop.f32.mrf.mxu0
      %v2292 = vadd.f32 0.0, %v2291
      %2293 = vdwg.mxu0
      %2294 = vmatpush.msra.mxu0 %v411
      %2295 = vmatpush.msra.mxu0 %v409
      %2296 = vmatpush.msra.mxu0 %v407
      %2297 = vmatpush.msra.mxu0 %v405
      %2298 = vmatpush.msra.mxu0 %v403
      %2299 = vmatpush.msra.mxu0 %v401
      %2300 = vmatpush.msra.mxu0 %v399
      %2301 = vmatpush.msra.mxu0 %v397
      %2302 = vmatpush.msra.mxu0 %v395
      %2303 = vmatpush.msra.mxu0 %v393
      %2304 = vmatpush.msra.mxu0 %v391
      %2305 = vmatpush.msra.mxu0 %v389
      %2306 = vmatpush.msra.mxu0 %v387
      %2307 = vmatpush.msra.mxu0 %v385
      %2308 = vmatpush.msra.mxu0 %v383
      %2309 = vmatpush.msra.mxu0 %v381
      %2310 = vmatmul.f32.gmra.mxu0 %v203
      %v2311 = vpop.f32.mrf.mxu0
      %v2312 = vadd.f32 %v2292, %v2311
      %2313 = vdwg.mxu0
      %2314 = vmatpush.msra.mxu0 %v443
      %2315 = vmatpush.msra.mxu0 %v441
      %2316 = vmatpush.msra.mxu0 %v439
      %2317 = vmatpush.msra.mxu0 %v437
      %2318 = vmatpush.msra.mxu0 %v435
      %2319 = vmatpush.msra.mxu0 %v433
      %2320 = vmatpush.msra.mxu0 %v431
      %2321 = vmatpush.msra.mxu0 %v429
      %2322 = vmatpush.msra.mxu0 %v427
      %2323 = vmatpush.msra.mxu0 %v425
      %2324 = vmatpush.msra.mxu0 %v423
      %2325 = vmatpush.msra.mxu0 %v421
      %2326 = vmatpush.msra.mxu0 %v419
      %2327 = vmatpush.msra.mxu0 %v417
      %2328 = vmatpush.msra.mxu0 %v415
      %2329 = vmatpush.msra.mxu0 %v413
      %2330 = vmatmul.f32.gmra.mxu0 %v345
      %v2331 = vpop.f32.mrf.mxu0
      %v2332 = vadd.f32 %v2312, %v2331
      %2333 = vdwg.mxu0
      %2334 = vmatpush.msra.mxu0 %v475
      %2335 = vmatpush.msra.mxu0 %v473
      %2336 = vmatpush.msra.mxu0 %v471
      %2337 = vmatpush.msra.mxu0 %v469
      %2338 = vmatpush.msra.mxu0 %v467
      %2339 = vmatpush.msra.mxu0 %v465
      %2340 = vmatpush.msra.mxu0 %v463
      %2341 = vmatpush.msra.mxu0 %v461
      %2342 = vmatpush.msra.mxu0 %v459
      %2343 = vmatpush.msra.mxu0 %v457
      %2344 = vmatpush.msra.mxu0 %v455
      %2345 = vmatpush.msra.mxu0 %v453
      %2346 = vmatpush.msra.mxu0 %v451
      %2347 = vmatpush.msra.mxu0 %v449
      %2348 = vmatpush.msra.mxu0 %v447
      %2349 = vmatpush.msra.mxu0 %v445
      %2350 = vmatmul.f32.gmra.mxu0 %v301
      %v2351 = vpop.f32.mrf.mxu0
      %v2352 = vadd.f32 %v2332, %v2351
      %2353 = vdwg.mxu0
      %2354 = vmatpush.msra.mxu0 %v507
      %2355 = vmatpush.msra.mxu0 %v505
      %2356 = vmatpush.msra.mxu0 %v503
      %2357 = vmatpush.msra.mxu0 %v501
      %2358 = vmatpush.msra.mxu0 %v499
      %2359 = vmatpush.msra.mxu0 %v497
      %2360 = vmatpush.msra.mxu0 %v495
      %2361 = vmatpush.msra.mxu0 %v493
      %2362 = vmatpush.msra.mxu0 %v491
      %2363 = vmatpush.msra.mxu0 %v489
      %2364 = vmatpush.msra.mxu0 %v487
      %2365 = vmatpush.msra.mxu0 %v485
      %2366 = vmatpush.msra.mxu0 %v483
      %2367 = vmatpush.msra.mxu0 %v481
      %2368 = vmatpush.msra.mxu0 %v479
      %2369 = vmatpush.msra.mxu0 %v477
      %2370 = vmatmul.f32.gmra.mxu0 %v346
      %v2371 = vpop.f32.mrf.mxu0
      %v2372 = vadd.f32 %v2352, %v2371
      %2373 = vdwg.mxu0
      %2374 = vmatpush.msra.mxu0 %v539
      %2375 = vmatpush.msra.mxu0 %v537
      %2376 = vmatpush.msra.mxu0 %v535
      %2377 = vmatpush.msra.mxu0 %v533
      %2378 = vmatpush.msra.mxu0 %v531
      %2379 = vmatpush.msra.mxu0 %v529
      %2380 = vmatpush.msra.mxu0 %v527
      %2381 = vmatpush.msra.mxu0 %v525
      %2382 = vmatpush.msra.mxu0 %v523
      %2383 = vmatpush.msra.mxu0 %v521
      %2384 = vmatpush.msra.mxu0 %v519
      %2385 = vmatpush.msra.mxu0 %v517
      %2386 = vmatpush.msra.mxu0 %v515
      %2387 = vmatpush.msra.mxu0 %v513
      %2388 = vmatpush.msra.mxu0 %v511
      %2389 = vmatpush.msra.mxu0 %v509
      %2390 = vmatmul.f32.gmra.mxu0 %v312
      %v2391 = vpop.f32.mrf.mxu0
      %v2392 = vadd.f32 %v2372, %v2391
      %2393 = vdwg.mxu0
      %2394 = vmatpush.msra.mxu0 %v571
      %2395 = vmatpush.msra.mxu0 %v569
      %2396 = vmatpush.msra.mxu0 %v567
      %2397 = vmatpush.msra.mxu0 %v565
      %2398 = vmatpush.msra.mxu0 %v563
      %2399 = vmatpush.msra.mxu0 %v561
      %2400 = vmatpush.msra.mxu0 %v559
      %2401 = vmatpush.msra.mxu0 %v557
      %2402 = vmatpush.msra.mxu0 %v555
      %2403 = vmatpush.msra.mxu0 %v553
      %2404 = vmatpush.msra.mxu0 %v551
      %2405 = vmatpush.msra.mxu0 %v549
      %2406 = vmatpush.msra.mxu0 %v547
      %2407 = vmatpush.msra.mxu0 %v545
      %2408 = vmatpush.msra.mxu0 %v543
      %2409 = vmatpush.msra.mxu0 %v541
      %2410 = vmatmul.f32.gmra.mxu0 %v347
      %v2411 = vpop.f32.mrf.mxu0
      %v2412 = vadd.f32 %v2392, %v2411
      %2413 = vdwg.mxu0
      %2414 = vmatpush.msra.mxu0 %v603
      %2415 = vmatpush.msra.mxu0 %v601
      %2416 = vmatpush.msra.mxu0 %v599
      %2417 = vmatpush.msra.mxu0 %v597
      %2418 = vmatpush.msra.mxu0 %v595
      %2419 = vmatpush.msra.mxu0 %v593
      %2420 = vmatpush.msra.mxu0 %v591
      %2421 = vmatpush.msra.mxu0 %v589
      %2422 = vmatpush.msra.mxu0 %v587
      %2423 = vmatpush.msra.mxu0 %v585
      %2424 = vmatpush.msra.mxu0 %v583
      %2425 = vmatpush.msra.mxu0 %v581
      %2426 = vmatpush.msra.mxu0 %v579
      %2427 = vmatpush.msra.mxu0 %v577
      %2428 = vmatpush.msra.mxu0 %v575
      %2429 = vmatpush.msra.mxu0 %v573
      %2430 = vmatmul.f32.gmra.mxu0 %v323
      %v2431 = vpop.f32.mrf.mxu0
      %v2432 = vadd.f32 %v2412, %v2431
      %2433 = vdwg.mxu0
      %2434 = vmatpush.msra.mxu0 %v635
      %2435 = vmatpush.msra.mxu0 %v633
      %2436 = vmatpush.msra.mxu0 %v631
      %2437 = vmatpush.msra.mxu0 %v629
      %2438 = vmatpush.msra.mxu0 %v627
      %2439 = vmatpush.msra.mxu0 %v625
      %2440 = vmatpush.msra.mxu0 %v623
      %2441 = vmatpush.msra.mxu0 %v621
      %2442 = vmatpush.msra.mxu0 %v619
      %2443 = vmatpush.msra.mxu0 %v617
      %2444 = vmatpush.msra.mxu0 %v615
      %2445 = vmatpush.msra.mxu0 %v613
      %2446 = vmatpush.msra.mxu0 %v611
      %2447 = vmatpush.msra.mxu0 %v609
      %2448 = vmatpush.msra.mxu0 %v607
      %2449 = vmatpush.msra.mxu0 %v605
      %2450 = vmatmul.f32.gmra.mxu0 %v324
      %v2451 = vpop.f32.mrf.mxu0
      %v2452 = vadd.f32 %v2432, %v2451
      %2453 = vdwg.mxu0
      %2454 = vmatpush.msra.mxu0 %v667
      %2455 = vmatpush.msra.mxu0 %v665
      %2456 = vmatpush.msra.mxu0 %v663
      %2457 = vmatpush.msra.mxu0 %v661
      %2458 = vmatpush.msra.mxu0 %v659
      %2459 = vmatpush.msra.mxu0 %v657
      %2460 = vmatpush.msra.mxu0 %v655
      %2461 = vmatpush.msra.mxu0 %v653
      %2462 = vmatpush.msra.mxu0 %v651
      %2463 = vmatpush.msra.mxu0 %v649
      %2464 = vmatpush.msra.mxu0 %v647
      %2465 = vmatpush.msra.mxu0 %v645
      %2466 = vmatpush.msra.mxu0 %v643
      %2467 = vmatpush.msra.mxu0 %v641
      %2468 = vmatpush.msra.mxu0 %v639
      %2469 = vmatpush.msra.mxu0 %v637
      %2470 = vmatmul.f32.gmra.mxu0 %v336
      %v2471 = vpop.f32.mrf.mxu0
      %v2472 = vadd.f32 %v2452, %v2471
      %2473 = vdwg.mxu0
      %2474 = vmatpush.msra.mxu0 %v699
      %2475 = vmatpush.msra.mxu0 %v697
      %2476 = vmatpush.msra.mxu0 %v695
      %2477 = vmatpush.msra.mxu0 %v693
      %2478 = vmatpush.msra.mxu0 %v691
      %2479 = vmatpush.msra.mxu0 %v689
      %2480 = vmatpush.msra.mxu0 %v687
      %2481 = vmatpush.msra.mxu0 %v685
      %2482 = vmatpush.msra.mxu0 %v683
      %2483 = vmatpush.msra.mxu0 %v681
      %2484 = vmatpush.msra.mxu0 %v679
      %2485 = vmatpush.msra.mxu0 %v677
      %2486 = vmatpush.msra.mxu0 %v675
      %2487 = vmatpush.msra.mxu0 %v673
      %2488 = vmatpush.msra.mxu0 %v671
      %2489 = vmatpush.msra.mxu0 %v669
      %2490 = vmatmul.f32.gmra.mxu0 %v339
      %v2491 = vpop.f32.mrf.mxu0
      %v2492 = vadd.f32 %v2472, %v2491
      %2493 = vdwg.mxu0
      %2494 = vmatpush.msra.mxu0 0.0
      %2495 = vmatpush.msra.mxu0 0.0
      %2496 = vmatpush.msra.mxu0 0.0
      %2497 = vmatpush.msra.mxu0 0.0
      %2498 = vmatpush.msra.mxu0 0.0
      %2499 = vmatpush.msra.mxu0 0.0
      %2500 = vmatpush.msra.mxu0 0.0
      %2501 = vmatpush.msra.mxu0 0.0
      %2502 = vmatpush.msra.mxu0 0.0
      %2503 = vmatpush.msra.mxu0 0.0
      %2504 = vmatpush.msra.mxu0 0.0
      %2505 = vmatpush.msra.mxu0 0.0
      %2506 = vmatpush.msra.mxu0 %v707
      %2507 = vmatpush.msra.mxu0 %v705
      %2508 = vmatpush.msra.mxu0 %v703
      %2509 = vmatpush.msra.mxu0 %v701
      %2510 = vmatmul.f32.gmra.mxu0 %v2032
      %v2511 = vpop.f32.mrf.mxu0
      %v2512 = vadd.f32 %v2492, %v2511
      %2513 = vdwg.mxu0
      %2514 = vmatpush.msra.mxu0 %v738
      %2515 = vmatpush.msra.mxu0 %v736
      %2516 = vmatpush.msra.mxu0 %v734
      %2517 = vmatpush.msra.mxu0 %v732
      %2518 = vmatpush.msra.mxu0 %v730
      %2519 = vmatpush.msra.mxu0 %v728
      %2520 = vmatpush.msra.mxu0 %v726
      %2521 = vmatpush.msra.mxu0 %v724
      %2522 = vmatpush.msra.mxu0 %v722
      %2523 = vmatpush.msra.mxu0 %v720
      %2524 = vmatpush.msra.mxu0 %v718
      %2525 = vmatpush.msra.mxu0 %v716
      %2526 = vmatpush.msra.mxu0 %v714
      %2527 = vmatpush.msra.mxu0 %v712
      %2528 = vmatpush.msra.mxu0 %v710
      %2529 = vmatpush.msra.mxu0 %v708
      %2530 = vmatmul.f32.gmra.mxu0 %v202
      %v2531 = vpop.f32.mrf.mxu0
      %v2532 = vadd.f32 0.0, %v2531
      %2533 = vdwg.mxu0
      %2534 = vmatpush.msra.mxu0 %v770
      %2535 = vmatpush.msra.mxu0 %v768
      %2536 = vmatpush.msra.mxu0 %v766
      %2537 = vmatpush.msra.mxu0 %v764
      %2538 = vmatpush.msra.mxu0 %v762
      %2539 = vmatpush.msra.mxu0 %v760
      %2540 = vmatpush.msra.mxu0 %v758
      %2541 = vmatpush.msra.mxu0 %v756
      %2542 = vmatpush.msra.mxu0 %v754
      %2543 = vmatpush.msra.mxu0 %v752
      %2544 = vmatpush.msra.mxu0 %v750
      %2545 = vmatpush.msra.mxu0 %v748
      %2546 = vmatpush.msra.mxu0 %v746
      %2547 = vmatpush.msra.mxu0 %v744
      %2548 = vmatpush.msra.mxu0 %v742
      %2549 = vmatpush.msra.mxu0 %v740
      %2550 = vmatmul.f32.gmra.mxu0 %v203
      %v2551 = vpop.f32.mrf.mxu0
      %v2552 = vadd.f32 %v2532, %v2551
      %2553 = vdwg.mxu0
      %2554 = vmatpush.msra.mxu0 %v802
      %2555 = vmatpush.msra.mxu0 %v800
      %2556 = vmatpush.msra.mxu0 %v798
      %2557 = vmatpush.msra.mxu0 %v796
      %2558 = vmatpush.msra.mxu0 %v794
      %2559 = vmatpush.msra.mxu0 %v792
      %2560 = vmatpush.msra.mxu0 %v790
      %2561 = vmatpush.msra.mxu0 %v788
      %2562 = vmatpush.msra.mxu0 %v786
      %2563 = vmatpush.msra.mxu0 %v784
      %2564 = vmatpush.msra.mxu0 %v782
      %2565 = vmatpush.msra.mxu0 %v780
      %2566 = vmatpush.msra.mxu0 %v778
      %2567 = vmatpush.msra.mxu0 %v776
      %2568 = vmatpush.msra.mxu0 %v774
      %2569 = vmatpush.msra.mxu0 %v772
      %2570 = vmatmul.f32.gmra.mxu0 %v345
      %v2571 = vpop.f32.mrf.mxu0
      %v2572 = vadd.f32 %v2552, %v2571
      %2573 = vdwg.mxu0
      %2574 = vmatpush.msra.mxu0 %v834
      %2575 = vmatpush.msra.mxu0 %v832
      %2576 = vmatpush.msra.mxu0 %v830
      %2577 = vmatpush.msra.mxu0 %v828
      %2578 = vmatpush.msra.mxu0 %v826
      %2579 = vmatpush.msra.mxu0 %v824
      %2580 = vmatpush.msra.mxu0 %v822
      %2581 = vmatpush.msra.mxu0 %v820
      %2582 = vmatpush.msra.mxu0 %v818
      %2583 = vmatpush.msra.mxu0 %v816
      %2584 = vmatpush.msra.mxu0 %v814
      %2585 = vmatpush.msra.mxu0 %v812
      %2586 = vmatpush.msra.mxu0 %v810
      %2587 = vmatpush.msra.mxu0 %v808
      %2588 = vmatpush.msra.mxu0 %v806
      %2589 = vmatpush.msra.mxu0 %v804
      %2590 = vmatmul.f32.gmra.mxu0 %v301
      %v2591 = vpop.f32.mrf.mxu0
      %v2592 = vadd.f32 %v2572, %v2591
      %2593 = vdwg.mxu0
      %2594 = vmatpush.msra.mxu0 %v866
      %2595 = vmatpush.msra.mxu0 %v864
      %2596 = vmatpush.msra.mxu0 %v862
      %2597 = vmatpush.msra.mxu0 %v860
      %2598 = vmatpush.msra.mxu0 %v858
      %2599 = vmatpush.msra.mxu0 %v856
      %2600 = vmatpush.msra.mxu0 %v854
      %2601 = vmatpush.msra.mxu0 %v852
      %2602 = vmatpush.msra.mxu0 %v850
      %2603 = vmatpush.msra.mxu0 %v848
      %2604 = vmatpush.msra.mxu0 %v846
      %2605 = vmatpush.msra.mxu0 %v844
      %2606 = vmatpush.msra.mxu0 %v842
      %2607 = vmatpush.msra.mxu0 %v840
      %2608 = vmatpush.msra.mxu0 %v838
      %2609 = vmatpush.msra.mxu0 %v836
      %2610 = vmatmul.f32.gmra.mxu0 %v346
      %v2611 = vpop.f32.mrf.mxu0
      %v2612 = vadd.f32 %v2592, %v2611
      %2613 = vdwg.mxu0
      %2614 = vmatpush.msra.mxu0 %v898
      %2615 = vmatpush.msra.mxu0 %v896
      %2616 = vmatpush.msra.mxu0 %v894
      %2617 = vmatpush.msra.mxu0 %v892
      %2618 = vmatpush.msra.mxu0 %v890
      %2619 = vmatpush.msra.mxu0 %v888
      %2620 = vmatpush.msra.mxu0 %v886
      %2621 = vmatpush.msra.mxu0 %v884
      %2622 = vmatpush.msra.mxu0 %v882
      %2623 = vmatpush.msra.mxu0 %v880
      %2624 = vmatpush.msra.mxu0 %v878
      %2625 = vmatpush.msra.mxu0 %v876
      %2626 = vmatpush.msra.mxu0 %v874
      %2627 = vmatpush.msra.mxu0 %v872
      %2628 = vmatpush.msra.mxu0 %v870
      %2629 = vmatpush.msra.mxu0 %v868
      %2630 = vmatmul.f32.gmra.mxu0 %v312
      %v2631 = vpop.f32.mrf.mxu0
      %v2632 = vadd.f32 %v2612, %v2631
      %2633 = vdwg.mxu0
      %2634 = vmatpush.msra.mxu0 %v930
      %2635 = vmatpush.msra.mxu0 %v928
      %2636 = vmatpush.msra.mxu0 %v926
      %2637 = vmatpush.msra.mxu0 %v924
      %2638 = vmatpush.msra.mxu0 %v922
      %2639 = vmatpush.msra.mxu0 %v920
      %2640 = vmatpush.msra.mxu0 %v918
      %2641 = vmatpush.msra.mxu0 %v916
      %2642 = vmatpush.msra.mxu0 %v914
      %2643 = vmatpush.msra.mxu0 %v912
      %2644 = vmatpush.msra.mxu0 %v910
      %2645 = vmatpush.msra.mxu0 %v908
      %2646 = vmatpush.msra.mxu0 %v906
      %2647 = vmatpush.msra.mxu0 %v904
      %2648 = vmatpush.msra.mxu0 %v902
      %2649 = vmatpush.msra.mxu0 %v900
      %2650 = vmatmul.f32.gmra.mxu0 %v347
      %v2651 = vpop.f32.mrf.mxu0
      %v2652 = vadd.f32 %v2632, %v2651
      %2653 = vdwg.mxu0
      %2654 = vmatpush.msra.mxu0 %v962
      %2655 = vmatpush.msra.mxu0 %v960
      %2656 = vmatpush.msra.mxu0 %v958
      %2657 = vmatpush.msra.mxu0 %v956
      %2658 = vmatpush.msra.mxu0 %v954
      %2659 = vmatpush.msra.mxu0 %v952
      %2660 = vmatpush.msra.mxu0 %v950
      %2661 = vmatpush.msra.mxu0 %v948
      %2662 = vmatpush.msra.mxu0 %v946
      %2663 = vmatpush.msra.mxu0 %v944
      %2664 = vmatpush.msra.mxu0 %v942
      %2665 = vmatpush.msra.mxu0 %v940
      %2666 = vmatpush.msra.mxu0 %v938
      %2667 = vmatpush.msra.mxu0 %v936
      %2668 = vmatpush.msra.mxu0 %v934
      %2669 = vmatpush.msra.mxu0 %v932
      %2670 = vmatmul.f32.gmra.mxu0 %v323
      %v2671 = vpop.f32.mrf.mxu0
      %v2672 = vadd.f32 %v2652, %v2671
      %2673 = vdwg.mxu0
      %2674 = vmatpush.msra.mxu0 %v994
      %2675 = vmatpush.msra.mxu0 %v992
      %2676 = vmatpush.msra.mxu0 %v990
      %2677 = vmatpush.msra.mxu0 %v988
      %2678 = vmatpush.msra.mxu0 %v986
      %2679 = vmatpush.msra.mxu0 %v984
      %2680 = vmatpush.msra.mxu0 %v982
      %2681 = vmatpush.msra.mxu0 %v980
      %2682 = vmatpush.msra.mxu0 %v978
      %2683 = vmatpush.msra.mxu0 %v976
      %2684 = vmatpush.msra.mxu0 %v974
      %2685 = vmatpush.msra.mxu0 %v972
      %2686 = vmatpush.msra.mxu0 %v970
      %2687 = vmatpush.msra.mxu0 %v968
      %2688 = vmatpush.msra.mxu0 %v966
      %2689 = vmatpush.msra.mxu0 %v964
      %2690 = vmatmul.f32.gmra.mxu0 %v324
      %v2691 = vpop.f32.mrf.mxu0
      %v2692 = vadd.f32 %v2672, %v2691
      %2693 = vdwg.mxu0
      %2694 = vmatpush.msra.mxu0 %v1026
      %2695 = vmatpush.msra.mxu0 %v1024
      %2696 = vmatpush.msra.mxu0 %v1022
      %2697 = vmatpush.msra.mxu0 %v1020
      %2698 = vmatpush.msra.mxu0 %v1018
      %2699 = vmatpush.msra.mxu0 %v1016
      %2700 = vmatpush.msra.mxu0 %v1014
      %2701 = vmatpush.msra.mxu0 %v1012
      %2702 = vmatpush.msra.mxu0 %v1010
      %2703 = vmatpush.msra.mxu0 %v1008
      %2704 = vmatpush.msra.mxu0 %v1006
      %2705 = vmatpush.msra.mxu0 %v1004
      %2706 = vmatpush.msra.mxu0 %v1002
      %2707 = vmatpush.msra.mxu0 %v1000
      %2708 = vmatpush.msra.mxu0 %v998
      %2709 = vmatpush.msra.mxu0 %v996
      %2710 = vmatmul.f32.gmra.mxu0 %v336
      %v2711 = vpop.f32.mrf.mxu0
      %v2712 = vadd.f32 %v2692, %v2711
      %2713 = vdwg.mxu0
      %2714 = vmatpush.msra.mxu0 %v1058
      %2715 = vmatpush.msra.mxu0 %v1056
      %2716 = vmatpush.msra.mxu0 %v1054
      %2717 = vmatpush.msra.mxu0 %v1052
      %2718 = vmatpush.msra.mxu0 %v1050
      %2719 = vmatpush.msra.mxu0 %v1048
      %2720 = vmatpush.msra.mxu0 %v1046
      %2721 = vmatpush.msra.mxu0 %v1044
      %2722 = vmatpush.msra.mxu0 %v1042
      %2723 = vmatpush.msra.mxu0 %v1040
      %2724 = vmatpush.msra.mxu0 %v1038
      %2725 = vmatpush.msra.mxu0 %v1036
      %2726 = vmatpush.msra.mxu0 %v1034
      %2727 = vmatpush.msra.mxu0 %v1032
      %2728 = vmatpush.msra.mxu0 %v1030
      %2729 = vmatpush.msra.mxu0 %v1028
      %2730 = vmatmul.f32.gmra.mxu0 %v339
      %v2731 = vpop.f32.mrf.mxu0
      %v2732 = vadd.f32 %v2712, %v2731
      %2733 = vdwg.mxu0
      %2734 = vmatpush.msra.mxu0 0.0
      %2735 = vmatpush.msra.mxu0 0.0
      %2736 = vmatpush.msra.mxu0 0.0
      %2737 = vmatpush.msra.mxu0 0.0
      %2738 = vmatpush.msra.mxu0 0.0
      %2739 = vmatpush.msra.mxu0 0.0
      %2740 = vmatpush.msra.mxu0 0.0
      %2741 = vmatpush.msra.mxu0 0.0
      %2742 = vmatpush.msra.mxu0 0.0
      %2743 = vmatpush.msra.mxu0 0.0
      %2744 = vmatpush.msra.mxu0 0.0
      %2745 = vmatpush.msra.mxu0 0.0
      %2746 = vmatpush.msra.mxu0 %v1066
      %2747 = vmatpush.msra.mxu0 %v1064
      %2748 = vmatpush.msra.mxu0 %v1062
      %2749 = vmatpush.msra.mxu0 %v1060
      %2750 = vmatmul.f32.gmra.mxu0 %v2032
      %v2751 = vpop.f32.mrf.mxu0
      %v2752 = vadd.f32 %v2732, %v2751
      %2753 = vdwg.mxu0
      %2754 = vmatpush.msra.mxu0 %v739
      %2755 = vmatpush.msra.mxu0 %v737
      %2756 = vmatpush.msra.mxu0 %v735
      %2757 = vmatpush.msra.mxu0 %v733
      %2758 = vmatpush.msra.mxu0 %v731
      %2759 = vmatpush.msra.mxu0 %v729
      %2760 = vmatpush.msra.mxu0 %v727
      %2761 = vmatpush.msra.mxu0 %v725
      %2762 = vmatpush.msra.mxu0 %v723
      %2763 = vmatpush.msra.mxu0 %v721
      %2764 = vmatpush.msra.mxu0 %v719
      %2765 = vmatpush.msra.mxu0 %v717
      %2766 = vmatpush.msra.mxu0 %v715
      %2767 = vmatpush.msra.mxu0 %v713
      %2768 = vmatpush.msra.mxu0 %v711
      %2769 = vmatpush.msra.mxu0 %v709
      %2770 = vmatmul.f32.gmra.mxu0 %v202
      %v2771 = vpop.f32.mrf.mxu0
      %v2772 = vadd.f32 0.0, %v2771
      %2773 = vdwg.mxu0
      %2774 = vmatpush.msra.mxu0 %v771
      %2775 = vmatpush.msra.mxu0 %v769
      %2776 = vmatpush.msra.mxu0 %v767
      %2777 = vmatpush.msra.mxu0 %v765
      %2778 = vmatpush.msra.mxu0 %v763
      %2779 = vmatpush.msra.mxu0 %v761
      %2780 = vmatpush.msra.mxu0 %v759
      %2781 = vmatpush.msra.mxu0 %v757
      %2782 = vmatpush.msra.mxu0 %v755
      %2783 = vmatpush.msra.mxu0 %v753
      %2784 = vmatpush.msra.mxu0 %v751
      %2785 = vmatpush.msra.mxu0 %v749
      %2786 = vmatpush.msra.mxu0 %v747
      %2787 = vmatpush.msra.mxu0 %v745
      %2788 = vmatpush.msra.mxu0 %v743
      %2789 = vmatpush.msra.mxu0 %v741
      %2790 = vmatmul.f32.gmra.mxu0 %v203
      %v2791 = vpop.f32.mrf.mxu0
      %v2792 = vadd.f32 %v2772, %v2791
      %2793 = vdwg.mxu0
      %2794 = vmatpush.msra.mxu0 %v803
      %2795 = vmatpush.msra.mxu0 %v801
      %2796 = vmatpush.msra.mxu0 %v799
      %2797 = vmatpush.msra.mxu0 %v797
      %2798 = vmatpush.msra.mxu0 %v795
      %2799 = vmatpush.msra.mxu0 %v793
      %2800 = vmatpush.msra.mxu0 %v791
      %2801 = vmatpush.msra.mxu0 %v789
      %2802 = vmatpush.msra.mxu0 %v787
      %2803 = vmatpush.msra.mxu0 %v785
      %2804 = vmatpush.msra.mxu0 %v783
      %2805 = vmatpush.msra.mxu0 %v781
      %2806 = vmatpush.msra.mxu0 %v779
      %2807 = vmatpush.msra.mxu0 %v777
      %2808 = vmatpush.msra.mxu0 %v775
      %2809 = vmatpush.msra.mxu0 %v773
      %2810 = vmatmul.f32.gmra.mxu0 %v345
      %v2811 = vpop.f32.mrf.mxu0
      %v2812 = vadd.f32 %v2792, %v2811
      %2813 = vdwg.mxu0
      %2814 = vmatpush.msra.mxu0 %v835
      %2815 = vmatpush.msra.mxu0 %v833
      %2816 = vmatpush.msra.mxu0 %v831
      %2817 = vmatpush.msra.mxu0 %v829
      %2818 = vmatpush.msra.mxu0 %v827
      %2819 = vmatpush.msra.mxu0 %v825
      %2820 = vmatpush.msra.mxu0 %v823
      %2821 = vmatpush.msra.mxu0 %v821
      %2822 = vmatpush.msra.mxu0 %v819
      %2823 = vmatpush.msra.mxu0 %v817
      %2824 = vmatpush.msra.mxu0 %v815
      %2825 = vmatpush.msra.mxu0 %v813
      %2826 = vmatpush.msra.mxu0 %v811
      %2827 = vmatpush.msra.mxu0 %v809
      %2828 = vmatpush.msra.mxu0 %v807
      %2829 = vmatpush.msra.mxu0 %v805
      %2830 = vmatmul.f32.gmra.mxu0 %v301
      %v2831 = vpop.f32.mrf.mxu0
      %v2832 = vadd.f32 %v2812, %v2831
      %2833 = vdwg.mxu0
      %2834 = vmatpush.msra.mxu0 %v867
      %2835 = vmatpush.msra.mxu0 %v865
      %2836 = vmatpush.msra.mxu0 %v863
      %2837 = vmatpush.msra.mxu0 %v861
      %2838 = vmatpush.msra.mxu0 %v859
      %2839 = vmatpush.msra.mxu0 %v857
      %2840 = vmatpush.msra.mxu0 %v855
      %2841 = vmatpush.msra.mxu0 %v853
      %2842 = vmatpush.msra.mxu0 %v851
      %2843 = vmatpush.msra.mxu0 %v849
      %2844 = vmatpush.msra.mxu0 %v847
      %2845 = vmatpush.msra.mxu0 %v845
      %2846 = vmatpush.msra.mxu0 %v843
      %2847 = vmatpush.msra.mxu0 %v841
      %2848 = vmatpush.msra.mxu0 %v839
      %2849 = vmatpush.msra.mxu0 %v837
      %2850 = vmatmul.f32.gmra.mxu0 %v346
      %v2851 = vpop.f32.mrf.mxu0
      %v2852 = vadd.f32 %v2832, %v2851
      %2853 = vdwg.mxu0
      %2854 = vmatpush.msra.mxu0 %v899
      %2855 = vmatpush.msra.mxu0 %v897
      %2856 = vmatpush.msra.mxu0 %v895
      %2857 = vmatpush.msra.mxu0 %v893
      %2858 = vmatpush.msra.mxu0 %v891
      %2859 = vmatpush.msra.mxu0 %v889
      %2860 = vmatpush.msra.mxu0 %v887
      %2861 = vmatpush.msra.mxu0 %v885
      %2862 = vmatpush.msra.mxu0 %v883
      %2863 = vmatpush.msra.mxu0 %v881
      %2864 = vmatpush.msra.mxu0 %v879
      %2865 = vmatpush.msra.mxu0 %v877
      %2866 = vmatpush.msra.mxu0 %v875
      %2867 = vmatpush.msra.mxu0 %v873
      %2868 = vmatpush.msra.mxu0 %v871
      %2869 = vmatpush.msra.mxu0 %v869
      %2870 = vmatmul.f32.gmra.mxu0 %v312
      %v2871 = vpop.f32.mrf.mxu0
      %v2872 = vadd.f32 %v2852, %v2871
      %2873 = vdwg.mxu0
      %2874 = vmatpush.msra.mxu0 %v931
      %2875 = vmatpush.msra.mxu0 %v929
      %2876 = vmatpush.msra.mxu0 %v927
      %2877 = vmatpush.msra.mxu0 %v925
      %2878 = vmatpush.msra.mxu0 %v923
      %2879 = vmatpush.msra.mxu0 %v921
      %2880 = vmatpush.msra.mxu0 %v919
      %2881 = vmatpush.msra.mxu0 %v917
      %2882 = vmatpush.msra.mxu0 %v915
      %2883 = vmatpush.msra.mxu0 %v913
      %2884 = vmatpush.msra.mxu0 %v911
      %2885 = vmatpush.msra.mxu0 %v909
      %2886 = vmatpush.msra.mxu0 %v907
      %2887 = vmatpush.msra.mxu0 %v905
      %2888 = vmatpush.msra.mxu0 %v903
      %2889 = vmatpush.msra.mxu0 %v901
      %2890 = vmatmul.f32.gmra.mxu0 %v347
      %v2891 = vpop.f32.mrf.mxu0
      %v2892 = vadd.f32 %v2872, %v2891
      %2893 = vdwg.mxu0
      %2894 = vmatpush.msra.mxu0 %v963
      %2895 = vmatpush.msra.mxu0 %v961
      %2896 = vmatpush.msra.mxu0 %v959
      %2897 = vmatpush.msra.mxu0 %v957
      %2898 = vmatpush.msra.mxu0 %v955
      %2899 = vmatpush.msra.mxu0 %v953
      %2900 = vmatpush.msra.mxu0 %v951
      %2901 = vmatpush.msra.mxu0 %v949
      %2902 = vmatpush.msra.mxu0 %v947
      %2903 = vmatpush.msra.mxu0 %v945
      %2904 = vmatpush.msra.mxu0 %v943
      %2905 = vmatpush.msra.mxu0 %v941
      %2906 = vmatpush.msra.mxu0 %v939
      %2907 = vmatpush.msra.mxu0 %v937
      %2908 = vmatpush.msra.mxu0 %v935
      %2909 = vmatpush.msra.mxu0 %v933
      %2910 = vmatmul.f32.gmra.mxu0 %v323
      %v2911 = vpop.f32.mrf.mxu0
      %v2912 = vadd.f32 %v2892, %v2911
      %2913 = vdwg.mxu0
      %2914 = vmatpush.msra.mxu0 %v995
      %2915 = vmatpush.msra.mxu0 %v993
      %2916 = vmatpush.msra.mxu0 %v991
      %2917 = vmatpush.msra.mxu0 %v989
      %2918 = vmatpush.msra.mxu0 %v987
      %2919 = vmatpush.msra.mxu0 %v985
      %2920 = vmatpush.msra.mxu0 %v983
      %2921 = vmatpush.msra.mxu0 %v981
      %2922 = vmatpush.msra.mxu0 %v979
      %2923 = vmatpush.msra.mxu0 %v977
      %2924 = vmatpush.msra.mxu0 %v975
      %2925 = vmatpush.msra.mxu0 %v973
      %2926 = vmatpush.msra.mxu0 %v971
      %2927 = vmatpush.msra.mxu0 %v969
      %2928 = vmatpush.msra.mxu0 %v967
      %2929 = vmatpush.msra.mxu0 %v965
      %2930 = vmatmul.f32.gmra.mxu0 %v324
      %v2931 = vpop.f32.mrf.mxu0
      %v2932 = vadd.f32 %v2912, %v2931
      %2933 = vdwg.mxu0
      %2934 = vmatpush.msra.mxu0 %v1027
      %2935 = vmatpush.msra.mxu0 %v1025
      %2936 = vmatpush.msra.mxu0 %v1023
      %2937 = vmatpush.msra.mxu0 %v1021
      %2938 = vmatpush.msra.mxu0 %v1019
      %2939 = vmatpush.msra.mxu0 %v1017
      %2940 = vmatpush.msra.mxu0 %v1015
      %2941 = vmatpush.msra.mxu0 %v1013
      %2942 = vmatpush.msra.mxu0 %v1011
      %2943 = vmatpush.msra.mxu0 %v1009
      %2944 = vmatpush.msra.mxu0 %v1007
      %2945 = vmatpush.msra.mxu0 %v1005
      %2946 = vmatpush.msra.mxu0 %v1003
      %2947 = vmatpush.msra.mxu0 %v1001
      %2948 = vmatpush.msra.mxu0 %v999
      %2949 = vmatpush.msra.mxu0 %v997
      %2950 = vmatmul.f32.gmra.mxu0 %v336
      %v2951 = vpop.f32.mrf.mxu0
      %v2952 = vadd.f32 %v2932, %v2951
      %2953 = vdwg.mxu0
      %2954 = vmatpush.msra.mxu0 %v1059
      %2955 = vmatpush.msra.mxu0 %v1057
      %2956 = vmatpush.msra.mxu0 %v1055
      %2957 = vmatpush.msra.mxu0 %v1053
      %2958 = vmatpush.msra.mxu0 %v1051
      %2959 = vmatpush.msra.mxu0 %v1049
      %2960 = vmatpush.msra.mxu0 %v1047
      %2961 = vmatpush.msra.mxu0 %v1045
      %2962 = vmatpush.msra.mxu0 %v1043
      %2963 = vmatpush.msra.mxu0 %v1041
      %2964 = vmatpush.msra.mxu0 %v1039
      %2965 = vmatpush.msra.mxu0 %v1037
      %2966 = vmatpush.msra.mxu0 %v1035
      %2967 = vmatpush.msra.mxu0 %v1033
      %2968 = vmatpush.msra.mxu0 %v1031
      %2969 = vmatpush.msra.mxu0 %v1029
      %2970 = vmatmul.f32.gmra.mxu0 %v339
      %v2971 = vpop.f32.mrf.mxu0
      %v2972 = vadd.f32 %v2952, %v2971
      %2973 = vdwg.mxu0
      %2974 = vmatpush.msra.mxu0 0.0
      %2975 = vmatpush.msra.mxu0 0.0
      %2976 = vmatpush.msra.mxu0 0.0
      %2977 = vmatpush.msra.mxu0 0.0
      %2978 = vmatpush.msra.mxu0 0.0
      %2979 = vmatpush.msra.mxu0 0.0
      %2980 = vmatpush.msra.mxu0 0.0
      %2981 = vmatpush.msra.mxu0 0.0
      %2982 = vmatpush.msra.mxu0 0.0
      %2983 = vmatpush.msra.mxu0 0.0
      %2984 = vmatpush.msra.mxu0 0.0
      %2985 = vmatpush.msra.mxu0 0.0
      %2986 = vmatpush.msra.mxu0 %v1067
      %2987 = vmatpush.msra.mxu0 %v1065
      %2988 = vmatpush.msra.mxu0 %v1063
      %2989 = vmatpush.msra.mxu0 %v1061
      %2990 = vmatmul.f32.gmra.mxu0 %v2032
      %v2991 = vpop.f32.mrf.mxu0
      %v2992 = vadd.f32 %v2972, %v2991
      %2993 = vdwg.mxu0
      %v2994 = vmax.f32 %v2272, %v2752
      %v2995 = vmax.f32 %v2512, %v2992
      %v2996 = vmax.f32 %v2030, %v2994
      %v2997 = vmax.f32 %v2031, %v2995
      %v2998 = vld [vmem:[%s3] sm:$0x3]
      %v3000 = vperm.slane %v2998, 0
      %v3001 = vperm.slane %v2998, 1
      %v3004 = vadd.f32 %v2996, %v3000
      %v3005 = vadd.f32 %v2997, %v3001
      %v3006 = vmax.f32 %v3004, 0.0
      %v3007 = vmax.f32 %v3005, 0.0
      %3008 = vst [vmem:[%s197] sm:$0x7f] %v3006
      %vm3009 = vcmask 784384
      %3010 = vst.msk [vmem:[%s197 + $0x8] sm:$0x7f] %vm3009, %v3007
      %p3011 = scmp.lt.s32.totalorder %s15, 1
      %s3012 = scalar_select %p3011, %s15, 1
      %s3013 = smul.addr %s3012, 2
      %s3014 = smul.addr %s3013, 8
      %s3015 = scalar_lea.vmem %s4, %s3014
      // Predicated region
      $region37: #{model_forward.4} parent=35 // pred_check
        %p3016 = pneg %p122
      $region38: #{model_forward.4} parent=35 // pred_check_branch
        %3018 = sbr.rel (%p3016) target = $region40
      $region39: #{model_forward.4} parent=35 // pred_region
        _
      $region40: #{model_forward.4} parent=35 // pred_fallthru
        _
    $region36: #{model_forward.4} parent=5 // pred_fallthru
      _
    %p3019 = scmp.le.s32.totalorder 2, %s10
    // Predicated region
    $region41: #{model_forward.4} parent=5 // pred_check
      %p3020 = pneg %p3019
    $region42: #{model_forward.4} parent=5 // pred_check_branch
      %3022 = sbr.rel (%p3020) target = $region44
    $region43: #{model_forward.4} parent=5 // pred_region
      %s3023 = ssub.s32 %s10, 2
      // Predicated region
      $region45: #{model_forward.4} parent=43 // pred_check
        %p3024 = pneg %p128
      $region46: #{model_forward.4} parent=43 // pred_check_branch
        %3026 = sbr.rel (%p3024) target = $region48
      $region47: #{model_forward.4} parent=43 // pred_region
        %p3027 = scmp.lt.s32.totalorder %s16, 1
        %s3028 = scalar_select %p3027, %s16, 1
        %s3029 = smul.addr %s3028, 2
        %s3030 = smul.addr %s3029, 8
        %s3031 = scalar_lea.vmem %s4, %s3030
      $region48: #{model_forward.4} parent=43 // pred_fallthru
        _
    $region44: #{model_forward.4} parent=5 // pred_fallthru
      _
  $region6: #{model_forward.4} parent=0 // loop_footer
    %s14 = sadd.s32 1, %s10
  $region7: #{model_forward.4} parent=0 // loop_footer_branch
    %9 = sbr.rel target = $region3
  $region8: #{model_forward.4} parent=0 // loop_exit
    _

</llo_original>
